<compile_context>
chip_gen: v7x
topology: tpu7x:2x2x1
jax: 0.10.0
libtpu: 0.0.40
codegen_flags: <defaults>
</compile_context>

<pallas_src>
import numpy as np
import jax
import jax.numpy as jnp
from jax import lax
from jax.experimental import pallas as pl
from jax.experimental.pallas import tpu as pltpu


GUARD = 128  # zero-lane guard on each side of a feature slab (>= W + 1)


# ----------------------------------------------------------------------------
# Fused OSA kernel (closure over static shape config)
# ----------------------------------------------------------------------------
def _make_osa_kernel(cin, stage_ch, concat_ch, n_layers, H, W):
    HW = H * W
    OFF = GUARD
    n_src = n_layers + 1

    def kernel(x_ref, mask_ref, wconv_ref, bconv_ref, wcat_ref, bcat_ref,
               fcw_ref, fcb_ref, o_ref, *bufs):
        # 0) zero feature slabs: guard lanes provide the conv zero padding,
        #    unused sublanes of slab 0 provide channel padding (cin < stage_ch).
        for buf in bufs:
            buf[...] = jnp.zeros_like(buf)

        # 1) stage the input feature map (cin rows) into slab 0.
        bufs[0][pl.ds(0, cin), pl.ds(OFF, HW)] = x_ref[0]

        # Per-tap (flat shift, wrap mask).  Masks are only needed when the
        # horizontal offset can wrap across an image row (dw != 0); purely
        # vertical out-of-image reads land in the zeroed guard lanes.
        taps = []
        for t in range(9):
            dh, dw = t // 3 - 1, t % 3 - 1
            m = mask_ref[t] if dw != 0 else None          # (1, HW) or None
            taps.append((t, dh * W + dw, m))

        # 2) conv3x3 (+ folded BN) + ReLU chain, all VMEM resident.
        for l in range(n_layers):
            src = bufs[l]
            acc = jnp.zeros((stage_ch, HW), jnp.float32)
            for t, shift, m in taps:
                slab = src[:, pl.ds(OFF + shift, HW)]     # (stage_ch, HW)
                if m is not None:
                    slab = slab * m                       # kill row-wrap reads
                acc = acc + jnp.dot(wconv_ref[l * 9 + t], slab,
                                    preferred_element_type=jnp.float32)
            y = jnp.maximum(acc + bconv_ref[l], 0.0)      # bias (S,1) broadcast
            bufs[l + 1][:, pl.ds(OFF, HW)] = y

        # 3) "concat" 1x1 conv (+ folded BN) + ReLU as per-source GEMMs
        #    (the concatenated tensor never exists).
        acc = jnp.zeros((concat_ch, HW), jnp.float32)
        for i in range(n_src):
            acc = acc + jnp.dot(wcat_ref[i], bufs[i][:, pl.ds(OFF, HW)],
                                preferred_element_type=jnp.float32)
        y = jnp.maximum(acc + bcat_ref[...], 0.0)         # (concat_ch, HW)

        # 4) eSE: global avg pool -> 1x1 fc (+bias) -> hard-sigmoid -> rescale.
        #    mean(fc(y)) == fc(mean(y)); doing the GEMM against the full slab
        #    keeps N = HW lane-dense and avoids an N=1 mat-vec.
        z = jnp.dot(fcw_ref[...], y, preferred_element_type=jnp.float32)
        s = jnp.sum(z, axis=1, keepdims=True) * (1.0 / HW) + fcb_ref[...]
        s = jnp.clip(s + 3.0, 0.0, 6.0) * (1.0 / 6.0)     # relu6(x+3)/6
        o_ref[0] = y * s
        # TODO(synk): identity=True residual add and depthwise=True paths are
        # not implemented (module defaults are False).

    return kernel


# ----------------------------------------------------------------------------
# Wrapper: single pallas_call over the batch
# ----------------------------------------------------------------------------
@jax.jit
def osa_forward(x_nchw, kp):
    B, cin, H, W = x_nchw.shape
    HW = H * W
    n_layers, stage_ch = kp["bconv"].shape[0], kp["bconv"].shape[1]
    concat_ch = kp["bcat"].shape[0]
    n_src = kp["wcat"].shape[0]
    assert W + 1 <= GUARD
    lbuf = GUARD + HW + GUARD

    kernel = _make_osa_kernel(cin, stage_ch, concat_ch, n_layers, H, W)
    x_flat = x_nchw.reshape(B, cin, HW)

    out = pl.pallas_call(
        kernel,
        out_shape=jax.ShapeDtypeStruct((B, concat_ch, HW), jnp.float32),
        grid_spec=pltpu.PrefetchScalarGridSpec(
            num_scalar_prefetch=0,
            grid=(B,),
            in_specs=[
                pl.BlockSpec((1, cin, HW), lambda b: (b, 0, 0)),
                pl.BlockSpec((9, 1, HW), lambda b: (0, 0, 0)),
                pl.BlockSpec((n_layers * 9, stage_ch, stage_ch),
                             lambda b: (0, 0, 0)),
                pl.BlockSpec((n_layers, stage_ch, 1), lambda b: (0, 0, 0)),
                pl.BlockSpec((n_src, concat_ch, stage_ch), lambda b: (0, 0, 0)),
                pl.BlockSpec((concat_ch, 1), lambda b: (0, 0)),
                pl.BlockSpec((concat_ch, concat_ch), lambda b: (0, 0)),
                pl.BlockSpec((concat_ch, 1), lambda b: (0, 0)),
            ],
            out_specs=pl.BlockSpec((1, concat_ch, HW), lambda b: (b, 0, 0)),
            scratch_shapes=[pltpu.VMEM((stage_ch, lbuf), jnp.float32)
                            for _ in range(n_src)],
        ),
        compiler_params=pltpu.CompilerParams(
            dimension_semantics=("parallel",)),
    )(x_flat, kp["masks"], kp["wconv"], kp["bconv"], kp["wcat"], kp["bcat"],
      kp["fcw"], kp["fcb"])
    return out.reshape(B, concat_ch, H, W)


# ----------------------------------------------------------------------------
# Parameter construction (eval-mode BN) and kernel-layout preparation
# ----------------------------------------------------------------------------
def fold_bn(gamma, beta, mean, var, eps=1e-5):
    scale = gamma / jnp.sqrt(var + eps)
    bias = beta - mean * scale
    return scale, bias


def make_params(key, in_ch, stage_ch, concat_ch, layer_per_block):
    keys = jax.random.split(key, 4 * layer_per_block + 6)
    ki = iter(range(len(keys)))
    params = {"layers": []}
    cin = in_ch
    for _ in range(layer_per_block):
        w = jax.random.normal(keys[next(ki)], (3, 3, cin, stage_ch),
                              jnp.float32) * 0.2
        gamma = 1.0 + 0.1 * jax.random.normal(keys[next(ki)], (stage_ch,))
        beta = 0.1 * jax.random.normal(keys[next(ki)], (stage_ch,))
        mean = 0.1 * jax.random.normal(keys[next(ki)], (stage_ch,))
        var = jnp.ones((stage_ch,), jnp.float32)
        scale, bias = fold_bn(gamma, beta, mean, var)
        params["layers"].append((w, scale, bias))
        cin = stage_ch

    ct = in_ch + layer_per_block * stage_ch
    wc = jax.random.normal(keys[next(ki)], (ct, concat_ch), jnp.float32) * 0.2
    gamma = 1.0 + 0.1 * jax.random.normal(keys[next(ki)], (concat_ch,))
    beta = 0.1 * jax.random.normal(keys[next(ki)], (concat_ch,))
    mean = 0.1 * jax.random.normal(keys[next(ki)], (concat_ch,))
    var = jnp.ones((concat_ch,), jnp.float32)
    cscale, cbias = fold_bn(gamma, beta, mean, var)
    params["concat"] = (wc, cscale, cbias)

    fc_w = jax.random.normal(keys[next(ki)], (concat_ch, concat_ch),
                             jnp.float32) * 0.2
    fc_b = 0.1 * jax.random.normal(keys[next(ki)], (concat_ch,))
    params["ese"] = (fc_w, fc_b)
    return params


def prepare_kernel_params(params, in_ch, stage_ch, concat_ch, H, W):
    """Fold BN scales into weights and reorganize everything to kernel layout."""
    HW = H * W
    n_layers = len(params["layers"])

    wks, bks = [], []
    for (w, scale, bias) in params["layers"]:
        cin = w.shape[2]
        wk = w * scale[None, None, None, :]                       # fold BN scale
        wk = jnp.transpose(wk, (0, 1, 3, 2)).reshape(9, stage_ch, cin)
        wk = jnp.pad(wk, ((0, 0), (0, 0), (0, stage_ch - cin)))   # pad ci->stage_ch
        wks.append(wk)
        bks.append(bias.reshape(stage_ch, 1))
    wconv = jnp.concatenate(wks, axis=0)                          # (L*9, S, S)
    bconv = jnp.stack(bks, axis=0)                                # (L, S, 1)

    wc, cscale, cbias = params["concat"]
    wck = (wc * cscale[None, :]).T                                # (CC, ct)
    srcs = [jnp.pad(wck[:, :in_ch], ((0, 0), (0, stage_ch - in_ch)))]
    off = in_ch
    for _ in range(n_layers):
        srcs.append(wck[:, off:off + stage_ch])
        off += stage_ch
    wcat = jnp.stack(srcs, axis=0)                                # (L+1, CC, S)
    bcat = cbias.reshape(concat_ch, 1)

    fc_w, fc_b = params["ese"]
    fcw = fc_w.T                                                  # s = fcw @ pooled
    fcb = fc_b.reshape(concat_ch, 1)

    # Per-tap validity masks for the shifted flat (row-major) reads.
    masks = np.zeros((9, 1, HW), np.float32)
    hh, ww = np.meshgrid(np.arange(H), np.arange(W), indexing="ij")
    for t in range(9):
        dh, dw = t // 3 - 1, t % 3 - 1
        valid = ((hh + dh >= 0) & (hh + dh < H) &
                 (ww + dw >= 0) & (ww + dw < W))
        masks[t, 0] = valid.reshape(-1).astype(np.float32)

    return dict(wconv=wconv, bconv=bconv, wcat=wcat, bcat=bcat,
                fcw=fcw, fcb=fcb, masks=jnp.asarray(masks))


# ----------------------------------------------------------------------------
# Pure-JAX reference (HIGHEST precision, for a tight correctness check)
# ----------------------------------------------------------------------------
def osa_reference(x_nchw, params):
    x = jnp.transpose(x_nchw, (0, 2, 3, 1))
    outputs = [x]
    cur = x
    for (w, scale, bias) in params["layers"]:
        dn = lax.conv_dimension_numbers(cur.shape, w.shape,
                                        ("NHWC", "HWIO", "NHWC"))
        y = lax.conv_general_dilated(cur, w, (1, 1), "SAME",
                                     dimension_numbers=dn,
                                     precision=lax.Precision.HIGHEST)
        cur = jnp.maximum(y * scale + bias, 0.0)
        outputs.append(cur)
    xcat = jnp.concatenate(outputs, axis=-1)
    wc, cscale, cbias = params["concat"]
    y = jnp.einsum("bhwc,cd->bhwd", xcat, wc,
                   precision=lax.Precision.HIGHEST)
    y = jnp.maximum(y * cscale + cbias, 0.0)
    fc_w, fc_b = params["ese"]
    pooled = jnp.mean(y, axis=(1, 2))                             # (B, Cc)
    s = jnp.dot(pooled, fc_w, precision=lax.Precision.HIGHEST) + fc_b
    s = jnp.clip(s + 3.0, 0.0, 6.0) / 6.0
    out = y * s[:, None, None, :]
    return jnp.transpose(out, (0, 3, 1, 2))


if __name__ == "__main__":
    B, IN_CH, H, W = 2, 4, 16, 16
    STAGE_CH, CONCAT_CH, LAYERS = 8, 16, 3

    key = jax.random.PRNGKey(0)
    kx, kp_key = jax.random.split(key)
    x = jax.random.normal(kx, (B, IN_CH, H, W), jnp.float32)
    params = make_params(kp_key, IN_CH, STAGE_CH, CONCAT_CH, LAYERS)
    kparams = prepare_kernel_params(params, IN_CH, STAGE_CH, CONCAT_CH, H, W)

    out = jax.block_until_ready(osa_forward(x, kparams))
    ref = jax.block_until_ready(osa_reference(x, params))

    np.testing.assert_allclose(np.asarray(out), np.asarray(ref),
                               rtol=1e-3, atol=1e-3)
    assert out.shape == (B, CONCAT_CH, H, W)
    print("KERNEL_OK")
</pallas_src>

<mosaic_0001>
module attributes {stable_mosaic.version = 11 : i64} {
  func.func @kernel(%arg0: i32, %arg1: memref<1x4x256xf32, #tpu.memory_space<vmem>>, %arg2: memref<9x1x256xf32, #tpu.memory_space<vmem>>, %arg3: memref<27x8x8xf32, #tpu.memory_space<vmem>>, %arg4: memref<3x8x1xf32, #tpu.memory_space<vmem>>, %arg5: memref<4x16x8xf32, #tpu.memory_space<vmem>>, %arg6: memref<16x1xf32, #tpu.memory_space<vmem>>, %arg7: memref<16x16xf32, #tpu.memory_space<vmem>>, %arg8: memref<16x1xf32, #tpu.memory_space<vmem>>, %arg9: memref<1x16x256xf32, #tpu.memory_space<vmem>>, %arg10: memref<8x512xf32, #tpu.memory_space<vmem>>, %arg11: memref<8x512xf32, #tpu.memory_space<vmem>>, %arg12: memref<8x512xf32, #tpu.memory_space<vmem>>, %arg13: memref<8x512xf32, #tpu.memory_space<vmem>>) attributes {dimension_semantics = [#tpu.dimension_semantics<parallel>], iteration_bounds = array<i64: 2>, scalar_prefetch = 0 : i64, scratch_operands = 4 : i64, tpu.core_type = #tpu.core_type<tc>, window_params = [{transform_indices = @transform_0, window_bounds = array<i64: 1, 4, 256>}, {pipeline_mode = #tpu.pipeline_mode<synchronous>, transform_indices = @transform_1, window_bounds = array<i64: 9, 1, 256>}, {pipeline_mode = #tpu.pipeline_mode<synchronous>, transform_indices = @transform_2, window_bounds = array<i64: 27, 8, 8>}, {pipeline_mode = #tpu.pipeline_mode<synchronous>, transform_indices = @transform_3, window_bounds = array<i64: 3, 8, 1>}, {pipeline_mode = #tpu.pipeline_mode<synchronous>, transform_indices = @transform_4, window_bounds = array<i64: 4, 16, 8>}, {pipeline_mode = #tpu.pipeline_mode<synchronous>, transform_indices = @transform_5, window_bounds = array<i64: 16, 1>}, {pipeline_mode = #tpu.pipeline_mode<synchronous>, transform_indices = @transform_6, window_bounds = array<i64: 16, 16>}, {pipeline_mode = #tpu.pipeline_mode<synchronous>, transform_indices = @transform_7, window_bounds = array<i64: 16, 1>}, {transform_indices = @transform_8, window_bounds = array<i64: 1, 16, 256>}]} {
    %cst = arith.constant 0.000000e+00 : f32
    %0 = vector.broadcast %cst : f32 to vector<8x512xf32>
    %c0 = arith.constant 0 : index
    %c0_0 = arith.constant 0 : index
    %1 = vector.load %arg10[%c0, %c0_0] : memref<8x512xf32, #tpu.memory_space<vmem>>, vector<8x512xf32>
    tpu.vector_store %arg10[%c0, %c0_0], %0 {strides = array<i32>} : memref<8x512xf32, #tpu.memory_space<vmem>>, vector<8x512xf32>,
    %cst_1 = arith.constant 0.000000e+00 : f32
    %2 = vector.broadcast %cst_1 : f32 to vector<8x512xf32>
    %c0_2 = arith.constant 0 : index
    %c0_3 = arith.constant 0 : index
    %3 = vector.load %arg11[%c0_2, %c0_3] : memref<8x512xf32, #tpu.memory_space<vmem>>, vector<8x512xf32>
    tpu.vector_store %arg11[%c0_2, %c0_3], %2 {strides = array<i32>} : memref<8x512xf32, #tpu.memory_space<vmem>>, vector<8x512xf32>,
    %cst_4 = arith.constant 0.000000e+00 : f32
    %4 = vector.broadcast %cst_4 : f32 to vector<8x512xf32>
    %c0_5 = arith.constant 0 : index
    %c0_6 = arith.constant 0 : index
    %5 = vector.load %arg12[%c0_5, %c0_6] : memref<8x512xf32, #tpu.memory_space<vmem>>, vector<8x512xf32>
    tpu.vector_store %arg12[%c0_5, %c0_6], %4 {strides = array<i32>} : memref<8x512xf32, #tpu.memory_space<vmem>>, vector<8x512xf32>,
    %cst_7 = arith.constant 0.000000e+00 : f32
    %6 = vector.broadcast %cst_7 : f32 to vector<8x512xf32>
    %c0_8 = arith.constant 0 : index
    %c0_9 = arith.constant 0 : index
    %7 = vector.load %arg13[%c0_8, %c0_9] : memref<8x512xf32, #tpu.memory_space<vmem>>, vector<8x512xf32>
    tpu.vector_store %arg13[%c0_8, %c0_9], %6 {strides = array<i32>} : memref<8x512xf32, #tpu.memory_space<vmem>>, vector<8x512xf32>,
    %c0_10 = arith.constant 0 : index
    %c0_11 = arith.constant 0 : index
    %c0_12 = arith.constant 0 : index
    %8 = vector.load %arg1[%c0_10, %c0_11, %c0_12] : memref<1x4x256xf32, #tpu.memory_space<vmem>>, vector<1x4x256xf32>
    %9 = vector.shape_cast %8 : vector<1x4x256xf32> to vector<4x256xf32>
    %c0_13 = arith.constant 0 : index
    %c128 = arith.constant 128 : index
    %10 = vector.load %arg10[%c0_13, %c128] : memref<8x512xf32, #tpu.memory_space<vmem>>, vector<4x256xf32>
    tpu.vector_store %arg10[%c0_13, %c128], %9 {strides = array<i32>} : memref<8x512xf32, #tpu.memory_space<vmem>>, vector<4x256xf32>,
    %c0_14 = arith.constant 0 : index
    %c0_15 = arith.constant 0 : index
    %c0_16 = arith.constant 0 : index
    %11 = vector.load %arg2[%c0_14, %c0_15, %c0_16] : memref<9x1x256xf32, #tpu.memory_space<vmem>>, vector<1x1x256xf32>
    %12 = vector.shape_cast %11 : vector<1x1x256xf32> to vector<1x256xf32>
    %c2 = arith.constant 2 : index
    %c0_17 = arith.constant 0 : index
    %c0_18 = arith.constant 0 : index
    %13 = vector.load %arg2[%c2, %c0_17, %c0_18] : memref<9x1x256xf32, #tpu.memory_space<vmem>>, vector<1x1x256xf32>
    %14 = vector.shape_cast %13 : vector<1x1x256xf32> to vector<1x256xf32>
    %c3 = arith.constant 3 : index
    %c0_19 = arith.constant 0 : index
    %c0_20 = arith.constant 0 : index
    %15 = vector.load %arg2[%c3, %c0_19, %c0_20] : memref<9x1x256xf32, #tpu.memory_space<vmem>>, vector<1x1x256xf32>
    %16 = vector.shape_cast %15 : vector<1x1x256xf32> to vector<1x256xf32>
    %c5 = arith.constant 5 : index
    %c0_21 = arith.constant 0 : index
    %c0_22 = arith.constant 0 : index
    %17 = vector.load %arg2[%c5, %c0_21, %c0_22] : memref<9x1x256xf32, #tpu.memory_space<vmem>>, vector<1x1x256xf32>
    %18 = vector.shape_cast %17 : vector<1x1x256xf32> to vector<1x256xf32>
    %c6 = arith.constant 6 : index
    %c0_23 = arith.constant 0 : index
    %c0_24 = arith.constant 0 : index
    %19 = vector.load %arg2[%c6, %c0_23, %c0_24] : memref<9x1x256xf32, #tpu.memory_space<vmem>>, vector<1x1x256xf32>
    %20 = vector.shape_cast %19 : vector<1x1x256xf32> to vector<1x256xf32>
    %c8 = arith.constant 8 : index
    %c0_25 = arith.constant 0 : index
    %c0_26 = arith.constant 0 : index
    %21 = vector.load %arg2[%c8, %c0_25, %c0_26] : memref<9x1x256xf32, #tpu.memory_space<vmem>>, vector<1x1x256xf32>
    %22 = vector.shape_cast %21 : vector<1x1x256xf32> to vector<1x256xf32>
    %cst_27 = arith.constant 0.000000e+00 : f32
    %23 = vector.broadcast %cst_27 : f32 to vector<8x256xf32>
    %c0_28 = arith.constant 0 : index
    %c111 = arith.constant 111 : index
    %24 = vector.load %arg10[%c0_28, %c111] : memref<8x512xf32, #tpu.memory_space<vmem>>, vector<8x256xf32>
    %25 = vector.broadcast %12 : vector<1x256xf32> to vector<8x256xf32>
    %26 = arith.mulf %24, %25 : vector<8x256xf32>
    %c0_29 = arith.constant 0 : index
    %c0_30 = arith.constant 0 : index
    %c0_31 = arith.constant 0 : index
    %27 = vector.load %arg3[%c0_29, %c0_30, %c0_31] : memref<27x8x8xf32, #tpu.memory_space<vmem>>, vector<1x8x8xf32>
    %28 = vector.shape_cast %27 : vector<1x8x8xf32> to vector<8x8xf32>
    %cst_32 = arith.constant dense<0.000000e+00> : vector<8x256xf32>
    %29 = tpu.matmul %28, %26, %cst_32 {dimension_numbers = #tpu.dot_dimension_numbers<[1], [0], [0], [1], [0, 0, 1, 1], [], []>} : vector<8x8xf32>, vector<8x256xf32>, vector<8x256xf32> -> vector<8x256xf32>
    %30 = arith.addf %23, %29 : vector<8x256xf32>
    %c0_33 = arith.constant 0 : index
    %c112 = arith.constant 112 : index
    %31 = vector.load %arg10[%c0_33, %c112] : memref<8x512xf32, #tpu.memory_space<vmem>>, vector<8x256xf32>
    %c1 = arith.constant 1 : index
    %c0_34 = arith.constant 0 : index
    %c0_35 = arith.constant 0 : index
    %32 = vector.load %arg3[%c1, %c0_34, %c0_35] : memref<27x8x8xf32, #tpu.memory_space<vmem>>, vector<1x8x8xf32>
    %33 = vector.shape_cast %32 : vector<1x8x8xf32> to vector<8x8xf32>
    %cst_36 = arith.constant dense<0.000000e+00> : vector<8x256xf32>
    %34 = tpu.matmul %33, %31, %cst_36 {dimension_numbers = #tpu.dot_dimension_numbers<[1], [0], [0], [1], [0, 0, 1, 1], [], []>} : vector<8x8xf32>, vector<8x256xf32>, vector<8x256xf32> -> vector<8x256xf32>
    %35 = arith.addf %30, %34 : vector<8x256xf32>
    %c0_37 = arith.constant 0 : index
    %c113 = arith.constant 113 : index
    %36 = vector.load %arg10[%c0_37, %c113] : memref<8x512xf32, #tpu.memory_space<vmem>>, vector<8x256xf32>
    %37 = vector.broadcast %14 : vector<1x256xf32> to vector<8x256xf32>
    %38 = arith.mulf %36, %37 : vector<8x256xf32>
    %c2_38 = arith.constant 2 : index
    %c0_39 = arith.constant 0 : index
    %c0_40 = arith.constant 0 : index
    %39 = vector.load %arg3[%c2_38, %c0_39, %c0_40] : memref<27x8x8xf32, #tpu.memory_space<vmem>>, vector<1x8x8xf32>
    %40 = vector.shape_cast %39 : vector<1x8x8xf32> to vector<8x8xf32>
    %cst_41 = arith.constant dense<0.000000e+00> : vector<8x256xf32>
    %41 = tpu.matmul %40, %38, %cst_41 {dimension_numbers = #tpu.dot_dimension_numbers<[1], [0], [0], [1], [0, 0, 1, 1], [], []>} : vector<8x8xf32>, vector<8x256xf32>, vector<8x256xf32> -> vector<8x256xf32>
    %42 = arith.addf %35, %41 : vector<8x256xf32>
    %c0_42 = arith.constant 0 : index
    %c127 = arith.constant 127 : index
    %43 = vector.load %arg10[%c0_42, %c127] : memref<8x512xf32, #tpu.memory_space<vmem>>, vector<8x256xf32>
    %44 = vector.broadcast %16 : vector<1x256xf32> to vector<8x256xf32>
    %45 = arith.mulf %43, %44 : vector<8x256xf32>
    %c3_43 = arith.constant 3 : index
    %c0_44 = arith.constant 0 : index
    %c0_45 = arith.constant 0 : index
    %46 = vector.load %arg3[%c3_43, %c0_44, %c0_45] : memref<27x8x8xf32, #tpu.memory_space<vmem>>, vector<1x8x8xf32>
    %47 = vector.shape_cast %46 : vector<1x8x8xf32> to vector<8x8xf32>
    %cst_46 = arith.constant dense<0.000000e+00> : vector<8x256xf32>
    %48 = tpu.matmul %47, %45, %cst_46 {dimension_numbers = #tpu.dot_dimension_numbers<[1], [0], [0], [1], [0, 0, 1, 1], [], []>} : vector<8x8xf32>, vector<8x256xf32>, vector<8x256xf32> -> vector<8x256xf32>
    %49 = arith.addf %42, %48 : vector<8x256xf32>
    %c0_47 = arith.constant 0 : index
    %c128_48 = arith.constant 128 : index
    %50 = vector.load %arg10[%c0_47, %c128_48] : memref<8x512xf32, #tpu.memory_space<vmem>>, vector<8x256xf32>
    %c4 = arith.constant 4 : index
    %c0_49 = arith.constant 0 : index
    %c0_50 = arith.constant 0 : index
    %51 = vector.load %arg3[%c4, %c0_49, %c0_50] : memref<27x8x8xf32, #tpu.memory_space<vmem>>, vector<1x8x8xf32>
    %52 = vector.shape_cast %51 : vector<1x8x8xf32> to vector<8x8xf32>
    %cst_51 = arith.constant dense<0.000000e+00> : vector<8x256xf32>
    %53 = tpu.matmul %52, %50, %cst_51 {dimension_numbers = #tpu.dot_dimension_numbers<[1], [0], [0], [1], [0, 0, 1, 1], [], []>} : vector<8x8xf32>, vector<8x256xf32>, vector<8x256xf32> -> vector<8x256xf32>
    %54 = arith.addf %49, %53 : vector<8x256xf32>
    %c0_52 = arith.constant 0 : index
    %c129 = arith.constant 129 : index
    %55 = vector.load %arg10[%c0_52, %c129] : memref<8x512xf32, #tpu.memory_space<vmem>>, vector<8x256xf32>
    %56 = vector.broadcast %18 : vector<1x256xf32> to vector<8x256xf32>
    %57 = arith.mulf %55, %56 : vector<8x256xf32>
    %c5_53 = arith.constant 5 : index
    %c0_54 = arith.constant 0 : index
    %c0_55 = arith.constant 0 : index
    %58 = vector.load %arg3[%c5_53, %c0_54, %c0_55] : memref<27x8x8xf32, #tpu.memory_space<vmem>>, vector<1x8x8xf32>
    %59 = vector.shape_cast %58 : vector<1x8x8xf32> to vector<8x8xf32>
    %cst_56 = arith.constant dense<0.000000e+00> : vector<8x256xf32>
    %60 = tpu.matmul %59, %57, %cst_56 {dimension_numbers = #tpu.dot_dimension_numbers<[1], [0], [0], [1], [0, 0, 1, 1], [], []>} : vector<8x8xf32>, vector<8x256xf32>, vector<8x256xf32> -> vector<8x256xf32>
    %61 = arith.addf %54, %60 : vector<8x256xf32>
    %c0_57 = arith.constant 0 : index
    %c143 = arith.constant 143 : index
    %62 = vector.load %arg10[%c0_57, %c143] : memref<8x512xf32, #tpu.memory_space<vmem>>, vector<8x256xf32>
    %63 = vector.broadcast %20 : vector<1x256xf32> to vector<8x256xf32>
    %64 = arith.mulf %62, %63 : vector<8x256xf32>
    %c6_58 = arith.constant 6 : index
    %c0_59 = arith.constant 0 : index
    %c0_60 = arith.constant 0 : index
    %65 = vector.load %arg3[%c6_58, %c0_59, %c0_60] : memref<27x8x8xf32, #tpu.memory_space<vmem>>, vector<1x8x8xf32>
    %66 = vector.shape_cast %65 : vector<1x8x8xf32> to vector<8x8xf32>
    %cst_61 = arith.constant dense<0.000000e+00> : vector<8x256xf32>
    %67 = tpu.matmul %66, %64, %cst_61 {dimension_numbers = #tpu.dot_dimension_numbers<[1], [0], [0], [1], [0, 0, 1, 1], [], []>} : vector<8x8xf32>, vector<8x256xf32>, vector<8x256xf32> -> vector<8x256xf32>
    %68 = arith.addf %61, %67 : vector<8x256xf32>
    %c0_62 = arith.constant 0 : index
    %c144 = arith.constant 144 : index
    %69 = vector.load %arg10[%c0_62, %c144] : memref<8x512xf32, #tpu.memory_space<vmem>>, vector<8x256xf32>
    %c7 = arith.constant 7 : index
    %c0_63 = arith.constant 0 : index
    %c0_64 = arith.constant 0 : index
    %70 = vector.load %arg3[%c7, %c0_63, %c0_64] : memref<27x8x8xf32, #tpu.memory_space<vmem>>, vector<1x8x8xf32>
    %71 = vector.shape_cast %70 : vector<1x8x8xf32> to vector<8x8xf32>
    %cst_65 = arith.constant dense<0.000000e+00> : vector<8x256xf32>
    %72 = tpu.matmul %71, %69, %cst_65 {dimension_numbers = #tpu.dot_dimension_numbers<[1], [0], [0], [1], [0, 0, 1, 1], [], []>} : vector<8x8xf32>, vector<8x256xf32>, vector<8x256xf32> -> vector<8x256xf32>
    %73 = arith.addf %68, %72 : vector<8x256xf32>
    %c0_66 = arith.constant 0 : index
    %c145 = arith.constant 145 : index
    %74 = vector.load %arg10[%c0_66, %c145] : memref<8x512xf32, #tpu.memory_space<vmem>>, vector<8x256xf32>
    %75 = vector.broadcast %22 : vector<1x256xf32> to vector<8x256xf32>
    %76 = arith.mulf %74, %75 : vector<8x256xf32>
    %c8_67 = arith.constant 8 : index
    %c0_68 = arith.constant 0 : index
    %c0_69 = arith.constant 0 : index
    %77 = vector.load %arg3[%c8_67, %c0_68, %c0_69] : memref<27x8x8xf32, #tpu.memory_space<vmem>>, vector<1x8x8xf32>
    %78 = vector.shape_cast %77 : vector<1x8x8xf32> to vector<8x8xf32>
    %cst_70 = arith.constant dense<0.000000e+00> : vector<8x256xf32>
    %79 = tpu.matmul %78, %76, %cst_70 {dimension_numbers = #tpu.dot_dimension_numbers<[1], [0], [0], [1], [0, 0, 1, 1], [], []>} : vector<8x8xf32>, vector<8x256xf32>, vector<8x256xf32> -> vector<8x256xf32>
    %80 = arith.addf %73, %79 : vector<8x256xf32>
    %c0_71 = arith.constant 0 : index
    %c0_72 = arith.constant 0 : index
    %c0_73 = arith.constant 0 : index
    %81 = vector.load %arg4[%c0_71, %c0_72, %c0_73] : memref<3x8x1xf32, #tpu.memory_space<vmem>>, vector<1x8x1xf32>
    %82 = vector.shape_cast %81 : vector<1x8x1xf32> to vector<8x1xf32>
    %83 = vector.broadcast %82 : vector<8x1xf32> to vector<8x256xf32>
    %84 = arith.addf %80, %83 : vector<8x256xf32>
    %cst_74 = arith.constant 0.000000e+00 : f32
    %85 = vector.broadcast %cst_74 : f32 to vector<8x256xf32>
    %86 = arith.maximumf %84, %85 : vector<8x256xf32>
    %c0_75 = arith.constant 0 : index
    %c128_76 = arith.constant 128 : index
    %87 = vector.load %arg11[%c0_75, %c128_76] : memref<8x512xf32, #tpu.memory_space<vmem>>, vector<8x256xf32>
    tpu.vector_store %arg11[%c0_75, %c128_76], %86 {strides = array<i32>} : memref<8x512xf32, #tpu.memory_space<vmem>>, vector<8x256xf32>,
    %cst_77 = arith.constant 0.000000e+00 : f32
    %88 = vector.broadcast %cst_77 : f32 to vector<8x256xf32>
    %c0_78 = arith.constant 0 : index
    %c111_79 = arith.constant 111 : index
    %89 = vector.load %arg11[%c0_78, %c111_79] : memref<8x512xf32, #tpu.memory_space<vmem>>, vector<8x256xf32>
    %90 = vector.broadcast %12 : vector<1x256xf32> to vector<8x256xf32>
    %91 = arith.mulf %89, %90 : vector<8x256xf32>
    %c9 = arith.constant 9 : index
    %c0_80 = arith.constant 0 : index
    %c0_81 = arith.constant 0 : index
    %92 = vector.load %arg3[%c9, %c0_80, %c0_81] : memref<27x8x8xf32, #tpu.memory_space<vmem>>, vector<1x8x8xf32>
    %93 = vector.shape_cast %92 : vector<1x8x8xf32> to vector<8x8xf32>
    %cst_82 = arith.constant dense<0.000000e+00> : vector<8x256xf32>
    %94 = tpu.matmul %93, %91, %cst_82 {dimension_numbers = #tpu.dot_dimension_numbers<[1], [0], [0], [1], [0, 0, 1, 1], [], []>} : vector<8x8xf32>, vector<8x256xf32>, vector<8x256xf32> -> vector<8x256xf32>
    %95 = arith.addf %88, %94 : vector<8x256xf32>
    %c0_83 = arith.constant 0 : index
    %c112_84 = arith.constant 112 : index
    %96 = vector.load %arg11[%c0_83, %c112_84] : memref<8x512xf32, #tpu.memory_space<vmem>>, vector<8x256xf32>
    %c10 = arith.constant 10 : index
    %c0_85 = arith.constant 0 : index
    %c0_86 = arith.constant 0 : index
    %97 = vector.load %arg3[%c10, %c0_85, %c0_86] : memref<27x8x8xf32, #tpu.memory_space<vmem>>, vector<1x8x8xf32>
    %98 = vector.shape_cast %97 : vector<1x8x8xf32> to vector<8x8xf32>
    %cst_87 = arith.constant dense<0.000000e+00> : vector<8x256xf32>
    %99 = tpu.matmul %98, %96, %cst_87 {dimension_numbers = #tpu.dot_dimension_numbers<[1], [0], [0], [1], [0, 0, 1, 1], [], []>} : vector<8x8xf32>, vector<8x256xf32>, vector<8x256xf32> -> vector<8x256xf32>
    %100 = arith.addf %95, %99 : vector<8x256xf32>
    %c0_88 = arith.constant 0 : index
    %c113_89 = arith.constant 113 : index
    %101 = vector.load %arg11[%c0_88, %c113_89] : memref<8x512xf32, #tpu.memory_space<vmem>>, vector<8x256xf32>
    %102 = vector.broadcast %14 : vector<1x256xf32> to vector<8x256xf32>
    %103 = arith.mulf %101, %102 : vector<8x256xf32>
    %c11 = arith.constant 11 : index
    %c0_90 = arith.constant 0 : index
    %c0_91 = arith.constant 0 : index
    %104 = vector.load %arg3[%c11, %c0_90, %c0_91] : memref<27x8x8xf32, #tpu.memory_space<vmem>>, vector<1x8x8xf32>
    %105 = vector.shape_cast %104 : vector<1x8x8xf32> to vector<8x8xf32>
    %cst_92 = arith.constant dense<0.000000e+00> : vector<8x256xf32>
    %106 = tpu.matmul %105, %103, %cst_92 {dimension_numbers = #tpu.dot_dimension_numbers<[1], [0], [0], [1], [0, 0, 1, 1], [], []>} : vector<8x8xf32>, vector<8x256xf32>, vector<8x256xf32> -> vector<8x256xf32>
    %107 = arith.addf %100, %106 : vector<8x256xf32>
    %c0_93 = arith.constant 0 : index
    %c127_94 = arith.constant 127 : index
    %108 = vector.load %arg11[%c0_93, %c127_94] : memref<8x512xf32, #tpu.memory_space<vmem>>, vector<8x256xf32>
    %109 = vector.broadcast %16 : vector<1x256xf32> to vector<8x256xf32>
    %110 = arith.mulf %108, %109 : vector<8x256xf32>
    %c12 = arith.constant 12 : index
    %c0_95 = arith.constant 0 : index
    %c0_96 = arith.constant 0 : index
    %111 = vector.load %arg3[%c12, %c0_95, %c0_96] : memref<27x8x8xf32, #tpu.memory_space<vmem>>, vector<1x8x8xf32>
    %112 = vector.shape_cast %111 : vector<1x8x8xf32> to vector<8x8xf32>
    %cst_97 = arith.constant dense<0.000000e+00> : vector<8x256xf32>
    %113 = tpu.matmul %112, %110, %cst_97 {dimension_numbers = #tpu.dot_dimension_numbers<[1], [0], [0], [1], [0, 0, 1, 1], [], []>} : vector<8x8xf32>, vector<8x256xf32>, vector<8x256xf32> -> vector<8x256xf32>
    %114 = arith.addf %107, %113 : vector<8x256xf32>
    %c0_98 = arith.constant 0 : index
    %c128_99 = arith.constant 128 : index
    %115 = vector.load %arg11[%c0_98, %c128_99] : memref<8x512xf32, #tpu.memory_space<vmem>>, vector<8x256xf32>
    %c13 = arith.constant 13 : index
    %c0_100 = arith.constant 0 : index
    %c0_101 = arith.constant 0 : index
    %116 = vector.load %arg3[%c13, %c0_100, %c0_101] : memref<27x8x8xf32, #tpu.memory_space<vmem>>, vector<1x8x8xf32>
    %117 = vector.shape_cast %116 : vector<1x8x8xf32> to vector<8x8xf32>
    %cst_102 = arith.constant dense<0.000000e+00> : vector<8x256xf32>
    %118 = tpu.matmul %117, %115, %cst_102 {dimension_numbers = #tpu.dot_dimension_numbers<[1], [0], [0], [1], [0, 0, 1, 1], [], []>} : vector<8x8xf32>, vector<8x256xf32>, vector<8x256xf32> -> vector<8x256xf32>
    %119 = arith.addf %114, %118 : vector<8x256xf32>
    %c0_103 = arith.constant 0 : index
    %c129_104 = arith.constant 129 : index
    %120 = vector.load %arg11[%c0_103, %c129_104] : memref<8x512xf32, #tpu.memory_space<vmem>>, vector<8x256xf32>
    %121 = vector.broadcast %18 : vector<1x256xf32> to vector<8x256xf32>
    %122 = arith.mulf %120, %121 : vector<8x256xf32>
    %c14 = arith.constant 14 : index
    %c0_105 = arith.constant 0 : index
    %c0_106 = arith.constant 0 : index
    %123 = vector.load %arg3[%c14, %c0_105, %c0_106] : memref<27x8x8xf32, #tpu.memory_space<vmem>>, vector<1x8x8xf32>
    %124 = vector.shape_cast %123 : vector<1x8x8xf32> to vector<8x8xf32>
    %cst_107 = arith.constant dense<0.000000e+00> : vector<8x256xf32>
    %125 = tpu.matmul %124, %122, %cst_107 {dimension_numbers = #tpu.dot_dimension_numbers<[1], [0], [0], [1], [0, 0, 1, 1], [], []>} : vector<8x8xf32>, vector<8x256xf32>, vector<8x256xf32> -> vector<8x256xf32>
    %126 = arith.addf %119, %125 : vector<8x256xf32>
    %c0_108 = arith.constant 0 : index
    %c143_109 = arith.constant 143 : index
    %127 = vector.load %arg11[%c0_108, %c143_109] : memref<8x512xf32, #tpu.memory_space<vmem>>, vector<8x256xf32>
    %128 = vector.broadcast %20 : vector<1x256xf32> to vector<8x256xf32>
    %129 = arith.mulf %127, %128 : vector<8x256xf32>
    %c15 = arith.constant 15 : index
    %c0_110 = arith.constant 0 : index
    %c0_111 = arith.constant 0 : index
    %130 = vector.load %arg3[%c15, %c0_110, %c0_111] : memref<27x8x8xf32, #tpu.memory_space<vmem>>, vector<1x8x8xf32>
    %131 = vector.shape_cast %130 : vector<1x8x8xf32> to vector<8x8xf32>
    %cst_112 = arith.constant dense<0.000000e+00> : vector<8x256xf32>
    %132 = tpu.matmul %131, %129, %cst_112 {dimension_numbers = #tpu.dot_dimension_numbers<[1], [0], [0], [1], [0, 0, 1, 1], [], []>} : vector<8x8xf32>, vector<8x256xf32>, vector<8x256xf32> -> vector<8x256xf32>
    %133 = arith.addf %126, %132 : vector<8x256xf32>
    %c0_113 = arith.constant 0 : index
    %c144_114 = arith.constant 144 : index
    %134 = vector.load %arg11[%c0_113, %c144_114] : memref<8x512xf32, #tpu.memory_space<vmem>>, vector<8x256xf32>
    %c16 = arith.constant 16 : index
    %c0_115 = arith.constant 0 : index
    %c0_116 = arith.constant 0 : index
    %135 = vector.load %arg3[%c16, %c0_115, %c0_116] : memref<27x8x8xf32, #tpu.memory_space<vmem>>, vector<1x8x8xf32>
    %136 = vector.shape_cast %135 : vector<1x8x8xf32> to vector<8x8xf32>
    %cst_117 = arith.constant dense<0.000000e+00> : vector<8x256xf32>
    %137 = tpu.matmul %136, %134, %cst_117 {dimension_numbers = #tpu.dot_dimension_numbers<[1], [0], [0], [1], [0, 0, 1, 1], [], []>} : vector<8x8xf32>, vector<8x256xf32>, vector<8x256xf32> -> vector<8x256xf32>
    %138 = arith.addf %133, %137 : vector<8x256xf32>
    %c0_118 = arith.constant 0 : index
    %c145_119 = arith.constant 145 : index
    %139 = vector.load %arg11[%c0_118, %c145_119] : memref<8x512xf32, #tpu.memory_space<vmem>>, vector<8x256xf32>
    %140 = vector.broadcast %22 : vector<1x256xf32> to vector<8x256xf32>
    %141 = arith.mulf %139, %140 : vector<8x256xf32>
    %c17 = arith.constant 17 : index
    %c0_120 = arith.constant 0 : index
    %c0_121 = arith.constant 0 : index
    %142 = vector.load %arg3[%c17, %c0_120, %c0_121] : memref<27x8x8xf32, #tpu.memory_space<vmem>>, vector<1x8x8xf32>
    %143 = vector.shape_cast %142 : vector<1x8x8xf32> to vector<8x8xf32>
    %cst_122 = arith.constant dense<0.000000e+00> : vector<8x256xf32>
    %144 = tpu.matmul %143, %141, %cst_122 {dimension_numbers = #tpu.dot_dimension_numbers<[1], [0], [0], [1], [0, 0, 1, 1], [], []>} : vector<8x8xf32>, vector<8x256xf32>, vector<8x256xf32> -> vector<8x256xf32>
    %145 = arith.addf %138, %144 : vector<8x256xf32>
    %c1_123 = arith.constant 1 : index
    %c0_124 = arith.constant 0 : index
    %c0_125 = arith.constant 0 : index
    %146 = vector.load %arg4[%c1_123, %c0_124, %c0_125] : memref<3x8x1xf32, #tpu.memory_space<vmem>>, vector<1x8x1xf32>
    %147 = vector.shape_cast %146 : vector<1x8x1xf32> to vector<8x1xf32>
    %148 = vector.broadcast %147 : vector<8x1xf32> to vector<8x256xf32>
    %149 = arith.addf %145, %148 : vector<8x256xf32>
    %cst_126 = arith.constant 0.000000e+00 : f32
    %150 = vector.broadcast %cst_126 : f32 to vector<8x256xf32>
    %151 = arith.maximumf %149, %150 : vector<8x256xf32>
    %c0_127 = arith.constant 0 : index
    %c128_128 = arith.constant 128 : index
    %152 = vector.load %arg12[%c0_127, %c128_128] : memref<8x512xf32, #tpu.memory_space<vmem>>, vector<8x256xf32>
    tpu.vector_store %arg12[%c0_127, %c128_128], %151 {strides = array<i32>} : memref<8x512xf32, #tpu.memory_space<vmem>>, vector<8x256xf32>,
    %cst_129 = arith.constant 0.000000e+00 : f32
    %153 = vector.broadcast %cst_129 : f32 to vector<8x256xf32>
    %c0_130 = arith.constant 0 : index
    %c111_131 = arith.constant 111 : index
    %154 = vector.load %arg12[%c0_130, %c111_131] : memref<8x512xf32, #tpu.memory_space<vmem>>, vector<8x256xf32>
    %155 = vector.broadcast %12 : vector<1x256xf32> to vector<8x256xf32>
    %156 = arith.mulf %154, %155 : vector<8x256xf32>
    %c18 = arith.constant 18 : index
    %c0_132 = arith.constant 0 : index
    %c0_133 = arith.constant 0 : index
    %157 = vector.load %arg3[%c18, %c0_132, %c0_133] : memref<27x8x8xf32, #tpu.memory_space<vmem>>, vector<1x8x8xf32>
    %158 = vector.shape_cast %157 : vector<1x8x8xf32> to vector<8x8xf32>
    %cst_134 = arith.constant dense<0.000000e+00> : vector<8x256xf32>
    %159 = tpu.matmul %158, %156, %cst_134 {dimension_numbers = #tpu.dot_dimension_numbers<[1], [0], [0], [1], [0, 0, 1, 1], [], []>} : vector<8x8xf32>, vector<8x256xf32>, vector<8x256xf32> -> vector<8x256xf32>
    %160 = arith.addf %153, %159 : vector<8x256xf32>
    %c0_135 = arith.constant 0 : index
    %c112_136 = arith.constant 112 : index
    %161 = vector.load %arg12[%c0_135, %c112_136] : memref<8x512xf32, #tpu.memory_space<vmem>>, vector<8x256xf32>
    %c19 = arith.constant 19 : index
    %c0_137 = arith.constant 0 : index
    %c0_138 = arith.constant 0 : index
    %162 = vector.load %arg3[%c19, %c0_137, %c0_138] : memref<27x8x8xf32, #tpu.memory_space<vmem>>, vector<1x8x8xf32>
    %163 = vector.shape_cast %162 : vector<1x8x8xf32> to vector<8x8xf32>
    %cst_139 = arith.constant dense<0.000000e+00> : vector<8x256xf32>
    %164 = tpu.matmul %163, %161, %cst_139 {dimension_numbers = #tpu.dot_dimension_numbers<[1], [0], [0], [1], [0, 0, 1, 1], [], []>} : vector<8x8xf32>, vector<8x256xf32>, vector<8x256xf32> -> vector<8x256xf32>
    %165 = arith.addf %160, %164 : vector<8x256xf32>
    %c0_140 = arith.constant 0 : index
    %c113_141 = arith.constant 113 : index
    %166 = vector.load %arg12[%c0_140, %c113_141] : memref<8x512xf32, #tpu.memory_space<vmem>>, vector<8x256xf32>
    %167 = vector.broadcast %14 : vector<1x256xf32> to vector<8x256xf32>
    %168 = arith.mulf %166, %167 : vector<8x256xf32>
    %c20 = arith.constant 20 : index
    %c0_142 = arith.constant 0 : index
    %c0_143 = arith.constant 0 : index
    %169 = vector.load %arg3[%c20, %c0_142, %c0_143] : memref<27x8x8xf32, #tpu.memory_space<vmem>>, vector<1x8x8xf32>
    %170 = vector.shape_cast %169 : vector<1x8x8xf32> to vector<8x8xf32>
    %cst_144 = arith.constant dense<0.000000e+00> : vector<8x256xf32>
    %171 = tpu.matmul %170, %168, %cst_144 {dimension_numbers = #tpu.dot_dimension_numbers<[1], [0], [0], [1], [0, 0, 1, 1], [], []>} : vector<8x8xf32>, vector<8x256xf32>, vector<8x256xf32> -> vector<8x256xf32>
    %172 = arith.addf %165, %171 : vector<8x256xf32>
    %c0_145 = arith.constant 0 : index
    %c127_146 = arith.constant 127 : index
    %173 = vector.load %arg12[%c0_145, %c127_146] : memref<8x512xf32, #tpu.memory_space<vmem>>, vector<8x256xf32>
    %174 = vector.broadcast %16 : vector<1x256xf32> to vector<8x256xf32>
    %175 = arith.mulf %173, %174 : vector<8x256xf32>
    %c21 = arith.constant 21 : index
    %c0_147 = arith.constant 0 : index
    %c0_148 = arith.constant 0 : index
    %176 = vector.load %arg3[%c21, %c0_147, %c0_148] : memref<27x8x8xf32, #tpu.memory_space<vmem>>, vector<1x8x8xf32>
    %177 = vector.shape_cast %176 : vector<1x8x8xf32> to vector<8x8xf32>
    %cst_149 = arith.constant dense<0.000000e+00> : vector<8x256xf32>
    %178 = tpu.matmul %177, %175, %cst_149 {dimension_numbers = #tpu.dot_dimension_numbers<[1], [0], [0], [1], [0, 0, 1, 1], [], []>} : vector<8x8xf32>, vector<8x256xf32>, vector<8x256xf32> -> vector<8x256xf32>
    %179 = arith.addf %172, %178 : vector<8x256xf32>
    %c0_150 = arith.constant 0 : index
    %c128_151 = arith.constant 128 : index
    %180 = vector.load %arg12[%c0_150, %c128_151] : memref<8x512xf32, #tpu.memory_space<vmem>>, vector<8x256xf32>
    %c22 = arith.constant 22 : index
    %c0_152 = arith.constant 0 : index
    %c0_153 = arith.constant 0 : index
    %181 = vector.load %arg3[%c22, %c0_152, %c0_153] : memref<27x8x8xf32, #tpu.memory_space<vmem>>, vector<1x8x8xf32>
    %182 = vector.shape_cast %181 : vector<1x8x8xf32> to vector<8x8xf32>
    %cst_154 = arith.constant dense<0.000000e+00> : vector<8x256xf32>
    %183 = tpu.matmul %182, %180, %cst_154 {dimension_numbers = #tpu.dot_dimension_numbers<[1], [0], [0], [1], [0, 0, 1, 1], [], []>} : vector<8x8xf32>, vector<8x256xf32>, vector<8x256xf32> -> vector<8x256xf32>
    %184 = arith.addf %179, %183 : vector<8x256xf32>
    %c0_155 = arith.constant 0 : index
    %c129_156 = arith.constant 129 : index
    %185 = vector.load %arg12[%c0_155, %c129_156] : memref<8x512xf32, #tpu.memory_space<vmem>>, vector<8x256xf32>
    %186 = vector.broadcast %18 : vector<1x256xf32> to vector<8x256xf32>
    %187 = arith.mulf %185, %186 : vector<8x256xf32>
    %c23 = arith.constant 23 : index
    %c0_157 = arith.constant 0 : index
    %c0_158 = arith.constant 0 : index
    %188 = vector.load %arg3[%c23, %c0_157, %c0_158] : memref<27x8x8xf32, #tpu.memory_space<vmem>>, vector<1x8x8xf32>
    %189 = vector.shape_cast %188 : vector<1x8x8xf32> to vector<8x8xf32>
    %cst_159 = arith.constant dense<0.000000e+00> : vector<8x256xf32>
    %190 = tpu.matmul %189, %187, %cst_159 {dimension_numbers = #tpu.dot_dimension_numbers<[1], [0], [0], [1], [0, 0, 1, 1], [], []>} : vector<8x8xf32>, vector<8x256xf32>, vector<8x256xf32> -> vector<8x256xf32>
    %191 = arith.addf %184, %190 : vector<8x256xf32>
    %c0_160 = arith.constant 0 : index
    %c143_161 = arith.constant 143 : index
    %192 = vector.load %arg12[%c0_160, %c143_161] : memref<8x512xf32, #tpu.memory_space<vmem>>, vector<8x256xf32>
    %193 = vector.broadcast %20 : vector<1x256xf32> to vector<8x256xf32>
    %194 = arith.mulf %192, %193 : vector<8x256xf32>
    %c24 = arith.constant 24 : index
    %c0_162 = arith.constant 0 : index
    %c0_163 = arith.constant 0 : index
    %195 = vector.load %arg3[%c24, %c0_162, %c0_163] : memref<27x8x8xf32, #tpu.memory_space<vmem>>, vector<1x8x8xf32>
    %196 = vector.shape_cast %195 : vector<1x8x8xf32> to vector<8x8xf32>
    %cst_164 = arith.constant dense<0.000000e+00> : vector<8x256xf32>
    %197 = tpu.matmul %196, %194, %cst_164 {dimension_numbers = #tpu.dot_dimension_numbers<[1], [0], [0], [1], [0, 0, 1, 1], [], []>} : vector<8x8xf32>, vector<8x256xf32>, vector<8x256xf32> -> vector<8x256xf32>
    %198 = arith.addf %191, %197 : vector<8x256xf32>
    %c0_165 = arith.constant 0 : index
    %c144_166 = arith.constant 144 : index
    %199 = vector.load %arg12[%c0_165, %c144_166] : memref<8x512xf32, #tpu.memory_space<vmem>>, vector<8x256xf32>
    %c25 = arith.constant 25 : index
    %c0_167 = arith.constant 0 : index
    %c0_168 = arith.constant 0 : index
    %200 = vector.load %arg3[%c25, %c0_167, %c0_168] : memref<27x8x8xf32, #tpu.memory_space<vmem>>, vector<1x8x8xf32>
    %201 = vector.shape_cast %200 : vector<1x8x8xf32> to vector<8x8xf32>
    %cst_169 = arith.constant dense<0.000000e+00> : vector<8x256xf32>
    %202 = tpu.matmul %201, %199, %cst_169 {dimension_numbers = #tpu.dot_dimension_numbers<[1], [0], [0], [1], [0, 0, 1, 1], [], []>} : vector<8x8xf32>, vector<8x256xf32>, vector<8x256xf32> -> vector<8x256xf32>
    %203 = arith.addf %198, %202 : vector<8x256xf32>
    %c0_170 = arith.constant 0 : index
    %c145_171 = arith.constant 145 : index
    %204 = vector.load %arg12[%c0_170, %c145_171] : memref<8x512xf32, #tpu.memory_space<vmem>>, vector<8x256xf32>
    %205 = vector.broadcast %22 : vector<1x256xf32> to vector<8x256xf32>
    %206 = arith.mulf %204, %205 : vector<8x256xf32>
    %c26 = arith.constant 26 : index
    %c0_172 = arith.constant 0 : index
    %c0_173 = arith.constant 0 : index
    %207 = vector.load %arg3[%c26, %c0_172, %c0_173] : memref<27x8x8xf32, #tpu.memory_space<vmem>>, vector<1x8x8xf32>
    %208 = vector.shape_cast %207 : vector<1x8x8xf32> to vector<8x8xf32>
    %cst_174 = arith.constant dense<0.000000e+00> : vector<8x256xf32>
    %209 = tpu.matmul %208, %206, %cst_174 {dimension_numbers = #tpu.dot_dimension_numbers<[1], [0], [0], [1], [0, 0, 1, 1], [], []>} : vector<8x8xf32>, vector<8x256xf32>, vector<8x256xf32> -> vector<8x256xf32>
    %210 = arith.addf %203, %209 : vector<8x256xf32>
    %c2_175 = arith.constant 2 : index
    %c0_176 = arith.constant 0 : index
    %c0_177 = arith.constant 0 : index
    %211 = vector.load %arg4[%c2_175, %c0_176, %c0_177] : memref<3x8x1xf32, #tpu.memory_space<vmem>>, vector<1x8x1xf32>
    %212 = vector.shape_cast %211 : vector<1x8x1xf32> to vector<8x1xf32>
    %213 = vector.broadcast %212 : vector<8x1xf32> to vector<8x256xf32>
    %214 = arith.addf %210, %213 : vector<8x256xf32>
    %cst_178 = arith.constant 0.000000e+00 : f32
    %215 = vector.broadcast %cst_178 : f32 to vector<8x256xf32>
    %216 = arith.maximumf %214, %215 : vector<8x256xf32>
    %c0_179 = arith.constant 0 : index
    %c128_180 = arith.constant 128 : index
    %217 = vector.load %arg13[%c0_179, %c128_180] : memref<8x512xf32, #tpu.memory_space<vmem>>, vector<8x256xf32>
    tpu.vector_store %arg13[%c0_179, %c128_180], %216 {strides = array<i32>} : memref<8x512xf32, #tpu.memory_space<vmem>>, vector<8x256xf32>,
    %cst_181 = arith.constant 0.000000e+00 : f32
    %218 = vector.broadcast %cst_181 : f32 to vector<16x256xf32>
    %c0_182 = arith.constant 0 : index
    %c0_183 = arith.constant 0 : index
    %c0_184 = arith.constant 0 : index
    %219 = vector.load %arg5[%c0_182, %c0_183, %c0_184] : memref<4x16x8xf32, #tpu.memory_space<vmem>>, vector<1x16x8xf32>
    %220 = vector.shape_cast %219 : vector<1x16x8xf32> to vector<16x8xf32>
    %c0_185 = arith.constant 0 : index
    %c128_186 = arith.constant 128 : index
    %221 = vector.load %arg10[%c0_185, %c128_186] : memref<8x512xf32, #tpu.memory_space<vmem>>, vector<8x256xf32>
    %cst_187 = arith.constant dense<0.000000e+00> : vector<16x256xf32>
    %222 = tpu.matmul %220, %221, %cst_187 {dimension_numbers = #tpu.dot_dimension_numbers<[1], [0], [0], [1], [0, 0, 1, 1], [], []>} : vector<16x8xf32>, vector<8x256xf32>, vector<16x256xf32> -> vector<16x256xf32>
    %223 = arith.addf %218, %222 : vector<16x256xf32>
    %c1_188 = arith.constant 1 : index
    %c0_189 = arith.constant 0 : index
    %c0_190 = arith.constant 0 : index
    %224 = vector.load %arg5[%c1_188, %c0_189, %c0_190] : memref<4x16x8xf32, #tpu.memory_space<vmem>>, vector<1x16x8xf32>
    %225 = vector.shape_cast %224 : vector<1x16x8xf32> to vector<16x8xf32>
    %c0_191 = arith.constant 0 : index
    %c128_192 = arith.constant 128 : index
    %226 = vector.load %arg11[%c0_191, %c128_192] : memref<8x512xf32, #tpu.memory_space<vmem>>, vector<8x256xf32>
    %cst_193 = arith.constant dense<0.000000e+00> : vector<16x256xf32>
    %227 = tpu.matmul %225, %226, %cst_193 {dimension_numbers = #tpu.dot_dimension_numbers<[1], [0], [0], [1], [0, 0, 1, 1], [], []>} : vector<16x8xf32>, vector<8x256xf32>, vector<16x256xf32> -> vector<16x256xf32>
    %228 = arith.addf %223, %227 : vector<16x256xf32>
    %c2_194 = arith.constant 2 : index
    %c0_195 = arith.constant 0 : index
    %c0_196 = arith.constant 0 : index
    %229 = vector.load %arg5[%c2_194, %c0_195, %c0_196] : memref<4x16x8xf32, #tpu.memory_space<vmem>>, vector<1x16x8xf32>
    %230 = vector.shape_cast %229 : vector<1x16x8xf32> to vector<16x8xf32>
    %c0_197 = arith.constant 0 : index
    %c128_198 = arith.constant 128 : index
    %231 = vector.load %arg12[%c0_197, %c128_198] : memref<8x512xf32, #tpu.memory_space<vmem>>, vector<8x256xf32>
    %cst_199 = arith.constant dense<0.000000e+00> : vector<16x256xf32>
    %232 = tpu.matmul %230, %231, %cst_199 {dimension_numbers = #tpu.dot_dimension_numbers<[1], [0], [0], [1], [0, 0, 1, 1], [], []>} : vector<16x8xf32>, vector<8x256xf32>, vector<16x256xf32> -> vector<16x256xf32>
    %233 = arith.addf %228, %232 : vector<16x256xf32>
    %c3_200 = arith.constant 3 : index
    %c0_201 = arith.constant 0 : index
    %c0_202 = arith.constant 0 : index
    %234 = vector.load %arg5[%c3_200, %c0_201, %c0_202] : memref<4x16x8xf32, #tpu.memory_space<vmem>>, vector<1x16x8xf32>
    %235 = vector.shape_cast %234 : vector<1x16x8xf32> to vector<16x8xf32>
    %c0_203 = arith.constant 0 : index
    %c128_204 = arith.constant 128 : index
    %236 = vector.load %arg13[%c0_203, %c128_204] : memref<8x512xf32, #tpu.memory_space<vmem>>, vector<8x256xf32>
    %cst_205 = arith.constant dense<0.000000e+00> : vector<16x256xf32>
    %237 = tpu.matmul %235, %236, %cst_205 {dimension_numbers = #tpu.dot_dimension_numbers<[1], [0], [0], [1], [0, 0, 1, 1], [], []>} : vector<16x8xf32>, vector<8x256xf32>, vector<16x256xf32> -> vector<16x256xf32>
    %238 = arith.addf %233, %237 : vector<16x256xf32>
    %c0_206 = arith.constant 0 : index
    %c0_207 = arith.constant 0 : index
    %239 = vector.load %arg6[%c0_206, %c0_207] : memref<16x1xf32, #tpu.memory_space<vmem>>, vector<16x1xf32>
    %240 = vector.broadcast %239 : vector<16x1xf32> to vector<16x256xf32>
    %241 = arith.addf %238, %240 : vector<16x256xf32>
    %cst_208 = arith.constant 0.000000e+00 : f32
    %242 = vector.broadcast %cst_208 : f32 to vector<16x256xf32>
    %243 = arith.maximumf %241, %242 : vector<16x256xf32>
    %c0_209 = arith.constant 0 : index
    %c0_210 = arith.constant 0 : index
    %244 = vector.load %arg7[%c0_209, %c0_210] : memref<16x16xf32, #tpu.memory_space<vmem>>, vector<16x16xf32>
    %cst_211 = arith.constant dense<0.000000e+00> : vector<16x256xf32>
    %245 = tpu.matmul %244, %243, %cst_211 {dimension_numbers = #tpu.dot_dimension_numbers<[1], [0], [0], [1], [0, 0, 1, 1], [], []>} : vector<16x16xf32>, vector<16x256xf32>, vector<16x256xf32> -> vector<16x256xf32>
    %cst_212 = arith.constant dense<0.000000e+00> : vector<16xf32>
    %246 = vector.multi_reduction <add>, %245, %cst_212 [1] : vector<16x256xf32> to vector<16xf32>
    %247 = vector.shape_cast %246 : vector<16xf32> to vector<16x1xf32>
    %cst_213 = arith.constant 3.906250e-03 : f32
    %248 = vector.broadcast %cst_213 : f32 to vector<16x1xf32>
    %249 = arith.mulf %247, %248 : vector<16x1xf32>
    %c0_214 = arith.constant 0 : index
    %c0_215 = arith.constant 0 : index
    %250 = vector.load %arg8[%c0_214, %c0_215] : memref<16x1xf32, #tpu.memory_space<vmem>>, vector<16x1xf32>
    %251 = arith.addf %249, %250 : vector<16x1xf32>
    %cst_216 = arith.constant 3.000000e+00 : f32
    %252 = vector.broadcast %cst_216 : f32 to vector<16x1xf32>
    %253 = arith.addf %251, %252 : vector<16x1xf32>
    %cst_217 = arith.constant 0.000000e+00 : f32
    %cst_218 = arith.constant 6.000000e+00 : f32
    %254 = vector.broadcast %cst_217 : f32 to vector<16x1xf32>
    %255 = arith.maximumf %254, %253 : vector<16x1xf32>
    %256 = vector.broadcast %cst_218 : f32 to vector<16x1xf32>
    %257 = arith.minimumf %256, %255 : vector<16x1xf32>
    %cst_219 = arith.constant 0.166666672 : f32
    %258 = vector.broadcast %cst_219 : f32 to vector<16x1xf32>
    %259 = arith.mulf %257, %258 : vector<16x1xf32>
    %260 = vector.broadcast %259 : vector<16x1xf32> to vector<16x256xf32>
    %261 = arith.mulf %243, %260 : vector<16x256xf32>
    %c0_220 = arith.constant 0 : index
    %c0_221 = arith.constant 0 : index
    %c0_222 = arith.constant 0 : index
    %262 = vector.load %arg9[%c0_220, %c0_221, %c0_222] : memref<1x16x256xf32, #tpu.memory_space<vmem>>, vector<1x16x256xf32>
    %263 = vector.shape_cast %262 : vector<1x16x256xf32> to vector<16x256xf32>
    %264 = vector.shape_cast %261 : vector<16x256xf32> to vector<1x16x256xf32>
    tpu.vector_store %arg9[%c0_220, %c0_221, %c0_222], %264 {strides = array<i32>} : memref<1x16x256xf32, #tpu.memory_space<vmem>>, vector<1x16x256xf32>,
    return
  }
  func.func @transform_0(%arg0: i32) -> (i32, i32, i32) {
    %c0_i32 = arith.constant 0 : i32
    %c0_i32_0 = arith.constant 0 : i32
    %c0_i32_1 = arith.constant 0 : i32
    return %arg0, %c0_i32, %c0_i32_0 : i32, i32, i32
  }
  func.func @transform_1(%arg0: i32) -> (i32, i32, i32) {
    %c0_i32 = arith.constant 0 : i32
    %c0_i32_0 = arith.constant 0 : i32
    %c0_i32_1 = arith.constant 0 : i32
    %c0_i32_2 = arith.constant 0 : i32
    return %c0_i32, %c0_i32_0, %c0_i32_1 : i32, i32, i32
  }
  func.func @transform_2(%arg0: i32) -> (i32, i32, i32) {
    %c0_i32 = arith.constant 0 : i32
    %c0_i32_0 = arith.constant 0 : i32
    %c0_i32_1 = arith.constant 0 : i32
    %c0_i32_2 = arith.constant 0 : i32
    return %c0_i32, %c0_i32_0, %c0_i32_1 : i32, i32, i32
  }
  func.func @transform_3(%arg0: i32) -> (i32, i32, i32) {
    %c0_i32 = arith.constant 0 : i32
    %c0_i32_0 = arith.constant 0 : i32
    %c0_i32_1 = arith.constant 0 : i32
    %c0_i32_2 = arith.constant 0 : i32
    return %c0_i32, %c0_i32_0, %c0_i32_1 : i32, i32, i32
  }
  func.func @transform_4(%arg0: i32) -> (i32, i32, i32) {
    %c0_i32 = arith.constant 0 : i32
    %c0_i32_0 = arith.constant 0 : i32
    %c0_i32_1 = arith.constant 0 : i32
    %c0_i32_2 = arith.constant 0 : i32
    return %c0_i32, %c0_i32_0, %c0_i32_1 : i32, i32, i32
  }
  func.func @transform_5(%arg0: i32) -> (i32, i32) {
    %c0_i32 = arith.constant 0 : i32
    %c0_i32_0 = arith.constant 0 : i32
    %c0_i32_1 = arith.constant 0 : i32
    return %c0_i32, %c0_i32_0 : i32, i32
  }
  func.func @transform_6(%arg0: i32) -> (i32, i32) {
    %c0_i32 = arith.constant 0 : i32
    %c0_i32_0 = arith.constant 0 : i32
    %c0_i32_1 = arith.constant 0 : i32
    return %c0_i32, %c0_i32_0 : i32, i32
  }
  func.func @transform_7(%arg0: i32) -> (i32, i32) {
    %c0_i32 = arith.constant 0 : i32
    %c0_i32_0 = arith.constant 0 : i32
    %c0_i32_1 = arith.constant 0 : i32
    return %c0_i32, %c0_i32_0 : i32, i32
  }
  func.func @transform_8(%arg0: i32) -> (i32, i32, i32) {
    %c0_i32 = arith.constant 0 : i32
    %c0_i32_0 = arith.constant 0 : i32
    %c0_i32_1 = arith.constant 0 : i32
    return %arg0, %c0_i32, %c0_i32_0 : i32, i32, i32
  }
}

</mosaic_0001>

<llo_original>
// kernel: osa_forward.1
$region0: #{osa_forward.1}
  #allocation0 [shape = 'u32[]', space=smem, size = 0x4, offset = 0x4, fixed_abs, tag = 'smem constant byte address 0x4 - core index']
  #allocation1 [shape = 'u32[144,128]{1,0:T(1,128)}', space=vmem, size = 0x12000, scoped, tag = 'internal scratch']
  #allocation2 [shape = 'f32[8,512]{1,0:T(8,128)}', space=vmem, size = 0x4000, scoped, tag = 'scratch operand']
  #allocation3 [shape = 'f32[8,512]{1,0:T(8,128)}', space=vmem, size = 0x4000, scoped, tag = 'scratch operand']
  #allocation4 [shape = 'f32[8,512]{1,0:T(8,128)}', space=vmem, size = 0x4000, scoped, tag = 'scratch operand']
  #allocation5 [shape = 'f32[8,512]{1,0:T(8,128)}', space=vmem, size = 0x4000, scoped, tag = 'scratch operand']
  %s0 = inlined_call_operand.vmem [shape: f32[2,4,256], index: 0, kind: input, shape index: {}]
  %s1 = inlined_call_operand.vmem [shape: f32[9,1,256], index: 1, kind: input, shape index: {}]
  %s2 = inlined_call_operand.vmem [shape: f32[27,8,8], index: 2, kind: input, shape index: {}]
  %s3 = inlined_call_operand.vmem [shape: f32[3,8,1], index: 3, kind: input, shape index: {}]
  %s4 = inlined_call_operand.vmem [shape: f32[4,16,8], index: 4, kind: input, shape index: {}]
  %s5 = inlined_call_operand.vmem [shape: f32[16,1], index: 5, kind: input, shape index: {}]
  %s6 = inlined_call_operand.vmem [shape: f32[16,16], index: 6, kind: input, shape index: {}]
  %s7 = inlined_call_operand.vmem [shape: f32[16,1], index: 7, kind: input, shape index: {}]
  %s8 = inlined_call_operand.vmem [shape: f32[2,16,256], index: 8, kind: output, shape index: {}]
  %s9 = sld [smem:[#allocation0]]
  $region65: #{osa_forward.1} parent=0
    _
  %s11 = ssub.s32 1, %s9
  %s12 = scalar_select 0, %s11, %s9
  loop: start=0, step=1, limit=4
  $region2: #{osa_forward.1} parent=0 // loop_pre_header
    _
  $region3: #{osa_forward.1} parent=0 // loop_header
    %s14 = sphi 0, %s18
    %p15 = scmp.ge.s32.totalorder %s14, 4
    %s24 = sphi 0, %s26
    %s27 = sphi 0, %s24
    %s28 = sphi 0, %s27
    %s44 = sphi 0, %s28
    %s48 = sphi 0, %s48
    %s50 = sphi 0, %s48
    %s51 = sphi 0, %s50
    %s65 = sphi 0, %s51
    %s69 = sphi 0, %s69
    %s71 = sphi 0, %s69
    %s72 = sphi 0, %s71
    %s86 = sphi 0, %s72
    %s90 = sphi 0, %s90
    %s92 = sphi 0, %s90
    %s93 = sphi 0, %s92
    %s107 = sphi 0, %s93
    %s111 = sphi 0, %s111
    %s113 = sphi 0, %s111
    %s114 = sphi 0, %s113
    %s128 = sphi 0, %s114
    %s132 = sphi 0, %s132
    %s134 = sphi 0, %s132
    %s135 = sphi 0, %s134
    %s149 = sphi 0, %s135
    %s153 = sphi 0, %s153
    %s155 = sphi 0, %s153
    %s156 = sphi 0, %s155
    %s170 = sphi 0, %s156
    %s174 = sphi 0, %s174
    %s176 = sphi 0, %s174
    %s177 = sphi 0, %s176
    %s191 = sphi 0, %s177
    %s197 = sphi 0, %s199
    %s200 = sphi 0, %s197
    %s201 = sphi 0, %s200
    %s217 = sphi 0, %s201
  $region4: #{osa_forward.1} parent=0 // loop_header_branch
    %17 = sbr.rel (%p15) target = $region8
  $region5: #{osa_forward.1} parent=0 // loop_body
    %s19 = ssub.s32 %s14, 1
    %s20 = ssub.s32 %s14, 2
    %s21 = sadd.s32 %s14, 1
    %s22 = ssub.s32 %s14, %s21
    %p23 = scmp.eq.s32.totalorder %s22, 0
    %s25 = sadd.s32 %s24, 1
    %s26 = scalar_select %p23, %s24, %s25
    %p29 = pneg %p23
    %p30 = scmp.eq.s32.totalorder %s14, 1
    %p31 = por %p29, %p30
    %p32 = scmp.ne.s32.totalorder %s24, %s27
    %p33 = scmp.eq.s32.totalorder %s14, 0
    %p34 = por %p32, %p33
    %p35 = scmp.ne.s32.totalorder %s24, %s27
    %p36 = scmp.eq.s32.totalorder %s19, 1
    %p37 = por %p35, %p36
    %p38 = scmp.ne.s32.totalorder %s27, %s28
    %p39 = scmp.eq.s32.totalorder %s19, 0
    %p40 = por %p38, %p39
    %p41 = scmp.ne.s32.totalorder %s27, %s28
    %p42 = scmp.eq.s32.totalorder %s20, 1
    %p43 = por %p41, %p42
    %p45 = scmp.ne.s32.totalorder %s28, %s44
    %p46 = scmp.eq.s32.totalorder %s20, 0
    %p47 = por %p45, %p46
    %s49 = sadd.s32 %s48, 1
    %p52 = scmp.eq.s32.totalorder %s14, 1
    %p53 = scmp.ne.s32.totalorder %s48, %s50
    %p54 = scmp.eq.s32.totalorder %s14, 0
    %p55 = por %p53, %p54
    %p56 = scmp.ne.s32.totalorder %s48, %s50
    %p57 = scmp.eq.s32.totalorder %s19, 1
    %p58 = por %p56, %p57
    %p59 = scmp.ne.s32.totalorder %s50, %s51
    %p60 = scmp.eq.s32.totalorder %s19, 0
    %p61 = por %p59, %p60
    %p62 = scmp.ne.s32.totalorder %s50, %s51
    %p63 = scmp.eq.s32.totalorder %s20, 1
    %p64 = por %p62, %p63
    %p66 = scmp.ne.s32.totalorder %s51, %s65
    %p67 = scmp.eq.s32.totalorder %s20, 0
    %p68 = por %p66, %p67
    %s70 = sadd.s32 %s69, 1
    %p73 = scmp.eq.s32.totalorder %s14, 1
    %p74 = scmp.ne.s32.totalorder %s69, %s71
    %p75 = scmp.eq.s32.totalorder %s14, 0
    %p76 = por %p74, %p75
    %p77 = scmp.ne.s32.totalorder %s69, %s71
    %p78 = scmp.eq.s32.totalorder %s19, 1
    %p79 = por %p77, %p78
    %p80 = scmp.ne.s32.totalorder %s71, %s72
    %p81 = scmp.eq.s32.totalorder %s19, 0
    %p82 = por %p80, %p81
    %p83 = scmp.ne.s32.totalorder %s71, %s72
    %p84 = scmp.eq.s32.totalorder %s20, 1
    %p85 = por %p83, %p84
    %p87 = scmp.ne.s32.totalorder %s72, %s86
    %p88 = scmp.eq.s32.totalorder %s20, 0
    %p89 = por %p87, %p88
    %s91 = sadd.s32 %s90, 1
    %p94 = scmp.eq.s32.totalorder %s14, 1
    %p95 = scmp.ne.s32.totalorder %s90, %s92
    %p96 = scmp.eq.s32.totalorder %s14, 0
    %p97 = por %p95, %p96
    %p98 = scmp.ne.s32.totalorder %s90, %s92
    %p99 = scmp.eq.s32.totalorder %s19, 1
    %p100 = por %p98, %p99
    %p101 = scmp.ne.s32.totalorder %s92, %s93
    %p102 = scmp.eq.s32.totalorder %s19, 0
    %p103 = por %p101, %p102
    %p104 = scmp.ne.s32.totalorder %s92, %s93
    %p105 = scmp.eq.s32.totalorder %s20, 1
    %p106 = por %p104, %p105
    %p108 = scmp.ne.s32.totalorder %s93, %s107
    %p109 = scmp.eq.s32.totalorder %s20, 0
    %p110 = por %p108, %p109
    %s112 = sadd.s32 %s111, 1
    %p115 = scmp.eq.s32.totalorder %s14, 1
    %p116 = scmp.ne.s32.totalorder %s111, %s113
    %p117 = scmp.eq.s32.totalorder %s14, 0
    %p118 = por %p116, %p117
    %p119 = scmp.ne.s32.totalorder %s111, %s113
    %p120 = scmp.eq.s32.totalorder %s19, 1
    %p121 = por %p119, %p120
    %p122 = scmp.ne.s32.totalorder %s113, %s114
    %p123 = scmp.eq.s32.totalorder %s19, 0
    %p124 = por %p122, %p123
    %p125 = scmp.ne.s32.totalorder %s113, %s114
    %p126 = scmp.eq.s32.totalorder %s20, 1
    %p127 = por %p125, %p126
    %p129 = scmp.ne.s32.totalorder %s114, %s128
    %p130 = scmp.eq.s32.totalorder %s20, 0
    %p131 = por %p129, %p130
    %s133 = sadd.s32 %s132, 1
    %p136 = scmp.eq.s32.totalorder %s14, 1
    %p137 = scmp.ne.s32.totalorder %s132, %s134
    %p138 = scmp.eq.s32.totalorder %s14, 0
    %p139 = por %p137, %p138
    %p140 = scmp.ne.s32.totalorder %s132, %s134
    %p141 = scmp.eq.s32.totalorder %s19, 1
    %p142 = por %p140, %p141
    %p143 = scmp.ne.s32.totalorder %s134, %s135
    %p144 = scmp.eq.s32.totalorder %s19, 0
    %p145 = por %p143, %p144
    %p146 = scmp.ne.s32.totalorder %s134, %s135
    %p147 = scmp.eq.s32.totalorder %s20, 1
    %p148 = por %p146, %p147
    %p150 = scmp.ne.s32.totalorder %s135, %s149
    %p151 = scmp.eq.s32.totalorder %s20, 0
    %p152 = por %p150, %p151
    %s154 = sadd.s32 %s153, 1
    %p157 = scmp.eq.s32.totalorder %s14, 1
    %p158 = scmp.ne.s32.totalorder %s153, %s155
    %p159 = scmp.eq.s32.totalorder %s14, 0
    %p160 = por %p158, %p159
    %p161 = scmp.ne.s32.totalorder %s153, %s155
    %p162 = scmp.eq.s32.totalorder %s19, 1
    %p163 = por %p161, %p162
    %p164 = scmp.ne.s32.totalorder %s155, %s156
    %p165 = scmp.eq.s32.totalorder %s19, 0
    %p166 = por %p164, %p165
    %p167 = scmp.ne.s32.totalorder %s155, %s156
    %p168 = scmp.eq.s32.totalorder %s20, 1
    %p169 = por %p167, %p168
    %p171 = scmp.ne.s32.totalorder %s156, %s170
    %p172 = scmp.eq.s32.totalorder %s20, 0
    %p173 = por %p171, %p172
    %s175 = sadd.s32 %s174, 1
    %p178 = scmp.eq.s32.totalorder %s14, 1
    %p179 = scmp.ne.s32.totalorder %s174, %s176
    %p180 = scmp.eq.s32.totalorder %s14, 0
    %p181 = por %p179, %p180
    %p182 = scmp.ne.s32.totalorder %s174, %s176
    %p183 = scmp.eq.s32.totalorder %s19, 1
    %p184 = por %p182, %p183
    %p185 = scmp.ne.s32.totalorder %s176, %s177
    %p186 = scmp.eq.s32.totalorder %s19, 0
    %p187 = por %p185, %p186
    %p188 = scmp.ne.s32.totalorder %s176, %s177
    %p189 = scmp.eq.s32.totalorder %s20, 1
    %p190 = por %p188, %p189
    %p192 = scmp.ne.s32.totalorder %s177, %s191
    %p193 = scmp.eq.s32.totalorder %s20, 0
    %p194 = por %p192, %p193
    %s195 = ssub.s32 %s14, %s21
    %p196 = scmp.eq.s32.totalorder %s195, 0
    %s198 = sadd.s32 %s197, 1
    %s199 = scalar_select %p196, %s197, %s198
    %p202 = pneg %p196
    %p203 = scmp.eq.s32.totalorder %s14, 1
    %p204 = por %p202, %p203
    %p205 = scmp.ne.s32.totalorder %s197, %s200
    %p206 = scmp.eq.s32.totalorder %s14, 0
    %p207 = por %p205, %p206
    %p208 = scmp.ne.s32.totalorder %s197, %s200
    %p209 = scmp.eq.s32.totalorder %s19, 1
    %p210 = por %p208, %p209
    %p211 = scmp.ne.s32.totalorder %s200, %s201
    %p212 = scmp.eq.s32.totalorder %s19, 0
    %p213 = por %p211, %p212
    %p214 = scmp.ne.s32.totalorder %s200, %s201
    %p215 = scmp.eq.s32.totalorder %s20, 1
    %p216 = por %p214, %p215
    %p218 = scmp.ne.s32.totalorder %s201, %s217
    %p219 = scmp.eq.s32.totalorder %s20, 0
    %p220 = por %p218, %p219
    %p221 = scmp.le.s32.totalorder 1, %s14
    %p222 = scmp.lt.s32.totalorder %s14, 3
    %p223 = pnand %p221, %p222
    %p224 = pneg %p223
    // Predicated region
    $region9: #{osa_forward.1} parent=5 // pred_check
      _
    $region10: #{osa_forward.1} parent=5 // pred_check_branch
      %226 = sbr.rel (%p223) target = $region12
    $region11: #{osa_forward.1} parent=5 // pred_region
      %s227 = ssub.s32 %s14, 1
      // Predicated region
      $region13: #{osa_forward.1} parent=11 // pred_check
        %p228 = pneg %p61
      $region14: #{osa_forward.1} parent=11 // pred_check_branch
        %230 = sbr.rel (%p228) target = $region16
      $region15: #{osa_forward.1} parent=11 // pred_region
        _
      $region16: #{osa_forward.1} parent=11 // pred_fallthru
        _
      // Predicated region
      $region17: #{osa_forward.1} parent=11 // pred_check
        %p231 = pneg %p82
      $region18: #{osa_forward.1} parent=11 // pred_check_branch
        %233 = sbr.rel (%p231) target = $region20
      $region19: #{osa_forward.1} parent=11 // pred_region
        _
      $region20: #{osa_forward.1} parent=11 // pred_fallthru
        _
      // Predicated region
      $region21: #{osa_forward.1} parent=11 // pred_check
        %p234 = pneg %p103
      $region22: #{osa_forward.1} parent=11 // pred_check_branch
        %236 = sbr.rel (%p234) target = $region24
      $region23: #{osa_forward.1} parent=11 // pred_region
        _
      $region24: #{osa_forward.1} parent=11 // pred_fallthru
        _
      // Predicated region
      $region25: #{osa_forward.1} parent=11 // pred_check
        %p237 = pneg %p124
      $region26: #{osa_forward.1} parent=11 // pred_check_branch
        %239 = sbr.rel (%p237) target = $region28
      $region27: #{osa_forward.1} parent=11 // pred_region
        _
      $region28: #{osa_forward.1} parent=11 // pred_fallthru
        _
      // Predicated region
      $region29: #{osa_forward.1} parent=11 // pred_check
        %p240 = pneg %p145
      $region30: #{osa_forward.1} parent=11 // pred_check_branch
        %242 = sbr.rel (%p240) target = $region32
      $region31: #{osa_forward.1} parent=11 // pred_region
        _
      $region32: #{osa_forward.1} parent=11 // pred_fallthru
        _
      // Predicated region
      $region33: #{osa_forward.1} parent=11 // pred_check
        %p243 = pneg %p166
      $region34: #{osa_forward.1} parent=11 // pred_check_branch
        %245 = sbr.rel (%p243) target = $region36
      $region35: #{osa_forward.1} parent=11 // pred_region
        _
      $region36: #{osa_forward.1} parent=11 // pred_fallthru
        _
      // Predicated region
      $region37: #{osa_forward.1} parent=11 // pred_check
        %p246 = pneg %p187
      $region38: #{osa_forward.1} parent=11 // pred_check_branch
        %248 = sbr.rel (%p246) target = $region40
      $region39: #{osa_forward.1} parent=11 // pred_region
        _
      $region40: #{osa_forward.1} parent=11 // pred_fallthru
        _
    $region12: #{osa_forward.1} parent=5 // pred_fallthru
      _
    %p249 = scmp.lt.s32.totalorder %s14, 2
    // Predicated region
    $region41: #{osa_forward.1} parent=5 // pred_check
      %p250 = pneg %p249
    $region42: #{osa_forward.1} parent=5 // pred_check_branch
      %252 = sbr.rel (%p250) target = $region44
    $region43: #{osa_forward.1} parent=5 // pred_region
      // Predicated region
      $region45: #{osa_forward.1} parent=43 // pred_check
        %p253 = pneg %p34
      $region46: #{osa_forward.1} parent=43 // pred_check_branch
        %255 = sbr.rel (%p253) target = $region48
      $region47: #{osa_forward.1} parent=43 // pred_region
        %p256 = scmp.lt.s32.totalorder %s14, 1
        %s257 = scalar_select %p256, %s14, 1
        %s258 = smul.addr %s257, 2
        %s259 = smul.addr %s258, 4
        %s260 = scalar_lea.vmem %s0, %s259
      $region48: #{osa_forward.1} parent=43 // pred_fallthru
        _
    $region44: #{osa_forward.1} parent=5 // pred_fallthru
      _
    %p261 = scmp.le.s32.totalorder 1, %s14
    %p262 = scmp.lt.s32.totalorder %s14, 3
    %p263 = pnand %p261, %p262
    %p264 = pneg %p263
    // Predicated region
    $region49: #{osa_forward.1} parent=5 // pred_check
      _
    $region50: #{osa_forward.1} parent=5 // pred_check_branch
      %266 = sbr.rel (%p263) target = $region52
    $region51: #{osa_forward.1} parent=5 // pred_region
      %s267 = ssub.s32 %s14, 1
      %p268 = scmp.lt.s32.totalorder %s19, 1
      %s269 = scalar_select %p268, %s19, 1
      %s270 = smul.addr %s269, 2
      %s271 = smul.addr %s270, 4
      %s272 = scalar_lea.vmem %s0, %s271
      %p273 = pneg %p40
      %p274 = pneg %p37
      %p275 = pneg %p61
      %p276 = pneg %p58
      %p277 = pneg %p82
      %p278 = pneg %p79
      %p279 = pneg %p103
      %p280 = pneg %p100
      %p281 = pneg %p124
      %p282 = pneg %p121
      %p283 = pneg %p145
      %p284 = pneg %p142
      %p285 = pneg %p166
      %p286 = pneg %p163
      %p287 = pneg %p187
      %p288 = pneg %p184
      %p289 = pneg %p213
      %p290 = pneg %p210
      %p291 = scmp.lt.s32.totalorder %s19, 1
      %s292 = scalar_select %p291, %s19, 1
      %s293 = smul.addr %s292, 4
      %s294 = smul.addr %s293, 8
      %s295 = scalar_lea.vmem %s8, %s294
      %p296 = scmp.lt.s32.totalorder %s19, 1
      %s297 = scalar_select %p296, %s19, 1
      %s298 = smul.addr %s297, 2
      %s299 = smul.addr %s298, 4
      %s300 = scalar_lea.vmem %s0, %s299
      %p301 = scmp.lt.s32.totalorder %s19, 1
      %s302 = scalar_select %p301, %s19, 1
      %s303 = smul.addr %s302, 4
      %s304 = smul.addr %s303, 8
      %s305 = scalar_lea.vmem %s8, %s304
      %306 = vst [vmem:[#allocation2] sm:$0xff] 0.0
      %307 = vst [vmem:[#allocation2 + $0x8] sm:$0xff] 0.0
      %308 = vst [vmem:[#allocation2 + $0x10] sm:$0xff] 0.0
      %309 = vst [vmem:[#allocation2 + $0x18] sm:$0xff] 0.0
      %310 = vst [vmem:[#allocation3] sm:$0xff] 0.0
      %311 = vst [vmem:[#allocation3 + $0x8] sm:$0xff] 0.0
      %312 = vst [vmem:[#allocation3 + $0x10] sm:$0xff] 0.0
      %313 = vst [vmem:[#allocation3 + $0x18] sm:$0xff] 0.0
      %314 = vst [vmem:[#allocation4] sm:$0xff] 0.0
      %315 = vst [vmem:[#allocation4 + $0x8] sm:$0xff] 0.0
      %316 = vst [vmem:[#allocation4 + $0x10] sm:$0xff] 0.0
      %317 = vst [vmem:[#allocation4 + $0x18] sm:$0xff] 0.0
      %318 = vst [vmem:[#allocation5] sm:$0xff] 0.0
      %319 = vst [vmem:[#allocation5 + $0x8] sm:$0xff] 0.0
      %320 = vst [vmem:[#allocation5 + $0x10] sm:$0xff] 0.0
      %321 = vst [vmem:[#allocation5 + $0x18] sm:$0xff] 0.0
      %v322 = vld [vmem:[%s300] sm:$0xff]
      %v324 = vcombine.high %v322, %v322
      %326 = vst [vmem:[#allocation2 + $0x8] sm:$0xf] %v322
      %327 = vst [vmem:[#allocation2 + $0x10] sm:$0xf] %v324
      %v328 = vld [vmem:[%s1] sm:$0x3]
      %s329 = scalar_lea.vmem %s1, 4
      %v330 = vld [vmem:[%s329] sm:$0x3]
      %s331 = scalar_lea.vmem %s1, 6
      %v332 = vld [vmem:[%s331] sm:$0x3]
      %s333 = scalar_lea.vmem %s1, 10
      %v334 = vld [vmem:[%s333] sm:$0x3]
      %s335 = scalar_lea.vmem %s1, 12
      %v336 = vld [vmem:[%s335] sm:$0x3]
      %s337 = scalar_lea.vmem %s1, 16
      %v338 = vld [vmem:[%s337] sm:$0x3]
      %v339 = vld [vmem:[#allocation2] sm:$0xff]
      %v340 = vld [vmem:[#allocation2 + $0x8] sm:$0xff]
      %v341 = vld [vmem:[#allocation2 + $0x10] sm:$0xff]
      %v343 = vlaneseq
      %v344 = vshrl.u32 %v343, 7
      %v345 = vsub.s32 0, %v344
      %v346 = vrot.slane %v328, %v345
      %v347 = vlaneseq
      %v348 = vshrl.u32 %v347, 7
      %v349 = vsub.s32 1, %v348
      %v350 = vrot.slane %v328, %v349
      %351 = vrot.lane.b32.xlu0 %v346, 111
      %v352 = vpop.permute.xlu0 %351
      %353 = vrot.lane.b32.xlu0 %v350, 111
      %v354 = vpop.permute.xlu0 %353
      %vm355 = vcmask 908288
      %v356 = vsel %vm355, %v352, %v354
      %v360 = vmul.f32 %v339, %v352
      %v361 = vmul.f32 %v340, %v356
      %v362 = vmul.f32 %v341, %v354
      %v363 = vld [vmem:[%s2] sm:$0xff]
      %s364 = scalar_lea.vmem %s2, 8
      %v365 = vld [vmem:[%s364] sm:$0xff]
      %369 = vrot.lane.b32.xlu0 %v339, 16
      %v370 = vpop.permute.xlu0 %369
      %371 = vrot.lane.b32.xlu0 %v340, 16
      %v372 = vpop.permute.xlu0 %371
      %373 = vrot.lane.b32.xlu0 %v341, 16
      %v374 = vpop.permute.xlu0 %373
      %vm375 = vcmask 130048
      %v376 = vsel %vm375, %v370, %v372
      %v377 = vsel %vm375, %v372, %v374
      %vm380 = vcmask 64512
      %v382 = vsel %vm380, %v365, 0
      %384 = vmatprep.subr.mxu0 %v377
      %385 = vmatpush1.msra.mxu0 %v376
      %386 = vmatprep.subr.mxu0 0.0
      %387 = vmatpush1.msra.mxu0 0.0
      %388 = vmatprep.subr.mxu0 0.0
      %389 = vmatpush1.msra.mxu0 0.0
      %390 = vmatprep.subr.mxu0 0.0
      %391 = vmatpush1.msra.mxu0 0.0
      %392 = vmatprep.subr.mxu0 0.0
      %393 = vmatpush1.msra.mxu0 0.0
      %394 = vmatprep.subr.mxu0 0.0
      %395 = vmatpush1.msra.mxu0 0.0
      %396 = vmatprep.subr.mxu0 0.0
      %397 = vmatpush1.msra.mxu0 0.0
      %398 = vmatprep.subr.mxu0 0.0
      %399 = vmatpush1.msra.mxu0 0.0
      %400 = vmatprep.subr.mxu0 0.0
      %401 = vmatpush1.msra.mxu0 0.0
      %402 = vmatprep.subr.mxu0 0.0
      %403 = vmatpush1.msra.mxu0 0.0
      %404 = vmatprep.subr.mxu0 0.0
      %405 = vmatpush1.msra.mxu0 0.0
      %406 = vmatprep.subr.mxu0 0.0
      %407 = vmatpush1.msra.mxu0 0.0
      %408 = vmatprep.subr.mxu0 0.0
      %409 = vmatpush1.msra.mxu0 0.0
      %410 = vmatprep.subr.mxu0 0.0
      %411 = vmatpush1.msra.mxu0 0.0
      %412 = vmatprep.subr.mxu0 0.0
      %413 = vmatpush1.msra.mxu0 0.0
      %414 = vmatprep.subr.mxu0 0.0
      %415 = vmatpush1.msra.mxu0 0.0
      %416 = vmatprep.subr.mxu0 0.0
      %417 = vmatpush1.msra.mxu0 0.0
      %418 = vmatprep.subr.mxu0 0.0
      %419 = vmatpush1.msra.mxu0 0.0
      %420 = vmatprep.subr.mxu0 0.0
      %421 = vmatpush1.msra.mxu0 0.0
      %422 = vmatprep.subr.mxu0 0.0
      %423 = vmatpush1.msra.mxu0 0.0
      %424 = vmatprep.subr.mxu0 0.0
      %425 = vmatpush1.msra.mxu0 0.0
      %426 = vmatprep.subr.mxu0 0.0
      %427 = vmatpush1.msra.mxu0 0.0
      %428 = vmatprep.subr.mxu0 0.0
      %429 = vmatpush1.msra.mxu0 0.0
      %430 = vmatprep.subr.mxu0 0.0
      %431 = vmatpush1.msra.mxu0 0.0
      %432 = vmatprep.subr.mxu0 0.0
      %433 = vmatpush1.msra.mxu0 0.0
      %434 = vmatprep.subr.mxu0 0.0
      %435 = vmatpush1.msra.mxu0 0.0
      %436 = vmatprep.subr.mxu0 0.0
      %437 = vmatpush1.msra.mxu0 0.0
      %438 = vmatprep.subr.mxu0 0.0
      %439 = vmatpush1.msra.mxu0 0.0
      %440 = vmatprep.subr.mxu0 0.0
      %441 = vmatpush1.msra.mxu0 0.0
      %442 = vmatprep.subr.mxu0 0.0
      %443 = vmatpush1.msra.mxu0 0.0
      %444 = vmatprep.subr.mxu0 0.0
      %445 = vmatpush1.msra.mxu0 0.0
      %446 = vmatprep.subr.mxu0 0.0
      %447 = vmatpush1.msra.mxu0 0.0
      %448 = vmatprep.mubr.f32.mxu0 0.0
      %449 = vmatmul.mubr.f32.gmra.mrb[0].mxu0 %v382
      %v450 = vpop.f32.mrb[0].mxu0
      %v451 = vadd.f32 0.0, %v450
      %v452 = vpop.f32.mrb[0].mxu0
      %v453 = vadd.f32 0.0, %v452
      %454 = vdwg.mxu0
      %458 = vrot.lane.b32.xlu0 %v360, 17
      %v459 = vpop.permute.xlu0 %458
      %460 = vrot.lane.b32.xlu0 %v361, 17
      %v461 = vpop.permute.xlu0 %460
      %462 = vrot.lane.b32.xlu0 %v362, 17
      %v463 = vpop.permute.xlu0 %462
      %vm464 = vcmask 138240
      %v465 = vsel %vm464, %v459, %v461
      %v466 = vsel %vm464, %v461, %v463
      %v470 = vsel %vm380, %v363, 0
      %472 = vmatprep.subr.mxu0 %v466
      %473 = vmatpush1.msra.mxu0 %v465
      %474 = vmatprep.subr.mxu0 0.0
      %475 = vmatpush1.msra.mxu0 0.0
      %476 = vmatprep.subr.mxu0 0.0
      %477 = vmatpush1.msra.mxu0 0.0
      %478 = vmatprep.subr.mxu0 0.0
      %479 = vmatpush1.msra.mxu0 0.0
      %480 = vmatprep.subr.mxu0 0.0
      %481 = vmatpush1.msra.mxu0 0.0
      %482 = vmatprep.subr.mxu0 0.0
      %483 = vmatpush1.msra.mxu0 0.0
      %484 = vmatprep.subr.mxu0 0.0
      %485 = vmatpush1.msra.mxu0 0.0
      %486 = vmatprep.subr.mxu0 0.0
      %487 = vmatpush1.msra.mxu0 0.0
      %488 = vmatprep.subr.mxu0 0.0
      %489 = vmatpush1.msra.mxu0 0.0
      %490 = vmatprep.subr.mxu0 0.0
      %491 = vmatpush1.msra.mxu0 0.0
      %492 = vmatprep.subr.mxu0 0.0
      %493 = vmatpush1.msra.mxu0 0.0
      %494 = vmatprep.subr.mxu0 0.0
      %495 = vmatpush1.msra.mxu0 0.0
      %496 = vmatprep.subr.mxu0 0.0
      %497 = vmatpush1.msra.mxu0 0.0
      %498 = vmatprep.subr.mxu0 0.0
      %499 = vmatpush1.msra.mxu0 0.0
      %500 = vmatprep.subr.mxu0 0.0
      %501 = vmatpush1.msra.mxu0 0.0
      %502 = vmatprep.subr.mxu0 0.0
      %503 = vmatpush1.msra.mxu0 0.0
      %504 = vmatprep.subr.mxu0 0.0
      %505 = vmatpush1.msra.mxu0 0.0
      %506 = vmatprep.subr.mxu0 0.0
      %507 = vmatpush1.msra.mxu0 0.0
      %508 = vmatprep.subr.mxu0 0.0
      %509 = vmatpush1.msra.mxu0 0.0
      %510 = vmatprep.subr.mxu0 0.0
      %511 = vmatpush1.msra.mxu0 0.0
      %512 = vmatprep.subr.mxu0 0.0
      %513 = vmatpush1.msra.mxu0 0.0
      %514 = vmatprep.subr.mxu0 0.0
      %515 = vmatpush1.msra.mxu0 0.0
      %516 = vmatprep.subr.mxu0 0.0
      %517 = vmatpush1.msra.mxu0 0.0
      %518 = vmatprep.subr.mxu0 0.0
      %519 = vmatpush1.msra.mxu0 0.0
      %520 = vmatprep.subr.mxu0 0.0
      %521 = vmatpush1.msra.mxu0 0.0
      %522 = vmatprep.subr.mxu0 0.0
      %523 = vmatpush1.msra.mxu0 0.0
      %524 = vmatprep.subr.mxu0 0.0
      %525 = vmatpush1.msra.mxu0 0.0
      %526 = vmatprep.subr.mxu0 0.0
      %527 = vmatpush1.msra.mxu0 0.0
      %528 = vmatprep.subr.mxu0 0.0
      %529 = vmatpush1.msra.mxu0 0.0
      %530 = vmatprep.subr.mxu0 0.0
      %531 = vmatpush1.msra.mxu0 0.0
      %532 = vmatprep.subr.mxu0 0.0
      %533 = vmatpush1.msra.mxu0 0.0
      %534 = vmatprep.subr.mxu0 0.0
      %535 = vmatpush1.msra.mxu0 0.0
      %536 = vmatprep.mubr.f32.mxu0 0.0
      %537 = vmatmul.mubr.f32.gmra.mrb[0].mxu0 %v470
      %v538 = vpop.f32.mrb[0].mxu0
      %v539 = vadd.f32 %v451, %v538
      %v540 = vpop.f32.mrb[0].mxu0
      %v541 = vadd.f32 %v453, %v540
      %542 = vdwg.mxu0
      %v544 = vlaneseq
      %v545 = vshrl.u32 %v544, 7
      %v546 = vsub.s32 0, %v545
      %v547 = vrot.slane %v330, %v546
      %v548 = vlaneseq
      %v549 = vshrl.u32 %v548, 7
      %v550 = vsub.s32 1, %v549
      %v551 = vrot.slane %v330, %v550
      %552 = vrot.lane.b32.xlu0 %v547, 113
      %v553 = vpop.permute.xlu0 %552
      %554 = vrot.lane.b32.xlu0 %v551, 113
      %v555 = vpop.permute.xlu0 %554
      %vm556 = vcmask 924672
      %v557 = vsel %vm556, %v553, %v555
      %v561 = vmul.f32 %v339, %v553
      %v562 = vmul.f32 %v340, %v557
      %v563 = vmul.f32 %v341, %v555
      %s564 = scalar_lea.vmem %s2, 16
      %v565 = vld [vmem:[%s564] sm:$0xff]
      %569 = vrot.lane.b32.xlu0 %v561, 15
      %v570 = vpop.permute.xlu0 %569
      %571 = vrot.lane.b32.xlu0 %v562, 15
      %v572 = vpop.permute.xlu0 %571
      %573 = vrot.lane.b32.xlu0 %v563, 15
      %v574 = vpop.permute.xlu0 %573
      %vm575 = vcmask 121856
      %v576 = vsel %vm575, %v570, %v572
      %v577 = vsel %vm575, %v572, %v574
      %v581 = vsel %vm380, %v565, 0
      %583 = vmatprep.subr.mxu0 %v577
      %584 = vmatpush1.msra.mxu0 %v576
      %585 = vmatprep.subr.mxu0 0.0
      %586 = vmatpush1.msra.mxu0 0.0
      %587 = vmatprep.subr.mxu0 0.0
      %588 = vmatpush1.msra.mxu0 0.0
      %589 = vmatprep.subr.mxu0 0.0
      %590 = vmatpush1.msra.mxu0 0.0
      %591 = vmatprep.subr.mxu0 0.0
      %592 = vmatpush1.msra.mxu0 0.0
      %593 = vmatprep.subr.mxu0 0.0
      %594 = vmatpush1.msra.mxu0 0.0
      %595 = vmatprep.subr.mxu0 0.0
      %596 = vmatpush1.msra.mxu0 0.0
      %597 = vmatprep.subr.mxu0 0.0
      %598 = vmatpush1.msra.mxu0 0.0
      %599 = vmatprep.subr.mxu0 0.0
      %600 = vmatpush1.msra.mxu0 0.0
      %601 = vmatprep.subr.mxu0 0.0
      %602 = vmatpush1.msra.mxu0 0.0
      %603 = vmatprep.subr.mxu0 0.0
      %604 = vmatpush1.msra.mxu0 0.0
      %605 = vmatprep.subr.mxu0 0.0
      %606 = vmatpush1.msra.mxu0 0.0
      %607 = vmatprep.subr.mxu0 0.0
      %608 = vmatpush1.msra.mxu0 0.0
      %609 = vmatprep.subr.mxu0 0.0
      %610 = vmatpush1.msra.mxu0 0.0
      %611 = vmatprep.subr.mxu0 0.0
      %612 = vmatpush1.msra.mxu0 0.0
      %613 = vmatprep.subr.mxu0 0.0
      %614 = vmatpush1.msra.mxu0 0.0
      %615 = vmatprep.subr.mxu0 0.0
      %616 = vmatpush1.msra.mxu0 0.0
      %617 = vmatprep.subr.mxu0 0.0
      %618 = vmatpush1.msra.mxu0 0.0
      %619 = vmatprep.subr.mxu0 0.0
      %620 = vmatpush1.msra.mxu0 0.0
      %621 = vmatprep.subr.mxu0 0.0
      %622 = vmatpush1.msra.mxu0 0.0
      %623 = vmatprep.subr.mxu0 0.0
      %624 = vmatpush1.msra.mxu0 0.0
      %625 = vmatprep.subr.mxu0 0.0
      %626 = vmatpush1.msra.mxu0 0.0
      %627 = vmatprep.subr.mxu0 0.0
      %628 = vmatpush1.msra.mxu0 0.0
      %629 = vmatprep.subr.mxu0 0.0
      %630 = vmatpush1.msra.mxu0 0.0
      %631 = vmatprep.subr.mxu0 0.0
      %632 = vmatpush1.msra.mxu0 0.0
      %633 = vmatprep.subr.mxu0 0.0
      %634 = vmatpush1.msra.mxu0 0.0
      %635 = vmatprep.subr.mxu0 0.0
      %636 = vmatpush1.msra.mxu0 0.0
      %637 = vmatprep.subr.mxu0 0.0
      %638 = vmatpush1.msra.mxu0 0.0
      %639 = vmatprep.subr.mxu0 0.0
      %640 = vmatpush1.msra.mxu0 0.0
      %641 = vmatprep.subr.mxu0 0.0
      %642 = vmatpush1.msra.mxu0 0.0
      %643 = vmatprep.subr.mxu0 0.0
      %644 = vmatpush1.msra.mxu0 0.0
      %645 = vmatprep.subr.mxu0 0.0
      %646 = vmatpush1.msra.mxu0 0.0
      %647 = vmatprep.mubr.f32.mxu0 0.0
      %648 = vmatmul.mubr.f32.gmra.mrb[0].mxu0 %v581
      %v649 = vpop.f32.mrb[0].mxu0
      %v650 = vadd.f32 0.0, %v649
      %v651 = vpop.f32.mrb[0].mxu0
      %v652 = vadd.f32 0.0, %v651
      %653 = vdwg.mxu0
      %v654 = vadd.f32 %v539, %v650
      %v655 = vadd.f32 %v541, %v652
      %v657 = vlaneseq
      %v658 = vshrl.u32 %v657, 7
      %v659 = vsub.s32 0, %v658
      %v660 = vrot.slane %v332, %v659
      %v661 = vlaneseq
      %v662 = vshrl.u32 %v661, 7
      %v663 = vsub.s32 1, %v662
      %v664 = vrot.slane %v332, %v663
      %665 = vrot.lane.b32.xlu0 %v660, 127
      %v666 = vpop.permute.xlu0 %665
      %667 = vrot.lane.b32.xlu0 %v664, 127
      %v668 = vpop.permute.xlu0 %667
      %vm669 = vcmask 1039360
      %v670 = vsel %vm669, %v666, %v668
      %v674 = vmul.f32 %v339, %v666
      %v675 = vmul.f32 %v340, %v670
      %v676 = vmul.f32 %v341, %v668
      %s677 = scalar_lea.vmem %s2, 24
      %v678 = vld [vmem:[%s677] sm:$0xff]
      %682 = vrot.lane.b32.xlu0 %v674, 1
      %v683 = vpop.permute.xlu0 %682
      %684 = vrot.lane.b32.xlu0 %v675, 1
      %v685 = vpop.permute.xlu0 %684
      %686 = vrot.lane.b32.xlu0 %v676, 1
      %v687 = vpop.permute.xlu0 %686
      %vm688 = vcmask 7168
      %v689 = vsel %vm688, %v683, %v685
      %v690 = vsel %vm688, %v685, %v687
      %v694 = vsel %vm380, %v678, 0
      %696 = vmatprep.subr.mxu0 %v690
      %697 = vmatpush1.msra.mxu0 %v689
      %698 = vmatprep.subr.mxu0 0.0
      %699 = vmatpush1.msra.mxu0 0.0
      %700 = vmatprep.subr.mxu0 0.0
      %701 = vmatpush1.msra.mxu0 0.0
      %702 = vmatprep.subr.mxu0 0.0
      %703 = vmatpush1.msra.mxu0 0.0
      %704 = vmatprep.subr.mxu0 0.0
      %705 = vmatpush1.msra.mxu0 0.0
      %706 = vmatprep.subr.mxu0 0.0
      %707 = vmatpush1.msra.mxu0 0.0
      %708 = vmatprep.subr.mxu0 0.0
      %709 = vmatpush1.msra.mxu0 0.0
      %710 = vmatprep.subr.mxu0 0.0
      %711 = vmatpush1.msra.mxu0 0.0
      %712 = vmatprep.subr.mxu0 0.0
      %713 = vmatpush1.msra.mxu0 0.0
      %714 = vmatprep.subr.mxu0 0.0
      %715 = vmatpush1.msra.mxu0 0.0
      %716 = vmatprep.subr.mxu0 0.0
      %717 = vmatpush1.msra.mxu0 0.0
      %718 = vmatprep.subr.mxu0 0.0
      %719 = vmatpush1.msra.mxu0 0.0
      %720 = vmatprep.subr.mxu0 0.0
      %721 = vmatpush1.msra.mxu0 0.0
      %722 = vmatprep.subr.mxu0 0.0
      %723 = vmatpush1.msra.mxu0 0.0
      %724 = vmatprep.subr.mxu0 0.0
      %725 = vmatpush1.msra.mxu0 0.0
      %726 = vmatprep.subr.mxu0 0.0
      %727 = vmatpush1.msra.mxu0 0.0
      %728 = vmatprep.subr.mxu0 0.0
      %729 = vmatpush1.msra.mxu0 0.0
      %730 = vmatprep.subr.mxu0 0.0
      %731 = vmatpush1.msra.mxu0 0.0
      %732 = vmatprep.subr.mxu0 0.0
      %733 = vmatpush1.msra.mxu0 0.0
      %734 = vmatprep.subr.mxu0 0.0
      %735 = vmatpush1.msra.mxu0 0.0
      %736 = vmatprep.subr.mxu0 0.0
      %737 = vmatpush1.msra.mxu0 0.0
      %738 = vmatprep.subr.mxu0 0.0
      %739 = vmatpush1.msra.mxu0 0.0
      %740 = vmatprep.subr.mxu0 0.0
      %741 = vmatpush1.msra.mxu0 0.0
      %742 = vmatprep.subr.mxu0 0.0
      %743 = vmatpush1.msra.mxu0 0.0
      %744 = vmatprep.subr.mxu0 0.0
      %745 = vmatpush1.msra.mxu0 0.0
      %746 = vmatprep.subr.mxu0 0.0
      %747 = vmatpush1.msra.mxu0 0.0
      %748 = vmatprep.subr.mxu0 0.0
      %749 = vmatpush1.msra.mxu0 0.0
      %750 = vmatprep.subr.mxu0 0.0
      %751 = vmatpush1.msra.mxu0 0.0
      %752 = vmatprep.subr.mxu0 0.0
      %753 = vmatpush1.msra.mxu0 0.0
      %754 = vmatprep.subr.mxu0 0.0
      %755 = vmatpush1.msra.mxu0 0.0
      %756 = vmatprep.subr.mxu0 0.0
      %757 = vmatpush1.msra.mxu0 0.0
      %758 = vmatprep.subr.mxu0 0.0
      %759 = vmatpush1.msra.mxu0 0.0
      %760 = vmatprep.mubr.f32.mxu0 0.0
      %761 = vmatmul.mubr.f32.gmra.mrb[0].mxu0 %v694
      %v762 = vpop.f32.mrb[0].mxu0
      %v763 = vadd.f32 0.0, %v762
      %v764 = vpop.f32.mrb[0].mxu0
      %v765 = vadd.f32 0.0, %v764
      %766 = vdwg.mxu0
      %v767 = vadd.f32 %v654, %v763
      %v768 = vadd.f32 %v655, %v765
      %s769 = scalar_lea.vmem %s2, 32
      %v770 = vld [vmem:[%s769] sm:$0xff]
      %v772 = vsel %vm380, %v770, 0
      %774 = vmatprep.subr.mxu0 %v341
      %775 = vmatpush1.msra.mxu0 %v340
      %776 = vmatprep.subr.mxu0 0.0
      %777 = vmatpush1.msra.mxu0 0.0
      %778 = vmatprep.subr.mxu0 0.0
      %779 = vmatpush1.msra.mxu0 0.0
      %780 = vmatprep.subr.mxu0 0.0
      %781 = vmatpush1.msra.mxu0 0.0
      %782 = vmatprep.subr.mxu0 0.0
      %783 = vmatpush1.msra.mxu0 0.0
      %784 = vmatprep.subr.mxu0 0.0
      %785 = vmatpush1.msra.mxu0 0.0
      %786 = vmatprep.subr.mxu0 0.0
      %787 = vmatpush1.msra.mxu0 0.0
      %788 = vmatprep.subr.mxu0 0.0
      %789 = vmatpush1.msra.mxu0 0.0
      %790 = vmatprep.subr.mxu0 0.0
      %791 = vmatpush1.msra.mxu0 0.0
      %792 = vmatprep.subr.mxu0 0.0
      %793 = vmatpush1.msra.mxu0 0.0
      %794 = vmatprep.subr.mxu0 0.0
      %795 = vmatpush1.msra.mxu0 0.0
      %796 = vmatprep.subr.mxu0 0.0
      %797 = vmatpush1.msra.mxu0 0.0
      %798 = vmatprep.subr.mxu0 0.0
      %799 = vmatpush1.msra.mxu0 0.0
      %800 = vmatprep.subr.mxu0 0.0
      %801 = vmatpush1.msra.mxu0 0.0
      %802 = vmatprep.subr.mxu0 0.0
      %803 = vmatpush1.msra.mxu0 0.0
      %804 = vmatprep.subr.mxu0 0.0
      %805 = vmatpush1.msra.mxu0 0.0
      %806 = vmatprep.subr.mxu0 0.0
      %807 = vmatpush1.msra.mxu0 0.0
      %808 = vmatprep.subr.mxu0 0.0
      %809 = vmatpush1.msra.mxu0 0.0
      %810 = vmatprep.subr.mxu0 0.0
      %811 = vmatpush1.msra.mxu0 0.0
      %812 = vmatprep.subr.mxu0 0.0
      %813 = vmatpush1.msra.mxu0 0.0
      %814 = vmatprep.subr.mxu0 0.0
      %815 = vmatpush1.msra.mxu0 0.0
      %816 = vmatprep.subr.mxu0 0.0
      %817 = vmatpush1.msra.mxu0 0.0
      %818 = vmatprep.subr.mxu0 0.0
      %819 = vmatpush1.msra.mxu0 0.0
      %820 = vmatprep.subr.mxu0 0.0
      %821 = vmatpush1.msra.mxu0 0.0
      %822 = vmatprep.subr.mxu0 0.0
      %823 = vmatpush1.msra.mxu0 0.0
      %824 = vmatprep.subr.mxu0 0.0
      %825 = vmatpush1.msra.mxu0 0.0
      %826 = vmatprep.subr.mxu0 0.0
      %827 = vmatpush1.msra.mxu0 0.0
      %828 = vmatprep.subr.mxu0 0.0
      %829 = vmatpush1.msra.mxu0 0.0
      %830 = vmatprep.subr.mxu0 0.0
      %831 = vmatpush1.msra.mxu0 0.0
      %832 = vmatprep.subr.mxu0 0.0
      %833 = vmatpush1.msra.mxu0 0.0
      %834 = vmatprep.subr.mxu0 0.0
      %835 = vmatpush1.msra.mxu0 0.0
      %836 = vmatprep.subr.mxu0 0.0
      %837 = vmatpush1.msra.mxu0 0.0
      %838 = vmatprep.mubr.f32.mxu0 0.0
      %839 = vmatmul.mubr.f32.gmra.mrb[0].mxu0 %v772
      %v840 = vpop.f32.mrb[0].mxu0
      %v841 = vadd.f32 0.0, %v840
      %v842 = vpop.f32.mrb[0].mxu0
      %v843 = vadd.f32 0.0, %v842
      %844 = vdwg.mxu0
      %v845 = vadd.f32 %v767, %v841
      %v846 = vadd.f32 %v768, %v843
      %v847 = vld [vmem:[#allocation2 + $0x8] sm:$0xff]
      %v848 = vld [vmem:[#allocation2 + $0x10] sm:$0xff]
      %v849 = vld [vmem:[#allocation2 + $0x18] sm:$0xff]
      %v851 = vlaneseq
      %v852 = vshrl.u32 %v851, 7
      %v853 = vsub.s32 0, %v852
      %v854 = vrot.slane %v334, %v853
      %v855 = vlaneseq
      %v856 = vshrl.u32 %v855, 7
      %v857 = vsub.s32 1, %v856
      %v858 = vrot.slane %v334, %v857
      %859 = vrot.lane.b32.xlu0 %v854, 1
      %v860 = vpop.permute.xlu0 %859
      %861 = vrot.lane.b32.xlu0 %v858, 1
      %v862 = vpop.permute.xlu0 %861
      %v863 = vsel %vm688, %v860, %v862
      %v867 = vmul.f32 %v847, %v860
      %v868 = vmul.f32 %v848, %v863
      %v869 = vmul.f32 %v849, %v862
      %s870 = scalar_lea.vmem %s2, 40
      %v871 = vld [vmem:[%s870] sm:$0xff]
      %875 = vrot.lane.b32.xlu0 %v867, 127
      %v876 = vpop.permute.xlu0 %875
      %877 = vrot.lane.b32.xlu0 %v868, 127
      %v878 = vpop.permute.xlu0 %877
      %879 = vrot.lane.b32.xlu0 %v869, 127
      %v880 = vpop.permute.xlu0 %879
      %v881 = vsel %vm669, %v876, %v878
      %v882 = vsel %vm669, %v878, %v880
      %v886 = vsel %vm380, %v871, 0
      %888 = vmatprep.subr.mxu0 %v882
      %889 = vmatpush1.msra.mxu0 %v881
      %890 = vmatprep.subr.mxu0 0.0
      %891 = vmatpush1.msra.mxu0 0.0
      %892 = vmatprep.subr.mxu0 0.0
      %893 = vmatpush1.msra.mxu0 0.0
      %894 = vmatprep.subr.mxu0 0.0
      %895 = vmatpush1.msra.mxu0 0.0
      %896 = vmatprep.subr.mxu0 0.0
      %897 = vmatpush1.msra.mxu0 0.0
      %898 = vmatprep.subr.mxu0 0.0
      %899 = vmatpush1.msra.mxu0 0.0
      %900 = vmatprep.subr.mxu0 0.0
      %901 = vmatpush1.msra.mxu0 0.0
      %902 = vmatprep.subr.mxu0 0.0
      %903 = vmatpush1.msra.mxu0 0.0
      %904 = vmatprep.subr.mxu0 0.0
      %905 = vmatpush1.msra.mxu0 0.0
      %906 = vmatprep.subr.mxu0 0.0
      %907 = vmatpush1.msra.mxu0 0.0
      %908 = vmatprep.subr.mxu0 0.0
      %909 = vmatpush1.msra.mxu0 0.0
      %910 = vmatprep.subr.mxu0 0.0
      %911 = vmatpush1.msra.mxu0 0.0
      %912 = vmatprep.subr.mxu0 0.0
      %913 = vmatpush1.msra.mxu0 0.0
      %914 = vmatprep.subr.mxu0 0.0
      %915 = vmatpush1.msra.mxu0 0.0
      %916 = vmatprep.subr.mxu0 0.0
      %917 = vmatpush1.msra.mxu0 0.0
      %918 = vmatprep.subr.mxu0 0.0
      %919 = vmatpush1.msra.mxu0 0.0
      %920 = vmatprep.subr.mxu0 0.0
      %921 = vmatpush1.msra.mxu0 0.0
      %922 = vmatprep.subr.mxu0 0.0
      %923 = vmatpush1.msra.mxu0 0.0
      %924 = vmatprep.subr.mxu0 0.0
      %925 = vmatpush1.msra.mxu0 0.0
      %926 = vmatprep.subr.mxu0 0.0
      %927 = vmatpush1.msra.mxu0 0.0
      %928 = vmatprep.subr.mxu0 0.0
      %929 = vmatpush1.msra.mxu0 0.0
      %930 = vmatprep.subr.mxu0 0.0
      %931 = vmatpush1.msra.mxu0 0.0
      %932 = vmatprep.subr.mxu0 0.0
      %933 = vmatpush1.msra.mxu0 0.0
      %934 = vmatprep.subr.mxu0 0.0
      %935 = vmatpush1.msra.mxu0 0.0
      %936 = vmatprep.subr.mxu0 0.0
      %937 = vmatpush1.msra.mxu0 0.0
      %938 = vmatprep.subr.mxu0 0.0
      %939 = vmatpush1.msra.mxu0 0.0
      %940 = vmatprep.subr.mxu0 0.0
      %941 = vmatpush1.msra.mxu0 0.0
      %942 = vmatprep.subr.mxu0 0.0
      %943 = vmatpush1.msra.mxu0 0.0
      %944 = vmatprep.subr.mxu0 0.0
      %945 = vmatpush1.msra.mxu0 0.0
      %946 = vmatprep.subr.mxu0 0.0
      %947 = vmatpush1.msra.mxu0 0.0
      %948 = vmatprep.subr.mxu0 0.0
      %949 = vmatpush1.msra.mxu0 0.0
      %950 = vmatprep.subr.mxu0 0.0
      %951 = vmatpush1.msra.mxu0 0.0
      %952 = vmatprep.mubr.f32.mxu0 0.0
      %953 = vmatmul.mubr.f32.gmra.mrb[0].mxu0 %v886
      %v954 = vpop.f32.mrb[0].mxu0
      %v955 = vadd.f32 0.0, %v954
      %v956 = vpop.f32.mrb[0].mxu0
      %v957 = vadd.f32 0.0, %v956
      %958 = vdwg.mxu0
      %v959 = vadd.f32 %v845, %v955
      %v960 = vadd.f32 %v846, %v957
      %v962 = vlaneseq
      %v963 = vshrl.u32 %v962, 7
      %v964 = vsub.s32 0, %v963
      %v965 = vrot.slane %v336, %v964
      %v966 = vlaneseq
      %v967 = vshrl.u32 %v966, 7
      %v968 = vsub.s32 1, %v967
      %v969 = vrot.slane %v336, %v968
      %970 = vrot.lane.b32.xlu0 %v965, 15
      %v971 = vpop.permute.xlu0 %970
      %972 = vrot.lane.b32.xlu0 %v969, 15
      %v973 = vpop.permute.xlu0 %972
      %v974 = vsel %vm575, %v971, %v973
      %v978 = vmul.f32 %v847, %v971
      %v979 = vmul.f32 %v848, %v974
      %v980 = vmul.f32 %v849, %v973
      %s981 = scalar_lea.vmem %s2, 48
      %v982 = vld [vmem:[%s981] sm:$0xff]
      %986 = vrot.lane.b32.xlu0 %v978, 113
      %v987 = vpop.permute.xlu0 %986
      %988 = vrot.lane.b32.xlu0 %v979, 113
      %v989 = vpop.permute.xlu0 %988
      %990 = vrot.lane.b32.xlu0 %v980, 113
      %v991 = vpop.permute.xlu0 %990
      %v992 = vsel %vm556, %v987, %v989
      %v993 = vsel %vm556, %v989, %v991
      %v997 = vsel %vm380, %v982, 0
      %999 = vmatprep.subr.mxu0 %v993
      %1000 = vmatpush1.msra.mxu0 %v992
      %1001 = vmatprep.subr.mxu0 0.0
      %1002 = vmatpush1.msra.mxu0 0.0
      %1003 = vmatprep.subr.mxu0 0.0
      %1004 = vmatpush1.msra.mxu0 0.0
      %1005 = vmatprep.subr.mxu0 0.0
      %1006 = vmatpush1.msra.mxu0 0.0
      %1007 = vmatprep.subr.mxu0 0.0
      %1008 = vmatpush1.msra.mxu0 0.0
      %1009 = vmatprep.subr.mxu0 0.0
      %1010 = vmatpush1.msra.mxu0 0.0
      %1011 = vmatprep.subr.mxu0 0.0
      %1012 = vmatpush1.msra.mxu0 0.0
      %1013 = vmatprep.subr.mxu0 0.0
      %1014 = vmatpush1.msra.mxu0 0.0
      %1015 = vmatprep.subr.mxu0 0.0
      %1016 = vmatpush1.msra.mxu0 0.0
      %1017 = vmatprep.subr.mxu0 0.0
      %1018 = vmatpush1.msra.mxu0 0.0
      %1019 = vmatprep.subr.mxu0 0.0
      %1020 = vmatpush1.msra.mxu0 0.0
      %1021 = vmatprep.subr.mxu0 0.0
      %1022 = vmatpush1.msra.mxu0 0.0
      %1023 = vmatprep.subr.mxu0 0.0
      %1024 = vmatpush1.msra.mxu0 0.0
      %1025 = vmatprep.subr.mxu0 0.0
      %1026 = vmatpush1.msra.mxu0 0.0
      %1027 = vmatprep.subr.mxu0 0.0
      %1028 = vmatpush1.msra.mxu0 0.0
      %1029 = vmatprep.subr.mxu0 0.0
      %1030 = vmatpush1.msra.mxu0 0.0
      %1031 = vmatprep.subr.mxu0 0.0
      %1032 = vmatpush1.msra.mxu0 0.0
      %1033 = vmatprep.subr.mxu0 0.0
      %1034 = vmatpush1.msra.mxu0 0.0
      %1035 = vmatprep.subr.mxu0 0.0
      %1036 = vmatpush1.msra.mxu0 0.0
      %1037 = vmatprep.subr.mxu0 0.0
      %1038 = vmatpush1.msra.mxu0 0.0
      %1039 = vmatprep.subr.mxu0 0.0
      %1040 = vmatpush1.msra.mxu0 0.0
      %1041 = vmatprep.subr.mxu0 0.0
      %1042 = vmatpush1.msra.mxu0 0.0
      %1043 = vmatprep.subr.mxu0 0.0
      %1044 = vmatpush1.msra.mxu0 0.0
      %1045 = vmatprep.subr.mxu0 0.0
      %1046 = vmatpush1.msra.mxu0 0.0
      %1047 = vmatprep.subr.mxu0 0.0
      %1048 = vmatpush1.msra.mxu0 0.0
      %1049 = vmatprep.subr.mxu0 0.0
      %1050 = vmatpush1.msra.mxu0 0.0
      %1051 = vmatprep.subr.mxu0 0.0
      %1052 = vmatpush1.msra.mxu0 0.0
      %1053 = vmatprep.subr.mxu0 0.0
      %1054 = vmatpush1.msra.mxu0 0.0
      %1055 = vmatprep.subr.mxu0 0.0
      %1056 = vmatpush1.msra.mxu0 0.0
      %1057 = vmatprep.subr.mxu0 0.0
      %1058 = vmatpush1.msra.mxu0 0.0
      %1059 = vmatprep.subr.mxu0 0.0
      %1060 = vmatpush1.msra.mxu0 0.0
      %1061 = vmatprep.subr.mxu0 0.0
      %1062 = vmatpush1.msra.mxu0 0.0
      %1063 = vmatprep.mubr.f32.mxu0 0.0
      %1064 = vmatmul.mubr.f32.gmra.mrb[0].mxu0 %v997
      %v1065 = vpop.f32.mrb[0].mxu0
      %v1066 = vadd.f32 0.0, %v1065
      %v1067 = vpop.f32.mrb[0].mxu0
      %v1068 = vadd.f32 0.0, %v1067
      %1069 = vdwg.mxu0
      %v1070 = vadd.f32 %v959, %v1066
      %v1071 = vadd.f32 %v960, %v1068
      %s1072 = scalar_lea.vmem %s2, 56
      %v1073 = vld [vmem:[%s1072] sm:$0xff]
      %1077 = vrot.lane.b32.xlu0 %v847, 112
      %v1078 = vpop.permute.xlu0 %1077
      %1079 = vrot.lane.b32.xlu0 %v848, 112
      %v1080 = vpop.permute.xlu0 %1079
      %1081 = vrot.lane.b32.xlu0 %v849, 112
      %v1082 = vpop.permute.xlu0 %1081
      %vm1083 = vcmask 916480
      %v1084 = vsel %vm1083, %v1078, %v1080
      %v1085 = vsel %vm1083, %v1080, %v1082
      %v1089 = vsel %vm380, %v1073, 0
      %1091 = vmatprep.subr.mxu0 %v1085
      %1092 = vmatpush1.msra.mxu0 %v1084
      %1093 = vmatprep.subr.mxu0 0.0
      %1094 = vmatpush1.msra.mxu0 0.0
      %1095 = vmatprep.subr.mxu0 0.0
      %1096 = vmatpush1.msra.mxu0 0.0
      %1097 = vmatprep.subr.mxu0 0.0
      %1098 = vmatpush1.msra.mxu0 0.0
      %1099 = vmatprep.subr.mxu0 0.0
      %1100 = vmatpush1.msra.mxu0 0.0
      %1101 = vmatprep.subr.mxu0 0.0
      %1102 = vmatpush1.msra.mxu0 0.0
      %1103 = vmatprep.subr.mxu0 0.0
      %1104 = vmatpush1.msra.mxu0 0.0
      %1105 = vmatprep.subr.mxu0 0.0
      %1106 = vmatpush1.msra.mxu0 0.0
      %1107 = vmatprep.subr.mxu0 0.0
      %1108 = vmatpush1.msra.mxu0 0.0
      %1109 = vmatprep.subr.mxu0 0.0
      %1110 = vmatpush1.msra.mxu0 0.0
      %1111 = vmatprep.subr.mxu0 0.0
      %1112 = vmatpush1.msra.mxu0 0.0
      %1113 = vmatprep.subr.mxu0 0.0
      %1114 = vmatpush1.msra.mxu0 0.0
      %1115 = vmatprep.subr.mxu0 0.0
      %1116 = vmatpush1.msra.mxu0 0.0
      %1117 = vmatprep.subr.mxu0 0.0
      %1118 = vmatpush1.msra.mxu0 0.0
      %1119 = vmatprep.subr.mxu0 0.0
      %1120 = vmatpush1.msra.mxu0 0.0
      %1121 = vmatprep.subr.mxu0 0.0
      %1122 = vmatpush1.msra.mxu0 0.0
      %1123 = vmatprep.subr.mxu0 0.0
      %1124 = vmatpush1.msra.mxu0 0.0
      %1125 = vmatprep.subr.mxu0 0.0
      %1126 = vmatpush1.msra.mxu0 0.0
      %1127 = vmatprep.subr.mxu0 0.0
      %1128 = vmatpush1.msra.mxu0 0.0
      %1129 = vmatprep.subr.mxu0 0.0
      %1130 = vmatpush1.msra.mxu0 0.0
      %1131 = vmatprep.subr.mxu0 0.0
      %1132 = vmatpush1.msra.mxu0 0.0
      %1133 = vmatprep.subr.mxu0 0.0
      %1134 = vmatpush1.msra.mxu0 0.0
      %1135 = vmatprep.subr.mxu0 0.0
      %1136 = vmatpush1.msra.mxu0 0.0
      %1137 = vmatprep.subr.mxu0 0.0
      %1138 = vmatpush1.msra.mxu0 0.0
      %1139 = vmatprep.subr.mxu0 0.0
      %1140 = vmatpush1.msra.mxu0 0.0
      %1141 = vmatprep.subr.mxu0 0.0
      %1142 = vmatpush1.msra.mxu0 0.0
      %1143 = vmatprep.subr.mxu0 0.0
      %1144 = vmatpush1.msra.mxu0 0.0
      %1145 = vmatprep.subr.mxu0 0.0
      %1146 = vmatpush1.msra.mxu0 0.0
      %1147 = vmatprep.subr.mxu0 0.0
      %1148 = vmatpush1.msra.mxu0 0.0
      %1149 = vmatprep.subr.mxu0 0.0
      %1150 = vmatpush1.msra.mxu0 0.0
      %1151 = vmatprep.subr.mxu0 0.0
      %1152 = vmatpush1.msra.mxu0 0.0
      %1153 = vmatprep.subr.mxu0 0.0
      %1154 = vmatpush1.msra.mxu0 0.0
      %1155 = vmatprep.mubr.f32.mxu0 0.0
      %1156 = vmatmul.mubr.f32.gmra.mrb[0].mxu0 %v1089
      %v1157 = vpop.f32.mrb[0].mxu0
      %v1158 = vadd.f32 0.0, %v1157
      %v1159 = vpop.f32.mrb[0].mxu0
      %v1160 = vadd.f32 0.0, %v1159
      %1161 = vdwg.mxu0
      %v1162 = vadd.f32 %v1070, %v1158
      %v1163 = vadd.f32 %v1071, %v1160
      %v1165 = vlaneseq
      %v1166 = vshrl.u32 %v1165, 7
      %v1167 = vsub.s32 0, %v1166
      %v1168 = vrot.slane %v338, %v1167
      %v1169 = vlaneseq
      %v1170 = vshrl.u32 %v1169, 7
      %v1171 = vsub.s32 1, %v1170
      %v1172 = vrot.slane %v338, %v1171
      %1173 = vrot.lane.b32.xlu0 %v1168, 17
      %v1174 = vpop.permute.xlu0 %1173
      %1175 = vrot.lane.b32.xlu0 %v1172, 17
      %v1176 = vpop.permute.xlu0 %1175
      %v1177 = vsel %vm464, %v1174, %v1176
      %v1181 = vmul.f32 %v847, %v1174
      %v1182 = vmul.f32 %v848, %v1177
      %v1183 = vmul.f32 %v849, %v1176
      %s1184 = scalar_lea.vmem %s2, 64
      %v1185 = vld [vmem:[%s1184] sm:$0xff]
      %1189 = vrot.lane.b32.xlu0 %v1181, 111
      %v1190 = vpop.permute.xlu0 %1189
      %1191 = vrot.lane.b32.xlu0 %v1182, 111
      %v1192 = vpop.permute.xlu0 %1191
      %1193 = vrot.lane.b32.xlu0 %v1183, 111
      %v1194 = vpop.permute.xlu0 %1193
      %v1195 = vsel %vm355, %v1190, %v1192
      %v1196 = vsel %vm355, %v1192, %v1194
      %v1200 = vsel %vm380, %v1185, 0
      %1202 = vmatprep.subr.mxu0 %v1196
      %1203 = vmatpush1.msra.mxu0 %v1195
      %1204 = vmatprep.subr.mxu0 0.0
      %1205 = vmatpush1.msra.mxu0 0.0
      %1206 = vmatprep.subr.mxu0 0.0
      %1207 = vmatpush1.msra.mxu0 0.0
      %1208 = vmatprep.subr.mxu0 0.0
      %1209 = vmatpush1.msra.mxu0 0.0
      %1210 = vmatprep.subr.mxu0 0.0
      %1211 = vmatpush1.msra.mxu0 0.0
      %1212 = vmatprep.subr.mxu0 0.0
      %1213 = vmatpush1.msra.mxu0 0.0
      %1214 = vmatprep.subr.mxu0 0.0
      %1215 = vmatpush1.msra.mxu0 0.0
      %1216 = vmatprep.subr.mxu0 0.0
      %1217 = vmatpush1.msra.mxu0 0.0
      %1218 = vmatprep.subr.mxu0 0.0
      %1219 = vmatpush1.msra.mxu0 0.0
      %1220 = vmatprep.subr.mxu0 0.0
      %1221 = vmatpush1.msra.mxu0 0.0
      %1222 = vmatprep.subr.mxu0 0.0
      %1223 = vmatpush1.msra.mxu0 0.0
      %1224 = vmatprep.subr.mxu0 0.0
      %1225 = vmatpush1.msra.mxu0 0.0
      %1226 = vmatprep.subr.mxu0 0.0
      %1227 = vmatpush1.msra.mxu0 0.0
      %1228 = vmatprep.subr.mxu0 0.0
      %1229 = vmatpush1.msra.mxu0 0.0
      %1230 = vmatprep.subr.mxu0 0.0
      %1231 = vmatpush1.msra.mxu0 0.0
      %1232 = vmatprep.subr.mxu0 0.0
      %1233 = vmatpush1.msra.mxu0 0.0
      %1234 = vmatprep.subr.mxu0 0.0
      %1235 = vmatpush1.msra.mxu0 0.0
      %1236 = vmatprep.subr.mxu0 0.0
      %1237 = vmatpush1.msra.mxu0 0.0
      %1238 = vmatprep.subr.mxu0 0.0
      %1239 = vmatpush1.msra.mxu0 0.0
      %1240 = vmatprep.subr.mxu0 0.0
      %1241 = vmatpush1.msra.mxu0 0.0
      %1242 = vmatprep.subr.mxu0 0.0
      %1243 = vmatpush1.msra.mxu0 0.0
      %1244 = vmatprep.subr.mxu0 0.0
      %1245 = vmatpush1.msra.mxu0 0.0
      %1246 = vmatprep.subr.mxu0 0.0
      %1247 = vmatpush1.msra.mxu0 0.0
      %1248 = vmatprep.subr.mxu0 0.0
      %1249 = vmatpush1.msra.mxu0 0.0
      %1250 = vmatprep.subr.mxu0 0.0
      %1251 = vmatpush1.msra.mxu0 0.0
      %1252 = vmatprep.subr.mxu0 0.0
      %1253 = vmatpush1.msra.mxu0 0.0
      %1254 = vmatprep.subr.mxu0 0.0
      %1255 = vmatpush1.msra.mxu0 0.0
      %1256 = vmatprep.subr.mxu0 0.0
      %1257 = vmatpush1.msra.mxu0 0.0
      %1258 = vmatprep.subr.mxu0 0.0
      %1259 = vmatpush1.msra.mxu0 0.0
      %1260 = vmatprep.subr.mxu0 0.0
      %1261 = vmatpush1.msra.mxu0 0.0
      %1262 = vmatprep.subr.mxu0 0.0
      %1263 = vmatpush1.msra.mxu0 0.0
      %1264 = vmatprep.subr.mxu0 0.0
      %1265 = vmatpush1.msra.mxu0 0.0
      %1266 = vmatprep.mubr.f32.mxu0 0.0
      %1267 = vmatmul.mubr.f32.gmra.mrb[0].mxu0 %v1200
      %v1268 = vpop.f32.mrb[0].mxu0
      %v1269 = vadd.f32 0.0, %v1268
      %v1270 = vpop.f32.mrb[0].mxu0
      %v1271 = vadd.f32 0.0, %v1270
      %1272 = vdwg.mxu0
      %v1273 = vadd.f32 %v1162, %v1269
      %v1274 = vadd.f32 %v1163, %v1271
      %v1275 = vld [vmem:[%s3] sm:$0xff]
      %1277 = vset.pattern.permute.xlu0 0
      %1278 = vperm.xlu0 %1277, %v1275
      %v1279 = vpop.permute.xlu0 %1278
      %v1281 = vadd.f32 %v1273, %v1279
      %v1282 = vadd.f32 %v1274, %v1279
      %v1283 = vmax.f32 %v1281, 0.0
      %v1284 = vmax.f32 %v1282, 0.0
      %1285 = vst [vmem:[#allocation3 + $0x8] sm:$0xff] %v1283
      %1286 = vst [vmem:[#allocation3 + $0x10] sm:$0xff] %v1284
      %v1287 = vld [vmem:[#allocation3] sm:$0xff]
      %v1288 = vld [vmem:[#allocation3 + $0x8] sm:$0xff]
      %v1289 = vld [vmem:[#allocation3 + $0x10] sm:$0xff]
      %v1290 = vmul.f32 %v1287, %v352
      %v1291 = vmul.f32 %v1288, %v356
      %v1292 = vmul.f32 %v1289, %v354
      %s1293 = scalar_lea.vmem %s2, 72
      %v1294 = vld [vmem:[%s1293] sm:$0xff]
      %s1295 = scalar_lea.vmem %s2, 80
      %v1296 = vld [vmem:[%s1295] sm:$0xff]
      %1300 = vrot.lane.b32.xlu0 %v1287, 16
      %v1301 = vpop.permute.xlu0 %1300
      %1302 = vrot.lane.b32.xlu0 %v1288, 16
      %v1303 = vpop.permute.xlu0 %1302
      %1304 = vrot.lane.b32.xlu0 %v1289, 16
      %v1305 = vpop.permute.xlu0 %1304
      %v1306 = vsel %vm375, %v1301, %v1303
      %v1307 = vsel %vm375, %v1303, %v1305
      %v1311 = vsel %vm380, %v1296, 0
      %1313 = vmatprep.subr.mxu0 %v1307
      %1314 = vmatpush1.msra.mxu0 %v1306
      %1315 = vmatprep.subr.mxu0 0.0
      %1316 = vmatpush1.msra.mxu0 0.0
      %1317 = vmatprep.subr.mxu0 0.0
      %1318 = vmatpush1.msra.mxu0 0.0
      %1319 = vmatprep.subr.mxu0 0.0
      %1320 = vmatpush1.msra.mxu0 0.0
      %1321 = vmatprep.subr.mxu0 0.0
      %1322 = vmatpush1.msra.mxu0 0.0
      %1323 = vmatprep.subr.mxu0 0.0
      %1324 = vmatpush1.msra.mxu0 0.0
      %1325 = vmatprep.subr.mxu0 0.0
      %1326 = vmatpush1.msra.mxu0 0.0
      %1327 = vmatprep.subr.mxu0 0.0
      %1328 = vmatpush1.msra.mxu0 0.0
      %1329 = vmatprep.subr.mxu0 0.0
      %1330 = vmatpush1.msra.mxu0 0.0
      %1331 = vmatprep.subr.mxu0 0.0
      %1332 = vmatpush1.msra.mxu0 0.0
      %1333 = vmatprep.subr.mxu0 0.0
      %1334 = vmatpush1.msra.mxu0 0.0
      %1335 = vmatprep.subr.mxu0 0.0
      %1336 = vmatpush1.msra.mxu0 0.0
      %1337 = vmatprep.subr.mxu0 0.0
      %1338 = vmatpush1.msra.mxu0 0.0
      %1339 = vmatprep.subr.mxu0 0.0
      %1340 = vmatpush1.msra.mxu0 0.0
      %1341 = vmatprep.subr.mxu0 0.0
      %1342 = vmatpush1.msra.mxu0 0.0
      %1343 = vmatprep.subr.mxu0 0.0
      %1344 = vmatpush1.msra.mxu0 0.0
      %1345 = vmatprep.subr.mxu0 0.0
      %1346 = vmatpush1.msra.mxu0 0.0
      %1347 = vmatprep.subr.mxu0 0.0
      %1348 = vmatpush1.msra.mxu0 0.0
      %1349 = vmatprep.subr.mxu0 0.0
      %1350 = vmatpush1.msra.mxu0 0.0
      %1351 = vmatprep.subr.mxu0 0.0
      %1352 = vmatpush1.msra.mxu0 0.0
      %1353 = vmatprep.subr.mxu0 0.0
      %1354 = vmatpush1.msra.mxu0 0.0
      %1355 = vmatprep.subr.mxu0 0.0
      %1356 = vmatpush1.msra.mxu0 0.0
      %1357 = vmatprep.subr.mxu0 0.0
      %1358 = vmatpush1.msra.mxu0 0.0
      %1359 = vmatprep.subr.mxu0 0.0
      %1360 = vmatpush1.msra.mxu0 0.0
      %1361 = vmatprep.subr.mxu0 0.0
      %1362 = vmatpush1.msra.mxu0 0.0
      %1363 = vmatprep.subr.mxu0 0.0
      %1364 = vmatpush1.msra.mxu0 0.0
      %1365 = vmatprep.subr.mxu0 0.0
      %1366 = vmatpush1.msra.mxu0 0.0
      %1367 = vmatprep.subr.mxu0 0.0
      %1368 = vmatpush1.msra.mxu0 0.0
      %1369 = vmatprep.subr.mxu0 0.0
      %1370 = vmatpush1.msra.mxu0 0.0
      %1371 = vmatprep.subr.mxu0 0.0
      %1372 = vmatpush1.msra.mxu0 0.0
      %1373 = vmatprep.subr.mxu0 0.0
      %1374 = vmatpush1.msra.mxu0 0.0
      %1375 = vmatprep.subr.mxu0 0.0
      %1376 = vmatpush1.msra.mxu0 0.0
      %1377 = vmatprep.mubr.f32.mxu0 0.0
      %1378 = vmatmul.mubr.f32.gmra.mrb[0].mxu0 %v1311
      %v1379 = vpop.f32.mrb[0].mxu0
      %v1380 = vadd.f32 0.0, %v1379
      %v1381 = vpop.f32.mrb[0].mxu0
      %v1382 = vadd.f32 0.0, %v1381
      %1383 = vdwg.mxu0
      %1387 = vrot.lane.b32.xlu0 %v1290, 17
      %v1388 = vpop.permute.xlu0 %1387
      %1389 = vrot.lane.b32.xlu0 %v1291, 17
      %v1390 = vpop.permute.xlu0 %1389
      %1391 = vrot.lane.b32.xlu0 %v1292, 17
      %v1392 = vpop.permute.xlu0 %1391
      %v1393 = vsel %vm464, %v1388, %v1390
      %v1394 = vsel %vm464, %v1390, %v1392
      %v1398 = vsel %vm380, %v1294, 0
      %1400 = vmatprep.subr.mxu0 %v1394
      %1401 = vmatpush1.msra.mxu0 %v1393
      %1402 = vmatprep.subr.mxu0 0.0
      %1403 = vmatpush1.msra.mxu0 0.0
      %1404 = vmatprep.subr.mxu0 0.0
      %1405 = vmatpush1.msra.mxu0 0.0
      %1406 = vmatprep.subr.mxu0 0.0
      %1407 = vmatpush1.msra.mxu0 0.0
      %1408 = vmatprep.subr.mxu0 0.0
      %1409 = vmatpush1.msra.mxu0 0.0
      %1410 = vmatprep.subr.mxu0 0.0
      %1411 = vmatpush1.msra.mxu0 0.0
      %1412 = vmatprep.subr.mxu0 0.0
      %1413 = vmatpush1.msra.mxu0 0.0
      %1414 = vmatprep.subr.mxu0 0.0
      %1415 = vmatpush1.msra.mxu0 0.0
      %1416 = vmatprep.subr.mxu0 0.0
      %1417 = vmatpush1.msra.mxu0 0.0
      %1418 = vmatprep.subr.mxu0 0.0
      %1419 = vmatpush1.msra.mxu0 0.0
      %1420 = vmatprep.subr.mxu0 0.0
      %1421 = vmatpush1.msra.mxu0 0.0
      %1422 = vmatprep.subr.mxu0 0.0
      %1423 = vmatpush1.msra.mxu0 0.0
      %1424 = vmatprep.subr.mxu0 0.0
      %1425 = vmatpush1.msra.mxu0 0.0
      %1426 = vmatprep.subr.mxu0 0.0
      %1427 = vmatpush1.msra.mxu0 0.0
      %1428 = vmatprep.subr.mxu0 0.0
      %1429 = vmatpush1.msra.mxu0 0.0
      %1430 = vmatprep.subr.mxu0 0.0
      %1431 = vmatpush1.msra.mxu0 0.0
      %1432 = vmatprep.subr.mxu0 0.0
      %1433 = vmatpush1.msra.mxu0 0.0
      %1434 = vmatprep.subr.mxu0 0.0
      %1435 = vmatpush1.msra.mxu0 0.0
      %1436 = vmatprep.subr.mxu0 0.0
      %1437 = vmatpush1.msra.mxu0 0.0
      %1438 = vmatprep.subr.mxu0 0.0
      %1439 = vmatpush1.msra.mxu0 0.0
      %1440 = vmatprep.subr.mxu0 0.0
      %1441 = vmatpush1.msra.mxu0 0.0
      %1442 = vmatprep.subr.mxu0 0.0
      %1443 = vmatpush1.msra.mxu0 0.0
      %1444 = vmatprep.subr.mxu0 0.0
      %1445 = vmatpush1.msra.mxu0 0.0
      %1446 = vmatprep.subr.mxu0 0.0
      %1447 = vmatpush1.msra.mxu0 0.0
      %1448 = vmatprep.subr.mxu0 0.0
      %1449 = vmatpush1.msra.mxu0 0.0
      %1450 = vmatprep.subr.mxu0 0.0
      %1451 = vmatpush1.msra.mxu0 0.0
      %1452 = vmatprep.subr.mxu0 0.0
      %1453 = vmatpush1.msra.mxu0 0.0
      %1454 = vmatprep.subr.mxu0 0.0
      %1455 = vmatpush1.msra.mxu0 0.0
      %1456 = vmatprep.subr.mxu0 0.0
      %1457 = vmatpush1.msra.mxu0 0.0
      %1458 = vmatprep.subr.mxu0 0.0
      %1459 = vmatpush1.msra.mxu0 0.0
      %1460 = vmatprep.subr.mxu0 0.0
      %1461 = vmatpush1.msra.mxu0 0.0
      %1462 = vmatprep.subr.mxu0 0.0
      %1463 = vmatpush1.msra.mxu0 0.0
      %1464 = vmatprep.mubr.f32.mxu0 0.0
      %1465 = vmatmul.mubr.f32.gmra.mrb[0].mxu0 %v1398
      %v1466 = vpop.f32.mrb[0].mxu0
      %v1467 = vadd.f32 %v1380, %v1466
      %v1468 = vpop.f32.mrb[0].mxu0
      %v1469 = vadd.f32 %v1382, %v1468
      %1470 = vdwg.mxu0
      %v1471 = vmul.f32 %v1287, %v553
      %v1472 = vmul.f32 %v1288, %v557
      %v1473 = vmul.f32 %v1289, %v555
      %s1474 = scalar_lea.vmem %s2, 88
      %v1475 = vld [vmem:[%s1474] sm:$0xff]
      %1479 = vrot.lane.b32.xlu0 %v1471, 15
      %v1480 = vpop.permute.xlu0 %1479
      %1481 = vrot.lane.b32.xlu0 %v1472, 15
      %v1482 = vpop.permute.xlu0 %1481
      %1483 = vrot.lane.b32.xlu0 %v1473, 15
      %v1484 = vpop.permute.xlu0 %1483
      %v1485 = vsel %vm575, %v1480, %v1482
      %v1486 = vsel %vm575, %v1482, %v1484
      %v1490 = vsel %vm380, %v1475, 0
      %1492 = vmatprep.subr.mxu0 %v1486
      %1493 = vmatpush1.msra.mxu0 %v1485
      %1494 = vmatprep.subr.mxu0 0.0
      %1495 = vmatpush1.msra.mxu0 0.0
      %1496 = vmatprep.subr.mxu0 0.0
      %1497 = vmatpush1.msra.mxu0 0.0
      %1498 = vmatprep.subr.mxu0 0.0
      %1499 = vmatpush1.msra.mxu0 0.0
      %1500 = vmatprep.subr.mxu0 0.0
      %1501 = vmatpush1.msra.mxu0 0.0
      %1502 = vmatprep.subr.mxu0 0.0
      %1503 = vmatpush1.msra.mxu0 0.0
      %1504 = vmatprep.subr.mxu0 0.0
      %1505 = vmatpush1.msra.mxu0 0.0
      %1506 = vmatprep.subr.mxu0 0.0
      %1507 = vmatpush1.msra.mxu0 0.0
      %1508 = vmatprep.subr.mxu0 0.0
      %1509 = vmatpush1.msra.mxu0 0.0
      %1510 = vmatprep.subr.mxu0 0.0
      %1511 = vmatpush1.msra.mxu0 0.0
      %1512 = vmatprep.subr.mxu0 0.0
      %1513 = vmatpush1.msra.mxu0 0.0
      %1514 = vmatprep.subr.mxu0 0.0
      %1515 = vmatpush1.msra.mxu0 0.0
      %1516 = vmatprep.subr.mxu0 0.0
      %1517 = vmatpush1.msra.mxu0 0.0
      %1518 = vmatprep.subr.mxu0 0.0
      %1519 = vmatpush1.msra.mxu0 0.0
      %1520 = vmatprep.subr.mxu0 0.0
      %1521 = vmatpush1.msra.mxu0 0.0
      %1522 = vmatprep.subr.mxu0 0.0
      %1523 = vmatpush1.msra.mxu0 0.0
      %1524 = vmatprep.subr.mxu0 0.0
      %1525 = vmatpush1.msra.mxu0 0.0
      %1526 = vmatprep.subr.mxu0 0.0
      %1527 = vmatpush1.msra.mxu0 0.0
      %1528 = vmatprep.subr.mxu0 0.0
      %1529 = vmatpush1.msra.mxu0 0.0
      %1530 = vmatprep.subr.mxu0 0.0
      %1531 = vmatpush1.msra.mxu0 0.0
      %1532 = vmatprep.subr.mxu0 0.0
      %1533 = vmatpush1.msra.mxu0 0.0
      %1534 = vmatprep.subr.mxu0 0.0
      %1535 = vmatpush1.msra.mxu0 0.0
      %1536 = vmatprep.subr.mxu0 0.0
      %1537 = vmatpush1.msra.mxu0 0.0
      %1538 = vmatprep.subr.mxu0 0.0
      %1539 = vmatpush1.msra.mxu0 0.0
      %1540 = vmatprep.subr.mxu0 0.0
      %1541 = vmatpush1.msra.mxu0 0.0
      %1542 = vmatprep.subr.mxu0 0.0
      %1543 = vmatpush1.msra.mxu0 0.0
      %1544 = vmatprep.subr.mxu0 0.0
      %1545 = vmatpush1.msra.mxu0 0.0
      %1546 = vmatprep.subr.mxu0 0.0
      %1547 = vmatpush1.msra.mxu0 0.0
      %1548 = vmatprep.subr.mxu0 0.0
      %1549 = vmatpush1.msra.mxu0 0.0
      %1550 = vmatprep.subr.mxu0 0.0
      %1551 = vmatpush1.msra.mxu0 0.0
      %1552 = vmatprep.subr.mxu0 0.0
      %1553 = vmatpush1.msra.mxu0 0.0
      %1554 = vmatprep.subr.mxu0 0.0
      %1555 = vmatpush1.msra.mxu0 0.0
      %1556 = vmatprep.mubr.f32.mxu0 0.0
      %1557 = vmatmul.mubr.f32.gmra.mrb[0].mxu0 %v1490
      %v1558 = vpop.f32.mrb[0].mxu0
      %v1559 = vadd.f32 0.0, %v1558
      %v1560 = vpop.f32.mrb[0].mxu0
      %v1561 = vadd.f32 0.0, %v1560
      %1562 = vdwg.mxu0
      %v1563 = vadd.f32 %v1467, %v1559
      %v1564 = vadd.f32 %v1469, %v1561
      %v1565 = vmul.f32 %v1287, %v666
      %v1566 = vmul.f32 %v1288, %v670
      %v1567 = vmul.f32 %v1289, %v668
      %s1568 = scalar_lea.vmem %s2, 96
      %v1569 = vld [vmem:[%s1568] sm:$0xff]
      %1573 = vrot.lane.b32.xlu0 %v1565, 1
      %v1574 = vpop.permute.xlu0 %1573
      %1575 = vrot.lane.b32.xlu0 %v1566, 1
      %v1576 = vpop.permute.xlu0 %1575
      %1577 = vrot.lane.b32.xlu0 %v1567, 1
      %v1578 = vpop.permute.xlu0 %1577
      %v1579 = vsel %vm688, %v1574, %v1576
      %v1580 = vsel %vm688, %v1576, %v1578
      %v1584 = vsel %vm380, %v1569, 0
      %1586 = vmatprep.subr.mxu0 %v1580
      %1587 = vmatpush1.msra.mxu0 %v1579
      %1588 = vmatprep.subr.mxu0 0.0
      %1589 = vmatpush1.msra.mxu0 0.0
      %1590 = vmatprep.subr.mxu0 0.0
      %1591 = vmatpush1.msra.mxu0 0.0
      %1592 = vmatprep.subr.mxu0 0.0
      %1593 = vmatpush1.msra.mxu0 0.0
      %1594 = vmatprep.subr.mxu0 0.0
      %1595 = vmatpush1.msra.mxu0 0.0
      %1596 = vmatprep.subr.mxu0 0.0
      %1597 = vmatpush1.msra.mxu0 0.0
      %1598 = vmatprep.subr.mxu0 0.0
      %1599 = vmatpush1.msra.mxu0 0.0
      %1600 = vmatprep.subr.mxu0 0.0
      %1601 = vmatpush1.msra.mxu0 0.0
      %1602 = vmatprep.subr.mxu0 0.0
      %1603 = vmatpush1.msra.mxu0 0.0
      %1604 = vmatprep.subr.mxu0 0.0
      %1605 = vmatpush1.msra.mxu0 0.0
      %1606 = vmatprep.subr.mxu0 0.0
      %1607 = vmatpush1.msra.mxu0 0.0
      %1608 = vmatprep.subr.mxu0 0.0
      %1609 = vmatpush1.msra.mxu0 0.0
      %1610 = vmatprep.subr.mxu0 0.0
      %1611 = vmatpush1.msra.mxu0 0.0
      %1612 = vmatprep.subr.mxu0 0.0
      %1613 = vmatpush1.msra.mxu0 0.0
      %1614 = vmatprep.subr.mxu0 0.0
      %1615 = vmatpush1.msra.mxu0 0.0
      %1616 = vmatprep.subr.mxu0 0.0
      %1617 = vmatpush1.msra.mxu0 0.0
      %1618 = vmatprep.subr.mxu0 0.0
      %1619 = vmatpush1.msra.mxu0 0.0
      %1620 = vmatprep.subr.mxu0 0.0
      %1621 = vmatpush1.msra.mxu0 0.0
      %1622 = vmatprep.subr.mxu0 0.0
      %1623 = vmatpush1.msra.mxu0 0.0
      %1624 = vmatprep.subr.mxu0 0.0
      %1625 = vmatpush1.msra.mxu0 0.0
      %1626 = vmatprep.subr.mxu0 0.0
      %1627 = vmatpush1.msra.mxu0 0.0
      %1628 = vmatprep.subr.mxu0 0.0
      %1629 = vmatpush1.msra.mxu0 0.0
      %1630 = vmatprep.subr.mxu0 0.0
      %1631 = vmatpush1.msra.mxu0 0.0
      %1632 = vmatprep.subr.mxu0 0.0
      %1633 = vmatpush1.msra.mxu0 0.0
      %1634 = vmatprep.subr.mxu0 0.0
      %1635 = vmatpush1.msra.mxu0 0.0
      %1636 = vmatprep.subr.mxu0 0.0
      %1637 = vmatpush1.msra.mxu0 0.0
      %1638 = vmatprep.subr.mxu0 0.0
      %1639 = vmatpush1.msra.mxu0 0.0
      %1640 = vmatprep.subr.mxu0 0.0
      %1641 = vmatpush1.msra.mxu0 0.0
      %1642 = vmatprep.subr.mxu0 0.0
      %1643 = vmatpush1.msra.mxu0 0.0
      %1644 = vmatprep.subr.mxu0 0.0
      %1645 = vmatpush1.msra.mxu0 0.0
      %1646 = vmatprep.subr.mxu0 0.0
      %1647 = vmatpush1.msra.mxu0 0.0
      %1648 = vmatprep.subr.mxu0 0.0
      %1649 = vmatpush1.msra.mxu0 0.0
      %1650 = vmatprep.mubr.f32.mxu0 0.0
      %1651 = vmatmul.mubr.f32.gmra.mrb[0].mxu0 %v1584
      %v1652 = vpop.f32.mrb[0].mxu0
      %v1653 = vadd.f32 0.0, %v1652
      %v1654 = vpop.f32.mrb[0].mxu0
      %v1655 = vadd.f32 0.0, %v1654
      %1656 = vdwg.mxu0
      %v1657 = vadd.f32 %v1563, %v1653
      %v1658 = vadd.f32 %v1564, %v1655
      %s1659 = scalar_lea.vmem %s2, 104
      %v1660 = vld [vmem:[%s1659] sm:$0xff]
      %v1662 = vsel %vm380, %v1660, 0
      %1664 = vmatprep.subr.mxu0 %v1289
      %1665 = vmatpush1.msra.mxu0 %v1288
      %1666 = vmatprep.subr.mxu0 0.0
      %1667 = vmatpush1.msra.mxu0 0.0
      %1668 = vmatprep.subr.mxu0 0.0
      %1669 = vmatpush1.msra.mxu0 0.0
      %1670 = vmatprep.subr.mxu0 0.0
      %1671 = vmatpush1.msra.mxu0 0.0
      %1672 = vmatprep.subr.mxu0 0.0
      %1673 = vmatpush1.msra.mxu0 0.0
      %1674 = vmatprep.subr.mxu0 0.0
      %1675 = vmatpush1.msra.mxu0 0.0
      %1676 = vmatprep.subr.mxu0 0.0
      %1677 = vmatpush1.msra.mxu0 0.0
      %1678 = vmatprep.subr.mxu0 0.0
      %1679 = vmatpush1.msra.mxu0 0.0
      %1680 = vmatprep.subr.mxu0 0.0
      %1681 = vmatpush1.msra.mxu0 0.0
      %1682 = vmatprep.subr.mxu0 0.0
      %1683 = vmatpush1.msra.mxu0 0.0
      %1684 = vmatprep.subr.mxu0 0.0
      %1685 = vmatpush1.msra.mxu0 0.0
      %1686 = vmatprep.subr.mxu0 0.0
      %1687 = vmatpush1.msra.mxu0 0.0
      %1688 = vmatprep.subr.mxu0 0.0
      %1689 = vmatpush1.msra.mxu0 0.0
      %1690 = vmatprep.subr.mxu0 0.0
      %1691 = vmatpush1.msra.mxu0 0.0
      %1692 = vmatprep.subr.mxu0 0.0
      %1693 = vmatpush1.msra.mxu0 0.0
      %1694 = vmatprep.subr.mxu0 0.0
      %1695 = vmatpush1.msra.mxu0 0.0
      %1696 = vmatprep.subr.mxu0 0.0
      %1697 = vmatpush1.msra.mxu0 0.0
      %1698 = vmatprep.subr.mxu0 0.0
      %1699 = vmatpush1.msra.mxu0 0.0
      %1700 = vmatprep.subr.mxu0 0.0
      %1701 = vmatpush1.msra.mxu0 0.0
      %1702 = vmatprep.subr.mxu0 0.0
      %1703 = vmatpush1.msra.mxu0 0.0
      %1704 = vmatprep.subr.mxu0 0.0
      %1705 = vmatpush1.msra.mxu0 0.0
      %1706 = vmatprep.subr.mxu0 0.0
      %1707 = vmatpush1.msra.mxu0 0.0
      %1708 = vmatprep.subr.mxu0 0.0
      %1709 = vmatpush1.msra.mxu0 0.0
      %1710 = vmatprep.subr.mxu0 0.0
      %1711 = vmatpush1.msra.mxu0 0.0
      %1712 = vmatprep.subr.mxu0 0.0
      %1713 = vmatpush1.msra.mxu0 0.0
      %1714 = vmatprep.subr.mxu0 0.0
      %1715 = vmatpush1.msra.mxu0 0.0
      %1716 = vmatprep.subr.mxu0 0.0
      %1717 = vmatpush1.msra.mxu0 0.0
      %1718 = vmatprep.subr.mxu0 0.0
      %1719 = vmatpush1.msra.mxu0 0.0
      %1720 = vmatprep.subr.mxu0 0.0
      %1721 = vmatpush1.msra.mxu0 0.0
      %1722 = vmatprep.subr.mxu0 0.0
      %1723 = vmatpush1.msra.mxu0 0.0
      %1724 = vmatprep.subr.mxu0 0.0
      %1725 = vmatpush1.msra.mxu0 0.0
      %1726 = vmatprep.subr.mxu0 0.0
      %1727 = vmatpush1.msra.mxu0 0.0
      %1728 = vmatprep.mubr.f32.mxu0 0.0
      %1729 = vmatmul.mubr.f32.gmra.mrb[0].mxu0 %v1662
      %v1730 = vpop.f32.mrb[0].mxu0
      %v1731 = vadd.f32 0.0, %v1730
      %v1732 = vpop.f32.mrb[0].mxu0
      %v1733 = vadd.f32 0.0, %v1732
      %1734 = vdwg.mxu0
      %v1735 = vadd.f32 %v1657, %v1731
      %v1736 = vadd.f32 %v1658, %v1733
      %v1737 = vld [vmem:[#allocation3 + $0x8] sm:$0xff]
      %v1738 = vld [vmem:[#allocation3 + $0x10] sm:$0xff]
      %v1739 = vld [vmem:[#allocation3 + $0x18] sm:$0xff]
      %v1740 = vmul.f32 %v1737, %v860
      %v1741 = vmul.f32 %v1738, %v863
      %v1742 = vmul.f32 %v1739, %v862
      %s1743 = scalar_lea.vmem %s2, 112
      %v1744 = vld [vmem:[%s1743] sm:$0xff]
      %1748 = vrot.lane.b32.xlu0 %v1740, 127
      %v1749 = vpop.permute.xlu0 %1748
      %1750 = vrot.lane.b32.xlu0 %v1741, 127
      %v1751 = vpop.permute.xlu0 %1750
      %1752 = vrot.lane.b32.xlu0 %v1742, 127
      %v1753 = vpop.permute.xlu0 %1752
      %v1754 = vsel %vm669, %v1749, %v1751
      %v1755 = vsel %vm669, %v1751, %v1753
      %v1759 = vsel %vm380, %v1744, 0
      %1761 = vmatprep.subr.mxu0 %v1755
      %1762 = vmatpush1.msra.mxu0 %v1754
      %1763 = vmatprep.subr.mxu0 0.0
      %1764 = vmatpush1.msra.mxu0 0.0
      %1765 = vmatprep.subr.mxu0 0.0
      %1766 = vmatpush1.msra.mxu0 0.0
      %1767 = vmatprep.subr.mxu0 0.0
      %1768 = vmatpush1.msra.mxu0 0.0
      %1769 = vmatprep.subr.mxu0 0.0
      %1770 = vmatpush1.msra.mxu0 0.0
      %1771 = vmatprep.subr.mxu0 0.0
      %1772 = vmatpush1.msra.mxu0 0.0
      %1773 = vmatprep.subr.mxu0 0.0
      %1774 = vmatpush1.msra.mxu0 0.0
      %1775 = vmatprep.subr.mxu0 0.0
      %1776 = vmatpush1.msra.mxu0 0.0
      %1777 = vmatprep.subr.mxu0 0.0
      %1778 = vmatpush1.msra.mxu0 0.0
      %1779 = vmatprep.subr.mxu0 0.0
      %1780 = vmatpush1.msra.mxu0 0.0
      %1781 = vmatprep.subr.mxu0 0.0
      %1782 = vmatpush1.msra.mxu0 0.0
      %1783 = vmatprep.subr.mxu0 0.0
      %1784 = vmatpush1.msra.mxu0 0.0
      %1785 = vmatprep.subr.mxu0 0.0
      %1786 = vmatpush1.msra.mxu0 0.0
      %1787 = vmatprep.subr.mxu0 0.0
      %1788 = vmatpush1.msra.mxu0 0.0
      %1789 = vmatprep.subr.mxu0 0.0
      %1790 = vmatpush1.msra.mxu0 0.0
      %1791 = vmatprep.subr.mxu0 0.0
      %1792 = vmatpush1.msra.mxu0 0.0
      %1793 = vmatprep.subr.mxu0 0.0
      %1794 = vmatpush1.msra.mxu0 0.0
      %1795 = vmatprep.subr.mxu0 0.0
      %1796 = vmatpush1.msra.mxu0 0.0
      %1797 = vmatprep.subr.mxu0 0.0
      %1798 = vmatpush1.msra.mxu0 0.0
      %1799 = vmatprep.subr.mxu0 0.0
      %1800 = vmatpush1.msra.mxu0 0.0
      %1801 = vmatprep.subr.mxu0 0.0
      %1802 = vmatpush1.msra.mxu0 0.0
      %1803 = vmatprep.subr.mxu0 0.0
      %1804 = vmatpush1.msra.mxu0 0.0
      %1805 = vmatprep.subr.mxu0 0.0
      %1806 = vmatpush1.msra.mxu0 0.0
      %1807 = vmatprep.subr.mxu0 0.0
      %1808 = vmatpush1.msra.mxu0 0.0
      %1809 = vmatprep.subr.mxu0 0.0
      %1810 = vmatpush1.msra.mxu0 0.0
      %1811 = vmatprep.subr.mxu0 0.0
      %1812 = vmatpush1.msra.mxu0 0.0
      %1813 = vmatprep.subr.mxu0 0.0
      %1814 = vmatpush1.msra.mxu0 0.0
      %1815 = vmatprep.subr.mxu0 0.0
      %1816 = vmatpush1.msra.mxu0 0.0
      %1817 = vmatprep.subr.mxu0 0.0
      %1818 = vmatpush1.msra.mxu0 0.0
      %1819 = vmatprep.subr.mxu0 0.0
      %1820 = vmatpush1.msra.mxu0 0.0
      %1821 = vmatprep.subr.mxu0 0.0
      %1822 = vmatpush1.msra.mxu0 0.0
      %1823 = vmatprep.subr.mxu0 0.0
      %1824 = vmatpush1.msra.mxu0 0.0
      %1825 = vmatprep.mubr.f32.mxu0 0.0
      %1826 = vmatmul.mubr.f32.gmra.mrb[0].mxu0 %v1759
      %v1827 = vpop.f32.mrb[0].mxu0
      %v1828 = vadd.f32 0.0, %v1827
      %v1829 = vpop.f32.mrb[0].mxu0
      %v1830 = vadd.f32 0.0, %v1829
      %1831 = vdwg.mxu0
      %v1832 = vadd.f32 %v1735, %v1828
      %v1833 = vadd.f32 %v1736, %v1830
      %v1834 = vmul.f32 %v1737, %v971
      %v1835 = vmul.f32 %v1738, %v974
      %v1836 = vmul.f32 %v1739, %v973
      %s1837 = scalar_lea.vmem %s2, 120
      %v1838 = vld [vmem:[%s1837] sm:$0xff]
      %1842 = vrot.lane.b32.xlu0 %v1834, 113
      %v1843 = vpop.permute.xlu0 %1842
      %1844 = vrot.lane.b32.xlu0 %v1835, 113
      %v1845 = vpop.permute.xlu0 %1844
      %1846 = vrot.lane.b32.xlu0 %v1836, 113
      %v1847 = vpop.permute.xlu0 %1846
      %v1848 = vsel %vm556, %v1843, %v1845
      %v1849 = vsel %vm556, %v1845, %v1847
      %v1853 = vsel %vm380, %v1838, 0
      %1855 = vmatprep.subr.mxu0 %v1849
      %1856 = vmatpush1.msra.mxu0 %v1848
      %1857 = vmatprep.subr.mxu0 0.0
      %1858 = vmatpush1.msra.mxu0 0.0
      %1859 = vmatprep.subr.mxu0 0.0
      %1860 = vmatpush1.msra.mxu0 0.0
      %1861 = vmatprep.subr.mxu0 0.0
      %1862 = vmatpush1.msra.mxu0 0.0
      %1863 = vmatprep.subr.mxu0 0.0
      %1864 = vmatpush1.msra.mxu0 0.0
      %1865 = vmatprep.subr.mxu0 0.0
      %1866 = vmatpush1.msra.mxu0 0.0
      %1867 = vmatprep.subr.mxu0 0.0
      %1868 = vmatpush1.msra.mxu0 0.0
      %1869 = vmatprep.subr.mxu0 0.0
      %1870 = vmatpush1.msra.mxu0 0.0
      %1871 = vmatprep.subr.mxu0 0.0
      %1872 = vmatpush1.msra.mxu0 0.0
      %1873 = vmatprep.subr.mxu0 0.0
      %1874 = vmatpush1.msra.mxu0 0.0
      %1875 = vmatprep.subr.mxu0 0.0
      %1876 = vmatpush1.msra.mxu0 0.0
      %1877 = vmatprep.subr.mxu0 0.0
      %1878 = vmatpush1.msra.mxu0 0.0
      %1879 = vmatprep.subr.mxu0 0.0
      %1880 = vmatpush1.msra.mxu0 0.0
      %1881 = vmatprep.subr.mxu0 0.0
      %1882 = vmatpush1.msra.mxu0 0.0
      %1883 = vmatprep.subr.mxu0 0.0
      %1884 = vmatpush1.msra.mxu0 0.0
      %1885 = vmatprep.subr.mxu0 0.0
      %1886 = vmatpush1.msra.mxu0 0.0
      %1887 = vmatprep.subr.mxu0 0.0
      %1888 = vmatpush1.msra.mxu0 0.0
      %1889 = vmatprep.subr.mxu0 0.0
      %1890 = vmatpush1.msra.mxu0 0.0
      %1891 = vmatprep.subr.mxu0 0.0
      %1892 = vmatpush1.msra.mxu0 0.0
      %1893 = vmatprep.subr.mxu0 0.0
      %1894 = vmatpush1.msra.mxu0 0.0
      %1895 = vmatprep.subr.mxu0 0.0
      %1896 = vmatpush1.msra.mxu0 0.0
      %1897 = vmatprep.subr.mxu0 0.0
      %1898 = vmatpush1.msra.mxu0 0.0
      %1899 = vmatprep.subr.mxu0 0.0
      %1900 = vmatpush1.msra.mxu0 0.0
      %1901 = vmatprep.subr.mxu0 0.0
      %1902 = vmatpush1.msra.mxu0 0.0
      %1903 = vmatprep.subr.mxu0 0.0
      %1904 = vmatpush1.msra.mxu0 0.0
      %1905 = vmatprep.subr.mxu0 0.0
      %1906 = vmatpush1.msra.mxu0 0.0
      %1907 = vmatprep.subr.mxu0 0.0
      %1908 = vmatpush1.msra.mxu0 0.0
      %1909 = vmatprep.subr.mxu0 0.0
      %1910 = vmatpush1.msra.mxu0 0.0
      %1911 = vmatprep.subr.mxu0 0.0
      %1912 = vmatpush1.msra.mxu0 0.0
      %1913 = vmatprep.subr.mxu0 0.0
      %1914 = vmatpush1.msra.mxu0 0.0
      %1915 = vmatprep.subr.mxu0 0.0
      %1916 = vmatpush1.msra.mxu0 0.0
      %1917 = vmatprep.subr.mxu0 0.0
      %1918 = vmatpush1.msra.mxu0 0.0
      %1919 = vmatprep.mubr.f32.mxu0 0.0
      %1920 = vmatmul.mubr.f32.gmra.mrb[0].mxu0 %v1853
      %v1921 = vpop.f32.mrb[0].mxu0
      %v1922 = vadd.f32 0.0, %v1921
      %v1923 = vpop.f32.mrb[0].mxu0
      %v1924 = vadd.f32 0.0, %v1923
      %1925 = vdwg.mxu0
      %v1926 = vadd.f32 %v1832, %v1922
      %v1927 = vadd.f32 %v1833, %v1924
      %s1928 = scalar_lea.vmem %s2, 128
      %v1929 = vld [vmem:[%s1928] sm:$0xff]
      %1933 = vrot.lane.b32.xlu0 %v1737, 112
      %v1934 = vpop.permute.xlu0 %1933
      %1935 = vrot.lane.b32.xlu0 %v1738, 112
      %v1936 = vpop.permute.xlu0 %1935
      %1937 = vrot.lane.b32.xlu0 %v1739, 112
      %v1938 = vpop.permute.xlu0 %1937
      %v1939 = vsel %vm1083, %v1934, %v1936
      %v1940 = vsel %vm1083, %v1936, %v1938
      %v1944 = vsel %vm380, %v1929, 0
      %1946 = vmatprep.subr.mxu0 %v1940
      %1947 = vmatpush1.msra.mxu0 %v1939
      %1948 = vmatprep.subr.mxu0 0.0
      %1949 = vmatpush1.msra.mxu0 0.0
      %1950 = vmatprep.subr.mxu0 0.0
      %1951 = vmatpush1.msra.mxu0 0.0
      %1952 = vmatprep.subr.mxu0 0.0
      %1953 = vmatpush1.msra.mxu0 0.0
      %1954 = vmatprep.subr.mxu0 0.0
      %1955 = vmatpush1.msra.mxu0 0.0
      %1956 = vmatprep.subr.mxu0 0.0
      %1957 = vmatpush1.msra.mxu0 0.0
      %1958 = vmatprep.subr.mxu0 0.0
      %1959 = vmatpush1.msra.mxu0 0.0
      %1960 = vmatprep.subr.mxu0 0.0
      %1961 = vmatpush1.msra.mxu0 0.0
      %1962 = vmatprep.subr.mxu0 0.0
      %1963 = vmatpush1.msra.mxu0 0.0
      %1964 = vmatprep.subr.mxu0 0.0
      %1965 = vmatpush1.msra.mxu0 0.0
      %1966 = vmatprep.subr.mxu0 0.0
      %1967 = vmatpush1.msra.mxu0 0.0
      %1968 = vmatprep.subr.mxu0 0.0
      %1969 = vmatpush1.msra.mxu0 0.0
      %1970 = vmatprep.subr.mxu0 0.0
      %1971 = vmatpush1.msra.mxu0 0.0
      %1972 = vmatprep.subr.mxu0 0.0
      %1973 = vmatpush1.msra.mxu0 0.0
      %1974 = vmatprep.subr.mxu0 0.0
      %1975 = vmatpush1.msra.mxu0 0.0
      %1976 = vmatprep.subr.mxu0 0.0
      %1977 = vmatpush1.msra.mxu0 0.0
      %1978 = vmatprep.subr.mxu0 0.0
      %1979 = vmatpush1.msra.mxu0 0.0
      %1980 = vmatprep.subr.mxu0 0.0
      %1981 = vmatpush1.msra.mxu0 0.0
      %1982 = vmatprep.subr.mxu0 0.0
      %1983 = vmatpush1.msra.mxu0 0.0
      %1984 = vmatprep.subr.mxu0 0.0
      %1985 = vmatpush1.msra.mxu0 0.0
      %1986 = vmatprep.subr.mxu0 0.0
      %1987 = vmatpush1.msra.mxu0 0.0
      %1988 = vmatprep.subr.mxu0 0.0
      %1989 = vmatpush1.msra.mxu0 0.0
      %1990 = vmatprep.subr.mxu0 0.0
      %1991 = vmatpush1.msra.mxu0 0.0
      %1992 = vmatprep.subr.mxu0 0.0
      %1993 = vmatpush1.msra.mxu0 0.0
      %1994 = vmatprep.subr.mxu0 0.0
      %1995 = vmatpush1.msra.mxu0 0.0
      %1996 = vmatprep.subr.mxu0 0.0
      %1997 = vmatpush1.msra.mxu0 0.0
      %1998 = vmatprep.subr.mxu0 0.0
      %1999 = vmatpush1.msra.mxu0 0.0
      %2000 = vmatprep.subr.mxu0 0.0
      %2001 = vmatpush1.msra.mxu0 0.0
      %2002 = vmatprep.subr.mxu0 0.0
      %2003 = vmatpush1.msra.mxu0 0.0
      %2004 = vmatprep.subr.mxu0 0.0
      %2005 = vmatpush1.msra.mxu0 0.0
      %2006 = vmatprep.subr.mxu0 0.0
      %2007 = vmatpush1.msra.mxu0 0.0
      %2008 = vmatprep.subr.mxu0 0.0
      %2009 = vmatpush1.msra.mxu0 0.0
      %2010 = vmatprep.mubr.f32.mxu0 0.0
      %2011 = vmatmul.mubr.f32.gmra.mrb[0].mxu0 %v1944
      %v2012 = vpop.f32.mrb[0].mxu0
      %v2013 = vadd.f32 0.0, %v2012
      %v2014 = vpop.f32.mrb[0].mxu0
      %v2015 = vadd.f32 0.0, %v2014
      %2016 = vdwg.mxu0
      %v2017 = vadd.f32 %v1926, %v2013
      %v2018 = vadd.f32 %v1927, %v2015
      %v2019 = vmul.f32 %v1737, %v1174
      %v2020 = vmul.f32 %v1738, %v1177
      %v2021 = vmul.f32 %v1739, %v1176
      %s2022 = scalar_lea.vmem %s2, 136
      %v2023 = vld [vmem:[%s2022] sm:$0xff]
      %2027 = vrot.lane.b32.xlu0 %v2019, 111
      %v2028 = vpop.permute.xlu0 %2027
      %2029 = vrot.lane.b32.xlu0 %v2020, 111
      %v2030 = vpop.permute.xlu0 %2029
      %2031 = vrot.lane.b32.xlu0 %v2021, 111
      %v2032 = vpop.permute.xlu0 %2031
      %v2033 = vsel %vm355, %v2028, %v2030
      %v2034 = vsel %vm355, %v2030, %v2032
      %v2038 = vsel %vm380, %v2023, 0
      %2040 = vmatprep.subr.mxu0 %v2034
      %2041 = vmatpush1.msra.mxu0 %v2033
      %2042 = vmatprep.subr.mxu0 0.0
      %2043 = vmatpush1.msra.mxu0 0.0
      %2044 = vmatprep.subr.mxu0 0.0
      %2045 = vmatpush1.msra.mxu0 0.0
      %2046 = vmatprep.subr.mxu0 0.0
      %2047 = vmatpush1.msra.mxu0 0.0
      %2048 = vmatprep.subr.mxu0 0.0
      %2049 = vmatpush1.msra.mxu0 0.0
      %2050 = vmatprep.subr.mxu0 0.0
      %2051 = vmatpush1.msra.mxu0 0.0
      %2052 = vmatprep.subr.mxu0 0.0
      %2053 = vmatpush1.msra.mxu0 0.0
      %2054 = vmatprep.subr.mxu0 0.0
      %2055 = vmatpush1.msra.mxu0 0.0
      %2056 = vmatprep.subr.mxu0 0.0
      %2057 = vmatpush1.msra.mxu0 0.0
      %2058 = vmatprep.subr.mxu0 0.0
      %2059 = vmatpush1.msra.mxu0 0.0
      %2060 = vmatprep.subr.mxu0 0.0
      %2061 = vmatpush1.msra.mxu0 0.0
      %2062 = vmatprep.subr.mxu0 0.0
      %2063 = vmatpush1.msra.mxu0 0.0
      %2064 = vmatprep.subr.mxu0 0.0
      %2065 = vmatpush1.msra.mxu0 0.0
      %2066 = vmatprep.subr.mxu0 0.0
      %2067 = vmatpush1.msra.mxu0 0.0
      %2068 = vmatprep.subr.mxu0 0.0
      %2069 = vmatpush1.msra.mxu0 0.0
      %2070 = vmatprep.subr.mxu0 0.0
      %2071 = vmatpush1.msra.mxu0 0.0
      %2072 = vmatprep.subr.mxu0 0.0
      %2073 = vmatpush1.msra.mxu0 0.0
      %2074 = vmatprep.subr.mxu0 0.0
      %2075 = vmatpush1.msra.mxu0 0.0
      %2076 = vmatprep.subr.mxu0 0.0
      %2077 = vmatpush1.msra.mxu0 0.0
      %2078 = vmatprep.subr.mxu0 0.0
      %2079 = vmatpush1.msra.mxu0 0.0
      %2080 = vmatprep.subr.mxu0 0.0
      %2081 = vmatpush1.msra.mxu0 0.0
      %2082 = vmatprep.subr.mxu0 0.0
      %2083 = vmatpush1.msra.mxu0 0.0
      %2084 = vmatprep.subr.mxu0 0.0
      %2085 = vmatpush1.msra.mxu0 0.0
      %2086 = vmatprep.subr.mxu0 0.0
      %2087 = vmatpush1.msra.mxu0 0.0
      %2088 = vmatprep.subr.mxu0 0.0
      %2089 = vmatpush1.msra.mxu0 0.0
      %2090 = vmatprep.subr.mxu0 0.0
      %2091 = vmatpush1.msra.mxu0 0.0
      %2092 = vmatprep.subr.mxu0 0.0
      %2093 = vmatpush1.msra.mxu0 0.0
      %2094 = vmatprep.subr.mxu0 0.0
      %2095 = vmatpush1.msra.mxu0 0.0
      %2096 = vmatprep.subr.mxu0 0.0
      %2097 = vmatpush1.msra.mxu0 0.0
      %2098 = vmatprep.subr.mxu0 0.0
      %2099 = vmatpush1.msra.mxu0 0.0
      %2100 = vmatprep.subr.mxu0 0.0
      %2101 = vmatpush1.msra.mxu0 0.0
      %2102 = vmatprep.subr.mxu0 0.0
      %2103 = vmatpush1.msra.mxu0 0.0
      %2104 = vmatprep.mubr.f32.mxu0 0.0
      %2105 = vmatmul.mubr.f32.gmra.mrb[0].mxu0 %v2038
      %v2106 = vpop.f32.mrb[0].mxu0
      %v2107 = vadd.f32 0.0, %v2106
      %v2108 = vpop.f32.mrb[0].mxu0
      %v2109 = vadd.f32 0.0, %v2108
      %2110 = vdwg.mxu0
      %v2111 = vadd.f32 %v2017, %v2107
      %v2112 = vadd.f32 %v2018, %v2109
      %s2113 = scalar_lea.vmem %s3, 8
      %v2114 = vld [vmem:[%s2113] sm:$0xff]
      %2116 = vset.pattern.permute.xlu0 0
      %2117 = vperm.xlu0 %2116, %v2114
      %v2118 = vpop.permute.xlu0 %2117
      %v2120 = vadd.f32 %v2111, %v2118
      %v2121 = vadd.f32 %v2112, %v2118
      %v2122 = vmax.f32 %v2120, 0.0
      %v2123 = vmax.f32 %v2121, 0.0
      %2124 = vst [vmem:[#allocation4 + $0x8] sm:$0xff] %v2122
      %2125 = vst [vmem:[#allocation4 + $0x10] sm:$0xff] %v2123
      %v2126 = vld [vmem:[#allocation4] sm:$0xff]
      %v2127 = vld [vmem:[#allocation4 + $0x8] sm:$0xff]
      %v2128 = vld [vmem:[#allocation4 + $0x10] sm:$0xff]
      %v2129 = vmul.f32 %v2126, %v352
      %v2130 = vmul.f32 %v2127, %v356
      %v2131 = vmul.f32 %v2128, %v354
      %s2132 = scalar_lea.vmem %s2, 144
      %v2133 = vld [vmem:[%s2132] sm:$0xff]
      %s2134 = scalar_lea.vmem %s2, 152
      %v2135 = vld [vmem:[%s2134] sm:$0xff]
      %2139 = vrot.lane.b32.xlu0 %v2126, 16
      %v2140 = vpop.permute.xlu0 %2139
      %2141 = vrot.lane.b32.xlu0 %v2127, 16
      %v2142 = vpop.permute.xlu0 %2141
      %2143 = vrot.lane.b32.xlu0 %v2128, 16
      %v2144 = vpop.permute.xlu0 %2143
      %v2145 = vsel %vm375, %v2140, %v2142
      %v2146 = vsel %vm375, %v2142, %v2144
      %v2150 = vsel %vm380, %v2135, 0
      %2152 = vmatprep.subr.mxu0 %v2146
      %2153 = vmatpush1.msra.mxu0 %v2145
      %2154 = vmatprep.subr.mxu0 0.0
      %2155 = vmatpush1.msra.mxu0 0.0
      %2156 = vmatprep.subr.mxu0 0.0
      %2157 = vmatpush1.msra.mxu0 0.0
      %2158 = vmatprep.subr.mxu0 0.0
      %2159 = vmatpush1.msra.mxu0 0.0
      %2160 = vmatprep.subr.mxu0 0.0
      %2161 = vmatpush1.msra.mxu0 0.0
      %2162 = vmatprep.subr.mxu0 0.0
      %2163 = vmatpush1.msra.mxu0 0.0
      %2164 = vmatprep.subr.mxu0 0.0
      %2165 = vmatpush1.msra.mxu0 0.0
      %2166 = vmatprep.subr.mxu0 0.0
      %2167 = vmatpush1.msra.mxu0 0.0
      %2168 = vmatprep.subr.mxu0 0.0
      %2169 = vmatpush1.msra.mxu0 0.0
      %2170 = vmatprep.subr.mxu0 0.0
      %2171 = vmatpush1.msra.mxu0 0.0
      %2172 = vmatprep.subr.mxu0 0.0
      %2173 = vmatpush1.msra.mxu0 0.0
      %2174 = vmatprep.subr.mxu0 0.0
      %2175 = vmatpush1.msra.mxu0 0.0
      %2176 = vmatprep.subr.mxu0 0.0
      %2177 = vmatpush1.msra.mxu0 0.0
      %2178 = vmatprep.subr.mxu0 0.0
      %2179 = vmatpush1.msra.mxu0 0.0
      %2180 = vmatprep.subr.mxu0 0.0
      %2181 = vmatpush1.msra.mxu0 0.0
      %2182 = vmatprep.subr.mxu0 0.0
      %2183 = vmatpush1.msra.mxu0 0.0
      %2184 = vmatprep.subr.mxu0 0.0
      %2185 = vmatpush1.msra.mxu0 0.0
      %2186 = vmatprep.subr.mxu0 0.0
      %2187 = vmatpush1.msra.mxu0 0.0
      %2188 = vmatprep.subr.mxu0 0.0
      %2189 = vmatpush1.msra.mxu0 0.0
      %2190 = vmatprep.subr.mxu0 0.0
      %2191 = vmatpush1.msra.mxu0 0.0
      %2192 = vmatprep.subr.mxu0 0.0
      %2193 = vmatpush1.msra.mxu0 0.0
      %2194 = vmatprep.subr.mxu0 0.0
      %2195 = vmatpush1.msra.mxu0 0.0
      %2196 = vmatprep.subr.mxu0 0.0
      %2197 = vmatpush1.msra.mxu0 0.0
      %2198 = vmatprep.subr.mxu0 0.0
      %2199 = vmatpush1.msra.mxu0 0.0
      %2200 = vmatprep.subr.mxu0 0.0
      %2201 = vmatpush1.msra.mxu0 0.0
      %2202 = vmatprep.subr.mxu0 0.0
      %2203 = vmatpush1.msra.mxu0 0.0
      %2204 = vmatprep.subr.mxu0 0.0
      %2205 = vmatpush1.msra.mxu0 0.0
      %2206 = vmatprep.subr.mxu0 0.0
      %2207 = vmatpush1.msra.mxu0 0.0
      %2208 = vmatprep.subr.mxu0 0.0
      %2209 = vmatpush1.msra.mxu0 0.0
      %2210 = vmatprep.subr.mxu0 0.0
      %2211 = vmatpush1.msra.mxu0 0.0
      %2212 = vmatprep.subr.mxu0 0.0
      %2213 = vmatpush1.msra.mxu0 0.0
      %2214 = vmatprep.subr.mxu0 0.0
      %2215 = vmatpush1.msra.mxu0 0.0
      %2216 = vmatprep.mubr.f32.mxu0 0.0
      %2217 = vmatmul.mubr.f32.gmra.mrb[0].mxu0 %v2150
      %v2218 = vpop.f32.mrb[0].mxu0
      %v2219 = vadd.f32 0.0, %v2218
      %v2220 = vpop.f32.mrb[0].mxu0
      %v2221 = vadd.f32 0.0, %v2220
      %2222 = vdwg.mxu0
      %2226 = vrot.lane.b32.xlu0 %v2129, 17
      %v2227 = vpop.permute.xlu0 %2226
      %2228 = vrot.lane.b32.xlu0 %v2130, 17
      %v2229 = vpop.permute.xlu0 %2228
      %2230 = vrot.lane.b32.xlu0 %v2131, 17
      %v2231 = vpop.permute.xlu0 %2230
      %v2232 = vsel %vm464, %v2227, %v2229
      %v2233 = vsel %vm464, %v2229, %v2231
      %v2237 = vsel %vm380, %v2133, 0
      %2239 = vmatprep.subr.mxu0 %v2233
      %2240 = vmatpush1.msra.mxu0 %v2232
      %2241 = vmatprep.subr.mxu0 0.0
      %2242 = vmatpush1.msra.mxu0 0.0
      %2243 = vmatprep.subr.mxu0 0.0
      %2244 = vmatpush1.msra.mxu0 0.0
      %2245 = vmatprep.subr.mxu0 0.0
      %2246 = vmatpush1.msra.mxu0 0.0
      %2247 = vmatprep.subr.mxu0 0.0
      %2248 = vmatpush1.msra.mxu0 0.0
      %2249 = vmatprep.subr.mxu0 0.0
      %2250 = vmatpush1.msra.mxu0 0.0
      %2251 = vmatprep.subr.mxu0 0.0
      %2252 = vmatpush1.msra.mxu0 0.0
      %2253 = vmatprep.subr.mxu0 0.0
      %2254 = vmatpush1.msra.mxu0 0.0
      %2255 = vmatprep.subr.mxu0 0.0
      %2256 = vmatpush1.msra.mxu0 0.0
      %2257 = vmatprep.subr.mxu0 0.0
      %2258 = vmatpush1.msra.mxu0 0.0
      %2259 = vmatprep.subr.mxu0 0.0
      %2260 = vmatpush1.msra.mxu0 0.0
      %2261 = vmatprep.subr.mxu0 0.0
      %2262 = vmatpush1.msra.mxu0 0.0
      %2263 = vmatprep.subr.mxu0 0.0
      %2264 = vmatpush1.msra.mxu0 0.0
      %2265 = vmatprep.subr.mxu0 0.0
      %2266 = vmatpush1.msra.mxu0 0.0
      %2267 = vmatprep.subr.mxu0 0.0
      %2268 = vmatpush1.msra.mxu0 0.0
      %2269 = vmatprep.subr.mxu0 0.0
      %2270 = vmatpush1.msra.mxu0 0.0
      %2271 = vmatprep.subr.mxu0 0.0
      %2272 = vmatpush1.msra.mxu0 0.0
      %2273 = vmatprep.subr.mxu0 0.0
      %2274 = vmatpush1.msra.mxu0 0.0
      %2275 = vmatprep.subr.mxu0 0.0
      %2276 = vmatpush1.msra.mxu0 0.0
      %2277 = vmatprep.subr.mxu0 0.0
      %2278 = vmatpush1.msra.mxu0 0.0
      %2279 = vmatprep.subr.mxu0 0.0
      %2280 = vmatpush1.msra.mxu0 0.0
      %2281 = vmatprep.subr.mxu0 0.0
      %2282 = vmatpush1.msra.mxu0 0.0
      %2283 = vmatprep.subr.mxu0 0.0
      %2284 = vmatpush1.msra.mxu0 0.0
      %2285 = vmatprep.subr.mxu0 0.0
      %2286 = vmatpush1.msra.mxu0 0.0
      %2287 = vmatprep.subr.mxu0 0.0
      %2288 = vmatpush1.msra.mxu0 0.0
      %2289 = vmatprep.subr.mxu0 0.0
      %2290 = vmatpush1.msra.mxu0 0.0
      %2291 = vmatprep.subr.mxu0 0.0
      %2292 = vmatpush1.msra.mxu0 0.0
      %2293 = vmatprep.subr.mxu0 0.0
      %2294 = vmatpush1.msra.mxu0 0.0
      %2295 = vmatprep.subr.mxu0 0.0
      %2296 = vmatpush1.msra.mxu0 0.0
      %2297 = vmatprep.subr.mxu0 0.0
      %2298 = vmatpush1.msra.mxu0 0.0
      %2299 = vmatprep.subr.mxu0 0.0
      %2300 = vmatpush1.msra.mxu0 0.0
      %2301 = vmatprep.subr.mxu0 0.0
      %2302 = vmatpush1.msra.mxu0 0.0
      %2303 = vmatprep.mubr.f32.mxu0 0.0
      %2304 = vmatmul.mubr.f32.gmra.mrb[0].mxu0 %v2237
      %v2305 = vpop.f32.mrb[0].mxu0
      %v2306 = vadd.f32 %v2219, %v2305
      %v2307 = vpop.f32.mrb[0].mxu0
      %v2308 = vadd.f32 %v2221, %v2307
      %2309 = vdwg.mxu0
      %v2310 = vmul.f32 %v2126, %v553
      %v2311 = vmul.f32 %v2127, %v557
      %v2312 = vmul.f32 %v2128, %v555
      %s2313 = scalar_lea.vmem %s2, 160
      %v2314 = vld [vmem:[%s2313] sm:$0xff]
      %2318 = vrot.lane.b32.xlu0 %v2310, 15
      %v2319 = vpop.permute.xlu0 %2318
      %2320 = vrot.lane.b32.xlu0 %v2311, 15
      %v2321 = vpop.permute.xlu0 %2320
      %2322 = vrot.lane.b32.xlu0 %v2312, 15
      %v2323 = vpop.permute.xlu0 %2322
      %v2324 = vsel %vm575, %v2319, %v2321
      %v2325 = vsel %vm575, %v2321, %v2323
      %v2329 = vsel %vm380, %v2314, 0
      %2331 = vmatprep.subr.mxu0 %v2325
      %2332 = vmatpush1.msra.mxu0 %v2324
      %2333 = vmatprep.subr.mxu0 0.0
      %2334 = vmatpush1.msra.mxu0 0.0
      %2335 = vmatprep.subr.mxu0 0.0
      %2336 = vmatpush1.msra.mxu0 0.0
      %2337 = vmatprep.subr.mxu0 0.0
      %2338 = vmatpush1.msra.mxu0 0.0
      %2339 = vmatprep.subr.mxu0 0.0
      %2340 = vmatpush1.msra.mxu0 0.0
      %2341 = vmatprep.subr.mxu0 0.0
      %2342 = vmatpush1.msra.mxu0 0.0
      %2343 = vmatprep.subr.mxu0 0.0
      %2344 = vmatpush1.msra.mxu0 0.0
      %2345 = vmatprep.subr.mxu0 0.0
      %2346 = vmatpush1.msra.mxu0 0.0
      %2347 = vmatprep.subr.mxu0 0.0
      %2348 = vmatpush1.msra.mxu0 0.0
      %2349 = vmatprep.subr.mxu0 0.0
      %2350 = vmatpush1.msra.mxu0 0.0
      %2351 = vmatprep.subr.mxu0 0.0
      %2352 = vmatpush1.msra.mxu0 0.0
      %2353 = vmatprep.subr.mxu0 0.0
      %2354 = vmatpush1.msra.mxu0 0.0
      %2355 = vmatprep.subr.mxu0 0.0
      %2356 = vmatpush1.msra.mxu0 0.0
      %2357 = vmatprep.subr.mxu0 0.0
      %2358 = vmatpush1.msra.mxu0 0.0
      %2359 = vmatprep.subr.mxu0 0.0
      %2360 = vmatpush1.msra.mxu0 0.0
      %2361 = vmatprep.subr.mxu0 0.0
      %2362 = vmatpush1.msra.mxu0 0.0
      %2363 = vmatprep.subr.mxu0 0.0
      %2364 = vmatpush1.msra.mxu0 0.0
      %2365 = vmatprep.subr.mxu0 0.0
      %2366 = vmatpush1.msra.mxu0 0.0
      %2367 = vmatprep.subr.mxu0 0.0
      %2368 = vmatpush1.msra.mxu0 0.0
      %2369 = vmatprep.subr.mxu0 0.0
      %2370 = vmatpush1.msra.mxu0 0.0
      %2371 = vmatprep.subr.mxu0 0.0
      %2372 = vmatpush1.msra.mxu0 0.0
      %2373 = vmatprep.subr.mxu0 0.0
      %2374 = vmatpush1.msra.mxu0 0.0
      %2375 = vmatprep.subr.mxu0 0.0
      %2376 = vmatpush1.msra.mxu0 0.0
      %2377 = vmatprep.subr.mxu0 0.0
      %2378 = vmatpush1.msra.mxu0 0.0
      %2379 = vmatprep.subr.mxu0 0.0
      %2380 = vmatpush1.msra.mxu0 0.0
      %2381 = vmatprep.subr.mxu0 0.0
      %2382 = vmatpush1.msra.mxu0 0.0
      %2383 = vmatprep.subr.mxu0 0.0
      %2384 = vmatpush1.msra.mxu0 0.0
      %2385 = vmatprep.subr.mxu0 0.0
      %2386 = vmatpush1.msra.mxu0 0.0
      %2387 = vmatprep.subr.mxu0 0.0
      %2388 = vmatpush1.msra.mxu0 0.0
      %2389 = vmatprep.subr.mxu0 0.0
      %2390 = vmatpush1.msra.mxu0 0.0
      %2391 = vmatprep.subr.mxu0 0.0
      %2392 = vmatpush1.msra.mxu0 0.0
      %2393 = vmatprep.subr.mxu0 0.0
      %2394 = vmatpush1.msra.mxu0 0.0
      %2395 = vmatprep.mubr.f32.mxu0 0.0
      %2396 = vmatmul.mubr.f32.gmra.mrb[0].mxu0 %v2329
      %v2397 = vpop.f32.mrb[0].mxu0
      %v2398 = vadd.f32 0.0, %v2397
      %v2399 = vpop.f32.mrb[0].mxu0
      %v2400 = vadd.f32 0.0, %v2399
      %2401 = vdwg.mxu0
      %v2402 = vadd.f32 %v2306, %v2398
      %v2403 = vadd.f32 %v2308, %v2400
      %v2404 = vmul.f32 %v2126, %v666
      %v2405 = vmul.f32 %v2127, %v670
      %v2406 = vmul.f32 %v2128, %v668
      %s2407 = scalar_lea.vmem %s2, 168
      %v2408 = vld [vmem:[%s2407] sm:$0xff]
      %2412 = vrot.lane.b32.xlu0 %v2404, 1
      %v2413 = vpop.permute.xlu0 %2412
      %2414 = vrot.lane.b32.xlu0 %v2405, 1
      %v2415 = vpop.permute.xlu0 %2414
      %2416 = vrot.lane.b32.xlu0 %v2406, 1
      %v2417 = vpop.permute.xlu0 %2416
      %v2418 = vsel %vm688, %v2413, %v2415
      %v2419 = vsel %vm688, %v2415, %v2417
      %v2423 = vsel %vm380, %v2408, 0
      %2425 = vmatprep.subr.mxu0 %v2419
      %2426 = vmatpush1.msra.mxu0 %v2418
      %2427 = vmatprep.subr.mxu0 0.0
      %2428 = vmatpush1.msra.mxu0 0.0
      %2429 = vmatprep.subr.mxu0 0.0
      %2430 = vmatpush1.msra.mxu0 0.0
      %2431 = vmatprep.subr.mxu0 0.0
      %2432 = vmatpush1.msra.mxu0 0.0
      %2433 = vmatprep.subr.mxu0 0.0
      %2434 = vmatpush1.msra.mxu0 0.0
      %2435 = vmatprep.subr.mxu0 0.0
      %2436 = vmatpush1.msra.mxu0 0.0
      %2437 = vmatprep.subr.mxu0 0.0
      %2438 = vmatpush1.msra.mxu0 0.0
      %2439 = vmatprep.subr.mxu0 0.0
      %2440 = vmatpush1.msra.mxu0 0.0
      %2441 = vmatprep.subr.mxu0 0.0
      %2442 = vmatpush1.msra.mxu0 0.0
      %2443 = vmatprep.subr.mxu0 0.0
      %2444 = vmatpush1.msra.mxu0 0.0
      %2445 = vmatprep.subr.mxu0 0.0
      %2446 = vmatpush1.msra.mxu0 0.0
      %2447 = vmatprep.subr.mxu0 0.0
      %2448 = vmatpush1.msra.mxu0 0.0
      %2449 = vmatprep.subr.mxu0 0.0
      %2450 = vmatpush1.msra.mxu0 0.0
      %2451 = vmatprep.subr.mxu0 0.0
      %2452 = vmatpush1.msra.mxu0 0.0
      %2453 = vmatprep.subr.mxu0 0.0
      %2454 = vmatpush1.msra.mxu0 0.0
      %2455 = vmatprep.subr.mxu0 0.0
      %2456 = vmatpush1.msra.mxu0 0.0
      %2457 = vmatprep.subr.mxu0 0.0
      %2458 = vmatpush1.msra.mxu0 0.0
      %2459 = vmatprep.subr.mxu0 0.0
      %2460 = vmatpush1.msra.mxu0 0.0
      %2461 = vmatprep.subr.mxu0 0.0
      %2462 = vmatpush1.msra.mxu0 0.0
      %2463 = vmatprep.subr.mxu0 0.0
      %2464 = vmatpush1.msra.mxu0 0.0
      %2465 = vmatprep.subr.mxu0 0.0
      %2466 = vmatpush1.msra.mxu0 0.0
      %2467 = vmatprep.subr.mxu0 0.0
      %2468 = vmatpush1.msra.mxu0 0.0
      %2469 = vmatprep.subr.mxu0 0.0
      %2470 = vmatpush1.msra.mxu0 0.0
      %2471 = vmatprep.subr.mxu0 0.0
      %2472 = vmatpush1.msra.mxu0 0.0
      %2473 = vmatprep.subr.mxu0 0.0
      %2474 = vmatpush1.msra.mxu0 0.0
      %2475 = vmatprep.subr.mxu0 0.0
      %2476 = vmatpush1.msra.mxu0 0.0
      %2477 = vmatprep.subr.mxu0 0.0
      %2478 = vmatpush1.msra.mxu0 0.0
      %2479 = vmatprep.subr.mxu0 0.0
      %2480 = vmatpush1.msra.mxu0 0.0
      %2481 = vmatprep.subr.mxu0 0.0
      %2482 = vmatpush1.msra.mxu0 0.0
      %2483 = vmatprep.subr.mxu0 0.0
      %2484 = vmatpush1.msra.mxu0 0.0
      %2485 = vmatprep.subr.mxu0 0.0
      %2486 = vmatpush1.msra.mxu0 0.0
      %2487 = vmatprep.subr.mxu0 0.0
      %2488 = vmatpush1.msra.mxu0 0.0
      %2489 = vmatprep.mubr.f32.mxu0 0.0
      %2490 = vmatmul.mubr.f32.gmra.mrb[0].mxu0 %v2423
      %v2491 = vpop.f32.mrb[0].mxu0
      %v2492 = vadd.f32 0.0, %v2491
      %v2493 = vpop.f32.mrb[0].mxu0
      %v2494 = vadd.f32 0.0, %v2493
      %2495 = vdwg.mxu0
      %v2496 = vadd.f32 %v2402, %v2492
      %v2497 = vadd.f32 %v2403, %v2494
      %s2498 = scalar_lea.vmem %s2, 176
      %v2499 = vld [vmem:[%s2498] sm:$0xff]
      %v2501 = vsel %vm380, %v2499, 0
      %2503 = vmatprep.subr.mxu0 %v2128
      %2504 = vmatpush1.msra.mxu0 %v2127
      %2505 = vmatprep.subr.mxu0 0.0
      %2506 = vmatpush1.msra.mxu0 0.0
      %2507 = vmatprep.subr.mxu0 0.0
      %2508 = vmatpush1.msra.mxu0 0.0
      %2509 = vmatprep.subr.mxu0 0.0
      %2510 = vmatpush1.msra.mxu0 0.0
      %2511 = vmatprep.subr.mxu0 0.0
      %2512 = vmatpush1.msra.mxu0 0.0
      %2513 = vmatprep.subr.mxu0 0.0
      %2514 = vmatpush1.msra.mxu0 0.0
      %2515 = vmatprep.subr.mxu0 0.0
      %2516 = vmatpush1.msra.mxu0 0.0
      %2517 = vmatprep.subr.mxu0 0.0
      %2518 = vmatpush1.msra.mxu0 0.0
      %2519 = vmatprep.subr.mxu0 0.0
      %2520 = vmatpush1.msra.mxu0 0.0
      %2521 = vmatprep.subr.mxu0 0.0
      %2522 = vmatpush1.msra.mxu0 0.0
      %2523 = vmatprep.subr.mxu0 0.0
      %2524 = vmatpush1.msra.mxu0 0.0
      %2525 = vmatprep.subr.mxu0 0.0
      %2526 = vmatpush1.msra.mxu0 0.0
      %2527 = vmatprep.subr.mxu0 0.0
      %2528 = vmatpush1.msra.mxu0 0.0
      %2529 = vmatprep.subr.mxu0 0.0
      %2530 = vmatpush1.msra.mxu0 0.0
      %2531 = vmatprep.subr.mxu0 0.0
      %2532 = vmatpush1.msra.mxu0 0.0
      %2533 = vmatprep.subr.mxu0 0.0
      %2534 = vmatpush1.msra.mxu0 0.0
      %2535 = vmatprep.subr.mxu0 0.0
      %2536 = vmatpush1.msra.mxu0 0.0
      %2537 = vmatprep.subr.mxu0 0.0
      %2538 = vmatpush1.msra.mxu0 0.0
      %2539 = vmatprep.subr.mxu0 0.0
      %2540 = vmatpush1.msra.mxu0 0.0
      %2541 = vmatprep.subr.mxu0 0.0
      %2542 = vmatpush1.msra.mxu0 0.0
      %2543 = vmatprep.subr.mxu0 0.0
      %2544 = vmatpush1.msra.mxu0 0.0
      %2545 = vmatprep.subr.mxu0 0.0
      %2546 = vmatpush1.msra.mxu0 0.0
      %2547 = vmatprep.subr.mxu0 0.0
      %2548 = vmatpush1.msra.mxu0 0.0
      %2549 = vmatprep.subr.mxu0 0.0
      %2550 = vmatpush1.msra.mxu0 0.0
      %2551 = vmatprep.subr.mxu0 0.0
      %2552 = vmatpush1.msra.mxu0 0.0
      %2553 = vmatprep.subr.mxu0 0.0
      %2554 = vmatpush1.msra.mxu0 0.0
      %2555 = vmatprep.subr.mxu0 0.0
      %2556 = vmatpush1.msra.mxu0 0.0
      %2557 = vmatprep.subr.mxu0 0.0
      %2558 = vmatpush1.msra.mxu0 0.0
      %2559 = vmatprep.subr.mxu0 0.0
      %2560 = vmatpush1.msra.mxu0 0.0
      %2561 = vmatprep.subr.mxu0 0.0
      %2562 = vmatpush1.msra.mxu0 0.0
      %2563 = vmatprep.subr.mxu0 0.0
      %2564 = vmatpush1.msra.mxu0 0.0
      %2565 = vmatprep.subr.mxu0 0.0
      %2566 = vmatpush1.msra.mxu0 0.0
      %2567 = vmatprep.mubr.f32.mxu0 0.0
      %2568 = vmatmul.mubr.f32.gmra.mrb[0].mxu0 %v2501
      %v2569 = vpop.f32.mrb[0].mxu0
      %v2570 = vadd.f32 0.0, %v2569
      %v2571 = vpop.f32.mrb[0].mxu0
      %v2572 = vadd.f32 0.0, %v2571
      %2573 = vdwg.mxu0
      %v2574 = vadd.f32 %v2496, %v2570
      %v2575 = vadd.f32 %v2497, %v2572
      %v2576 = vld [vmem:[#allocation4 + $0x8] sm:$0xff]
      %v2577 = vld [vmem:[#allocation4 + $0x10] sm:$0xff]
      %v2578 = vld [vmem:[#allocation4 + $0x18] sm:$0xff]
      %v2579 = vmul.f32 %v2576, %v860
      %v2580 = vmul.f32 %v2577, %v863
      %v2581 = vmul.f32 %v2578, %v862
      %s2582 = scalar_lea.vmem %s2, 184
      %v2583 = vld [vmem:[%s2582] sm:$0xff]
      %2587 = vrot.lane.b32.xlu0 %v2579, 127
      %v2588 = vpop.permute.xlu0 %2587
      %2589 = vrot.lane.b32.xlu0 %v2580, 127
      %v2590 = vpop.permute.xlu0 %2589
      %2591 = vrot.lane.b32.xlu0 %v2581, 127
      %v2592 = vpop.permute.xlu0 %2591
      %v2593 = vsel %vm669, %v2588, %v2590
      %v2594 = vsel %vm669, %v2590, %v2592
      %v2598 = vsel %vm380, %v2583, 0
      %2600 = vmatprep.subr.mxu0 %v2594
      %2601 = vmatpush1.msra.mxu0 %v2593
      %2602 = vmatprep.subr.mxu0 0.0
      %2603 = vmatpush1.msra.mxu0 0.0
      %2604 = vmatprep.subr.mxu0 0.0
      %2605 = vmatpush1.msra.mxu0 0.0
      %2606 = vmatprep.subr.mxu0 0.0
      %2607 = vmatpush1.msra.mxu0 0.0
      %2608 = vmatprep.subr.mxu0 0.0
      %2609 = vmatpush1.msra.mxu0 0.0
      %2610 = vmatprep.subr.mxu0 0.0
      %2611 = vmatpush1.msra.mxu0 0.0
      %2612 = vmatprep.subr.mxu0 0.0
      %2613 = vmatpush1.msra.mxu0 0.0
      %2614 = vmatprep.subr.mxu0 0.0
      %2615 = vmatpush1.msra.mxu0 0.0
      %2616 = vmatprep.subr.mxu0 0.0
      %2617 = vmatpush1.msra.mxu0 0.0
      %2618 = vmatprep.subr.mxu0 0.0
      %2619 = vmatpush1.msra.mxu0 0.0
      %2620 = vmatprep.subr.mxu0 0.0
      %2621 = vmatpush1.msra.mxu0 0.0
      %2622 = vmatprep.subr.mxu0 0.0
      %2623 = vmatpush1.msra.mxu0 0.0
      %2624 = vmatprep.subr.mxu0 0.0
      %2625 = vmatpush1.msra.mxu0 0.0
      %2626 = vmatprep.subr.mxu0 0.0
      %2627 = vmatpush1.msra.mxu0 0.0
      %2628 = vmatprep.subr.mxu0 0.0
      %2629 = vmatpush1.msra.mxu0 0.0
      %2630 = vmatprep.subr.mxu0 0.0
      %2631 = vmatpush1.msra.mxu0 0.0
      %2632 = vmatprep.subr.mxu0 0.0
      %2633 = vmatpush1.msra.mxu0 0.0
      %2634 = vmatprep.subr.mxu0 0.0
      %2635 = vmatpush1.msra.mxu0 0.0
      %2636 = vmatprep.subr.mxu0 0.0
      %2637 = vmatpush1.msra.mxu0 0.0
      %2638 = vmatprep.subr.mxu0 0.0
      %2639 = vmatpush1.msra.mxu0 0.0
      %2640 = vmatprep.subr.mxu0 0.0
      %2641 = vmatpush1.msra.mxu0 0.0
      %2642 = vmatprep.subr.mxu0 0.0
      %2643 = vmatpush1.msra.mxu0 0.0
      %2644 = vmatprep.subr.mxu0 0.0
      %2645 = vmatpush1.msra.mxu0 0.0
      %2646 = vmatprep.subr.mxu0 0.0
      %2647 = vmatpush1.msra.mxu0 0.0
      %2648 = vmatprep.subr.mxu0 0.0
      %2649 = vmatpush1.msra.mxu0 0.0
      %2650 = vmatprep.subr.mxu0 0.0
      %2651 = vmatpush1.msra.mxu0 0.0
      %2652 = vmatprep.subr.mxu0 0.0
      %2653 = vmatpush1.msra.mxu0 0.0
      %2654 = vmatprep.subr.mxu0 0.0
      %2655 = vmatpush1.msra.mxu0 0.0
      %2656 = vmatprep.subr.mxu0 0.0
      %2657 = vmatpush1.msra.mxu0 0.0
      %2658 = vmatprep.subr.mxu0 0.0
      %2659 = vmatpush1.msra.mxu0 0.0
      %2660 = vmatprep.subr.mxu0 0.0
      %2661 = vmatpush1.msra.mxu0 0.0
      %2662 = vmatprep.subr.mxu0 0.0
      %2663 = vmatpush1.msra.mxu0 0.0
      %2664 = vmatprep.mubr.f32.mxu0 0.0
      %2665 = vmatmul.mubr.f32.gmra.mrb[0].mxu0 %v2598
      %v2666 = vpop.f32.mrb[0].mxu0
      %v2667 = vadd.f32 0.0, %v2666
      %v2668 = vpop.f32.mrb[0].mxu0
      %v2669 = vadd.f32 0.0, %v2668
      %2670 = vdwg.mxu0
      %v2671 = vadd.f32 %v2574, %v2667
      %v2672 = vadd.f32 %v2575, %v2669
      %v2673 = vmul.f32 %v2576, %v971
      %v2674 = vmul.f32 %v2577, %v974
      %v2675 = vmul.f32 %v2578, %v973
      %s2676 = scalar_lea.vmem %s2, 192
      %v2677 = vld [vmem:[%s2676] sm:$0xff]
      %2681 = vrot.lane.b32.xlu0 %v2673, 113
      %v2682 = vpop.permute.xlu0 %2681
      %2683 = vrot.lane.b32.xlu0 %v2674, 113
      %v2684 = vpop.permute.xlu0 %2683
      %2685 = vrot.lane.b32.xlu0 %v2675, 113
      %v2686 = vpop.permute.xlu0 %2685
      %v2687 = vsel %vm556, %v2682, %v2684
      %v2688 = vsel %vm556, %v2684, %v2686
      %v2692 = vsel %vm380, %v2677, 0
      %2694 = vmatprep.subr.mxu0 %v2688
      %2695 = vmatpush1.msra.mxu0 %v2687
      %2696 = vmatprep.subr.mxu0 0.0
      %2697 = vmatpush1.msra.mxu0 0.0
      %2698 = vmatprep.subr.mxu0 0.0
      %2699 = vmatpush1.msra.mxu0 0.0
      %2700 = vmatprep.subr.mxu0 0.0
      %2701 = vmatpush1.msra.mxu0 0.0
      %2702 = vmatprep.subr.mxu0 0.0
      %2703 = vmatpush1.msra.mxu0 0.0
      %2704 = vmatprep.subr.mxu0 0.0
      %2705 = vmatpush1.msra.mxu0 0.0
      %2706 = vmatprep.subr.mxu0 0.0
      %2707 = vmatpush1.msra.mxu0 0.0
      %2708 = vmatprep.subr.mxu0 0.0
      %2709 = vmatpush1.msra.mxu0 0.0
      %2710 = vmatprep.subr.mxu0 0.0
      %2711 = vmatpush1.msra.mxu0 0.0
      %2712 = vmatprep.subr.mxu0 0.0
      %2713 = vmatpush1.msra.mxu0 0.0
      %2714 = vmatprep.subr.mxu0 0.0
      %2715 = vmatpush1.msra.mxu0 0.0
      %2716 = vmatprep.subr.mxu0 0.0
      %2717 = vmatpush1.msra.mxu0 0.0
      %2718 = vmatprep.subr.mxu0 0.0
      %2719 = vmatpush1.msra.mxu0 0.0
      %2720 = vmatprep.subr.mxu0 0.0
      %2721 = vmatpush1.msra.mxu0 0.0
      %2722 = vmatprep.subr.mxu0 0.0
      %2723 = vmatpush1.msra.mxu0 0.0
      %2724 = vmatprep.subr.mxu0 0.0
      %2725 = vmatpush1.msra.mxu0 0.0
      %2726 = vmatprep.subr.mxu0 0.0
      %2727 = vmatpush1.msra.mxu0 0.0
      %2728 = vmatprep.subr.mxu0 0.0
      %2729 = vmatpush1.msra.mxu0 0.0
      %2730 = vmatprep.subr.mxu0 0.0
      %2731 = vmatpush1.msra.mxu0 0.0
      %2732 = vmatprep.subr.mxu0 0.0
      %2733 = vmatpush1.msra.mxu0 0.0
      %2734 = vmatprep.subr.mxu0 0.0
      %2735 = vmatpush1.msra.mxu0 0.0
      %2736 = vmatprep.subr.mxu0 0.0
      %2737 = vmatpush1.msra.mxu0 0.0
      %2738 = vmatprep.subr.mxu0 0.0
      %2739 = vmatpush1.msra.mxu0 0.0
      %2740 = vmatprep.subr.mxu0 0.0
      %2741 = vmatpush1.msra.mxu0 0.0
      %2742 = vmatprep.subr.mxu0 0.0
      %2743 = vmatpush1.msra.mxu0 0.0
      %2744 = vmatprep.subr.mxu0 0.0
      %2745 = vmatpush1.msra.mxu0 0.0
      %2746 = vmatprep.subr.mxu0 0.0
      %2747 = vmatpush1.msra.mxu0 0.0
      %2748 = vmatprep.subr.mxu0 0.0
      %2749 = vmatpush1.msra.mxu0 0.0
      %2750 = vmatprep.subr.mxu0 0.0
      %2751 = vmatpush1.msra.mxu0 0.0
      %2752 = vmatprep.subr.mxu0 0.0
      %2753 = vmatpush1.msra.mxu0 0.0
      %2754 = vmatprep.subr.mxu0 0.0
      %2755 = vmatpush1.msra.mxu0 0.0
      %2756 = vmatprep.subr.mxu0 0.0
      %2757 = vmatpush1.msra.mxu0 0.0
      %2758 = vmatprep.mubr.f32.mxu0 0.0
      %2759 = vmatmul.mubr.f32.gmra.mrb[0].mxu0 %v2692
      %v2760 = vpop.f32.mrb[0].mxu0
      %v2761 = vadd.f32 0.0, %v2760
      %v2762 = vpop.f32.mrb[0].mxu0
      %v2763 = vadd.f32 0.0, %v2762
      %2764 = vdwg.mxu0
      %v2765 = vadd.f32 %v2671, %v2761
      %v2766 = vadd.f32 %v2672, %v2763
      %s2767 = scalar_lea.vmem %s2, 200
      %v2768 = vld [vmem:[%s2767] sm:$0xff]
      %2772 = vrot.lane.b32.xlu0 %v2576, 112
      %v2773 = vpop.permute.xlu0 %2772
      %2774 = vrot.lane.b32.xlu0 %v2577, 112
      %v2775 = vpop.permute.xlu0 %2774
      %2776 = vrot.lane.b32.xlu0 %v2578, 112
      %v2777 = vpop.permute.xlu0 %2776
      %v2778 = vsel %vm1083, %v2773, %v2775
      %v2779 = vsel %vm1083, %v2775, %v2777
      %v2783 = vsel %vm380, %v2768, 0
      %2785 = vmatprep.subr.mxu0 %v2779
      %2786 = vmatpush1.msra.mxu0 %v2778
      %2787 = vmatprep.subr.mxu0 0.0
      %2788 = vmatpush1.msra.mxu0 0.0
      %2789 = vmatprep.subr.mxu0 0.0
      %2790 = vmatpush1.msra.mxu0 0.0
      %2791 = vmatprep.subr.mxu0 0.0
      %2792 = vmatpush1.msra.mxu0 0.0
      %2793 = vmatprep.subr.mxu0 0.0
      %2794 = vmatpush1.msra.mxu0 0.0
      %2795 = vmatprep.subr.mxu0 0.0
      %2796 = vmatpush1.msra.mxu0 0.0
      %2797 = vmatprep.subr.mxu0 0.0
      %2798 = vmatpush1.msra.mxu0 0.0
      %2799 = vmatprep.subr.mxu0 0.0
      %2800 = vmatpush1.msra.mxu0 0.0
      %2801 = vmatprep.subr.mxu0 0.0
      %2802 = vmatpush1.msra.mxu0 0.0
      %2803 = vmatprep.subr.mxu0 0.0
      %2804 = vmatpush1.msra.mxu0 0.0
      %2805 = vmatprep.subr.mxu0 0.0
      %2806 = vmatpush1.msra.mxu0 0.0
      %2807 = vmatprep.subr.mxu0 0.0
      %2808 = vmatpush1.msra.mxu0 0.0
      %2809 = vmatprep.subr.mxu0 0.0
      %2810 = vmatpush1.msra.mxu0 0.0
      %2811 = vmatprep.subr.mxu0 0.0
      %2812 = vmatpush1.msra.mxu0 0.0
      %2813 = vmatprep.subr.mxu0 0.0
      %2814 = vmatpush1.msra.mxu0 0.0
      %2815 = vmatprep.subr.mxu0 0.0
      %2816 = vmatpush1.msra.mxu0 0.0
      %2817 = vmatprep.subr.mxu0 0.0
      %2818 = vmatpush1.msra.mxu0 0.0
      %2819 = vmatprep.subr.mxu0 0.0
      %2820 = vmatpush1.msra.mxu0 0.0
      %2821 = vmatprep.subr.mxu0 0.0
      %2822 = vmatpush1.msra.mxu0 0.0
      %2823 = vmatprep.subr.mxu0 0.0
      %2824 = vmatpush1.msra.mxu0 0.0
      %2825 = vmatprep.subr.mxu0 0.0
      %2826 = vmatpush1.msra.mxu0 0.0
      %2827 = vmatprep.subr.mxu0 0.0
      %2828 = vmatpush1.msra.mxu0 0.0
      %2829 = vmatprep.subr.mxu0 0.0
      %2830 = vmatpush1.msra.mxu0 0.0
      %2831 = vmatprep.subr.mxu0 0.0
      %2832 = vmatpush1.msra.mxu0 0.0
      %2833 = vmatprep.subr.mxu0 0.0
      %2834 = vmatpush1.msra.mxu0 0.0
      %2835 = vmatprep.subr.mxu0 0.0
      %2836 = vmatpush1.msra.mxu0 0.0
      %2837 = vmatprep.subr.mxu0 0.0
      %2838 = vmatpush1.msra.mxu0 0.0
      %2839 = vmatprep.subr.mxu0 0.0
      %2840 = vmatpush1.msra.mxu0 0.0
      %2841 = vmatprep.subr.mxu0 0.0
      %2842 = vmatpush1.msra.mxu0 0.0
      %2843 = vmatprep.subr.mxu0 0.0
      %2844 = vmatpush1.msra.mxu0 0.0
      %2845 = vmatprep.subr.mxu0 0.0
      %2846 = vmatpush1.msra.mxu0 0.0
      %2847 = vmatprep.subr.mxu0 0.0
      %2848 = vmatpush1.msra.mxu0 0.0
      %2849 = vmatprep.mubr.f32.mxu0 0.0
      %2850 = vmatmul.mubr.f32.gmra.mrb[0].mxu0 %v2783
      %v2851 = vpop.f32.mrb[0].mxu0
      %v2852 = vadd.f32 0.0, %v2851
      %v2853 = vpop.f32.mrb[0].mxu0
      %v2854 = vadd.f32 0.0, %v2853
      %2855 = vdwg.mxu0
      %v2856 = vadd.f32 %v2765, %v2852
      %v2857 = vadd.f32 %v2766, %v2854
      %v2858 = vmul.f32 %v2576, %v1174
      %v2859 = vmul.f32 %v2577, %v1177
      %v2860 = vmul.f32 %v2578, %v1176
      %s2861 = scalar_lea.vmem %s2, 208
      %v2862 = vld [vmem:[%s2861] sm:$0xff]
      %2866 = vrot.lane.b32.xlu0 %v2858, 111
      %v2867 = vpop.permute.xlu0 %2866
      %2868 = vrot.lane.b32.xlu0 %v2859, 111
      %v2869 = vpop.permute.xlu0 %2868
      %2870 = vrot.lane.b32.xlu0 %v2860, 111
      %v2871 = vpop.permute.xlu0 %2870
      %v2872 = vsel %vm355, %v2867, %v2869
      %v2873 = vsel %vm355, %v2869, %v2871
      %v2877 = vsel %vm380, %v2862, 0
      %2879 = vmatprep.subr.mxu0 %v2873
      %2880 = vmatpush1.msra.mxu0 %v2872
      %2881 = vmatprep.subr.mxu0 0.0
      %2882 = vmatpush1.msra.mxu0 0.0
      %2883 = vmatprep.subr.mxu0 0.0
      %2884 = vmatpush1.msra.mxu0 0.0
      %2885 = vmatprep.subr.mxu0 0.0
      %2886 = vmatpush1.msra.mxu0 0.0
      %2887 = vmatprep.subr.mxu0 0.0
      %2888 = vmatpush1.msra.mxu0 0.0
      %2889 = vmatprep.subr.mxu0 0.0
      %2890 = vmatpush1.msra.mxu0 0.0
      %2891 = vmatprep.subr.mxu0 0.0
      %2892 = vmatpush1.msra.mxu0 0.0
      %2893 = vmatprep.subr.mxu0 0.0
      %2894 = vmatpush1.msra.mxu0 0.0
      %2895 = vmatprep.subr.mxu0 0.0
      %2896 = vmatpush1.msra.mxu0 0.0
      %2897 = vmatprep.subr.mxu0 0.0
      %2898 = vmatpush1.msra.mxu0 0.0
      %2899 = vmatprep.subr.mxu0 0.0
      %2900 = vmatpush1.msra.mxu0 0.0
      %2901 = vmatprep.subr.mxu0 0.0
      %2902 = vmatpush1.msra.mxu0 0.0
      %2903 = vmatprep.subr.mxu0 0.0
      %2904 = vmatpush1.msra.mxu0 0.0
      %2905 = vmatprep.subr.mxu0 0.0
      %2906 = vmatpush1.msra.mxu0 0.0
      %2907 = vmatprep.subr.mxu0 0.0
      %2908 = vmatpush1.msra.mxu0 0.0
      %2909 = vmatprep.subr.mxu0 0.0
      %2910 = vmatpush1.msra.mxu0 0.0
      %2911 = vmatprep.subr.mxu0 0.0
      %2912 = vmatpush1.msra.mxu0 0.0
      %2913 = vmatprep.subr.mxu0 0.0
      %2914 = vmatpush1.msra.mxu0 0.0
      %2915 = vmatprep.subr.mxu0 0.0
      %2916 = vmatpush1.msra.mxu0 0.0
      %2917 = vmatprep.subr.mxu0 0.0
      %2918 = vmatpush1.msra.mxu0 0.0
      %2919 = vmatprep.subr.mxu0 0.0
      %2920 = vmatpush1.msra.mxu0 0.0
      %2921 = vmatprep.subr.mxu0 0.0
      %2922 = vmatpush1.msra.mxu0 0.0
      %2923 = vmatprep.subr.mxu0 0.0
      %2924 = vmatpush1.msra.mxu0 0.0
      %2925 = vmatprep.subr.mxu0 0.0
      %2926 = vmatpush1.msra.mxu0 0.0
      %2927 = vmatprep.subr.mxu0 0.0
      %2928 = vmatpush1.msra.mxu0 0.0
      %2929 = vmatprep.subr.mxu0 0.0
      %2930 = vmatpush1.msra.mxu0 0.0
      %2931 = vmatprep.subr.mxu0 0.0
      %2932 = vmatpush1.msra.mxu0 0.0
      %2933 = vmatprep.subr.mxu0 0.0
      %2934 = vmatpush1.msra.mxu0 0.0
      %2935 = vmatprep.subr.mxu0 0.0
      %2936 = vmatpush1.msra.mxu0 0.0
      %2937 = vmatprep.subr.mxu0 0.0
      %2938 = vmatpush1.msra.mxu0 0.0
      %2939 = vmatprep.subr.mxu0 0.0
      %2940 = vmatpush1.msra.mxu0 0.0
      %2941 = vmatprep.subr.mxu0 0.0
      %2942 = vmatpush1.msra.mxu0 0.0
      %2943 = vmatprep.mubr.f32.mxu0 0.0
      %2944 = vmatmul.mubr.f32.gmra.mrb[0].mxu0 %v2877
      %v2945 = vpop.f32.mrb[0].mxu0
      %v2946 = vadd.f32 0.0, %v2945
      %v2947 = vpop.f32.mrb[0].mxu0
      %v2948 = vadd.f32 0.0, %v2947
      %2949 = vdwg.mxu0
      %v2950 = vadd.f32 %v2856, %v2946
      %v2951 = vadd.f32 %v2857, %v2948
      %s2952 = scalar_lea.vmem %s3, 16
      %v2953 = vld [vmem:[%s2952] sm:$0xff]
      %2955 = vset.pattern.permute.xlu0 0
      %2956 = vperm.xlu0 %2955, %v2953
      %v2957 = vpop.permute.xlu0 %2956
      %v2959 = vadd.f32 %v2950, %v2957
      %v2960 = vadd.f32 %v2951, %v2957
      %v2961 = vmax.f32 %v2959, 0.0
      %v2962 = vmax.f32 %v2960, 0.0
      %2963 = vst [vmem:[#allocation5 + $0x8] sm:$0xff] %v2961
      %2964 = vst [vmem:[#allocation5 + $0x10] sm:$0xff] %v2962
      %v2965 = vld [vmem:[%s4] sm:$0xff]
      %v2966 = vld [vmem:[%s4 + $0x8] sm:$0xff]
      %v2967 = vld [vmem:[#allocation2 + $0x8] sm:$0xff]
      %v2968 = vld [vmem:[#allocation2 + $0x10] sm:$0xff]
      %s2969 = scalar_lea.vmem %s4, 16
      %v2970 = vld [vmem:[%s2969] sm:$0xff]
      %v2971 = vld [vmem:[%s2969 + $0x8] sm:$0xff]
      %v2972 = vld [vmem:[#allocation3 + $0x8] sm:$0xff]
      %v2973 = vld [vmem:[#allocation3 + $0x10] sm:$0xff]
      %v2975 = vsel %vm380, %v2970, 0
      %v2978 = vsel %vm380, %v2971, 0
      %2980 = vmatprep.subr.mxu0 %v2973
      %2981 = vmatpush1.msra.mxu0 %v2972
      %2982 = vmatprep.subr.mxu0 0.0
      %2983 = vmatpush1.msra.mxu0 0.0
      %2984 = vmatprep.subr.mxu0 0.0
      %2985 = vmatpush1.msra.mxu0 0.0
      %2986 = vmatprep.subr.mxu0 0.0
      %2987 = vmatpush1.msra.mxu0 0.0
      %2988 = vmatprep.subr.mxu0 0.0
      %2989 = vmatpush1.msra.mxu0 0.0
      %2990 = vmatprep.subr.mxu0 0.0
      %2991 = vmatpush1.msra.mxu0 0.0
      %2992 = vmatprep.subr.mxu0 0.0
      %2993 = vmatpush1.msra.mxu0 0.0
      %2994 = vmatprep.subr.mxu0 0.0
      %2995 = vmatpush1.msra.mxu0 0.0
      %2996 = vmatprep.subr.mxu0 0.0
      %2997 = vmatpush1.msra.mxu0 0.0
      %2998 = vmatprep.subr.mxu0 0.0
      %2999 = vmatpush1.msra.mxu0 0.0
      %3000 = vmatprep.subr.mxu0 0.0
      %3001 = vmatpush1.msra.mxu0 0.0
      %3002 = vmatprep.subr.mxu0 0.0
      %3003 = vmatpush1.msra.mxu0 0.0
      %3004 = vmatprep.subr.mxu0 0.0
      %3005 = vmatpush1.msra.mxu0 0.0
      %3006 = vmatprep.subr.mxu0 0.0
      %3007 = vmatpush1.msra.mxu0 0.0
      %3008 = vmatprep.subr.mxu0 0.0
      %3009 = vmatpush1.msra.mxu0 0.0
      %3010 = vmatprep.subr.mxu0 0.0
      %3011 = vmatpush1.msra.mxu0 0.0
      %3012 = vmatprep.subr.mxu0 0.0
      %3013 = vmatpush1.msra.mxu0 0.0
      %3014 = vmatprep.subr.mxu0 0.0
      %3015 = vmatpush1.msra.mxu0 0.0
      %3016 = vmatprep.subr.mxu0 0.0
      %3017 = vmatpush1.msra.mxu0 0.0
      %3018 = vmatprep.subr.mxu0 0.0
      %3019 = vmatpush1.msra.mxu0 0.0
      %3020 = vmatprep.subr.mxu0 0.0
      %3021 = vmatpush1.msra.mxu0 0.0
      %3022 = vmatprep.subr.mxu0 0.0
      %3023 = vmatpush1.msra.mxu0 0.0
      %3024 = vmatprep.subr.mxu0 0.0
      %3025 = vmatpush1.msra.mxu0 0.0
      %3026 = vmatprep.subr.mxu0 0.0
      %3027 = vmatpush1.msra.mxu0 0.0
      %3028 = vmatprep.subr.mxu0 0.0
      %3029 = vmatpush1.msra.mxu0 0.0
      %3030 = vmatprep.subr.mxu0 0.0
      %3031 = vmatpush1.msra.mxu0 0.0
      %3032 = vmatprep.subr.mxu0 0.0
      %3033 = vmatpush1.msra.mxu0 0.0
      %3034 = vmatprep.subr.mxu0 0.0
      %3035 = vmatpush1.msra.mxu0 0.0
      %3036 = vmatprep.subr.mxu0 0.0
      %3037 = vmatpush1.msra.mxu0 0.0
      %3038 = vmatprep.subr.mxu0 0.0
      %3039 = vmatpush1.msra.mxu0 0.0
      %3040 = vmatprep.subr.mxu0 0.0
      %3041 = vmatpush1.msra.mxu0 0.0
      %3042 = vmatprep.subr.mxu0 0.0
      %3043 = vmatpush1.msra.mxu0 0.0
      %3044 = vmatprep.mubr.f32.mxu0 0.0
      %3045 = vmatmul.mubr.f32.gmra.mrb[0].mxu0 %v2975
      %v3046 = vpop.f32.mrb[0].mxu0
      %v3047 = vadd.f32 0.0, %v3046
      %v3048 = vpop.f32.mrb[0].mxu0
      %v3049 = vadd.f32 0.0, %v3048
      %3050 = vmatprep.mubr.f32.mxu0 0.0
      %3051 = vmatmul.mubr.f32.gmra.mrb[0].mxu0 %v2978
      %v3052 = vpop.f32.mrb[0].mxu0
      %v3053 = vadd.f32 0.0, %v3052
      %v3054 = vpop.f32.mrb[0].mxu0
      %v3055 = vadd.f32 0.0, %v3054
      %3056 = vdwg.mxu0
      %v3058 = vsel %vm380, %v2965, 0
      %v3061 = vsel %vm380, %v2966, 0
      %3063 = vmatprep.subr.mxu0 %v2968
      %3064 = vmatpush1.msra.mxu0 %v2967
      %3065 = vmatprep.subr.mxu0 0.0
      %3066 = vmatpush1.msra.mxu0 0.0
      %3067 = vmatprep.subr.mxu0 0.0
      %3068 = vmatpush1.msra.mxu0 0.0
      %3069 = vmatprep.subr.mxu0 0.0
      %3070 = vmatpush1.msra.mxu0 0.0
      %3071 = vmatprep.subr.mxu0 0.0
      %3072 = vmatpush1.msra.mxu0 0.0
      %3073 = vmatprep.subr.mxu0 0.0
      %3074 = vmatpush1.msra.mxu0 0.0
      %3075 = vmatprep.subr.mxu0 0.0
      %3076 = vmatpush1.msra.mxu0 0.0
      %3077 = vmatprep.subr.mxu0 0.0
      %3078 = vmatpush1.msra.mxu0 0.0
      %3079 = vmatprep.subr.mxu0 0.0
      %3080 = vmatpush1.msra.mxu0 0.0
      %3081 = vmatprep.subr.mxu0 0.0
      %3082 = vmatpush1.msra.mxu0 0.0
      %3083 = vmatprep.subr.mxu0 0.0
      %3084 = vmatpush1.msra.mxu0 0.0
      %3085 = vmatprep.subr.mxu0 0.0
      %3086 = vmatpush1.msra.mxu0 0.0
      %3087 = vmatprep.subr.mxu0 0.0
      %3088 = vmatpush1.msra.mxu0 0.0
      %3089 = vmatprep.subr.mxu0 0.0
      %3090 = vmatpush1.msra.mxu0 0.0
      %3091 = vmatprep.subr.mxu0 0.0
      %3092 = vmatpush1.msra.mxu0 0.0
      %3093 = vmatprep.subr.mxu0 0.0
      %3094 = vmatpush1.msra.mxu0 0.0
      %3095 = vmatprep.subr.mxu0 0.0
      %3096 = vmatpush1.msra.mxu0 0.0
      %3097 = vmatprep.subr.mxu0 0.0
      %3098 = vmatpush1.msra.mxu0 0.0
      %3099 = vmatprep.subr.mxu0 0.0
      %3100 = vmatpush1.msra.mxu0 0.0
      %3101 = vmatprep.subr.mxu0 0.0
      %3102 = vmatpush1.msra.mxu0 0.0
      %3103 = vmatprep.subr.mxu0 0.0
      %3104 = vmatpush1.msra.mxu0 0.0
      %3105 = vmatprep.subr.mxu0 0.0
      %3106 = vmatpush1.msra.mxu0 0.0
      %3107 = vmatprep.subr.mxu0 0.0
      %3108 = vmatpush1.msra.mxu0 0.0
      %3109 = vmatprep.subr.mxu0 0.0
      %3110 = vmatpush1.msra.mxu0 0.0
      %3111 = vmatprep.subr.mxu0 0.0
      %3112 = vmatpush1.msra.mxu0 0.0
      %3113 = vmatprep.subr.mxu0 0.0
      %3114 = vmatpush1.msra.mxu0 0.0
      %3115 = vmatprep.subr.mxu0 0.0
      %3116 = vmatpush1.msra.mxu0 0.0
      %3117 = vmatprep.subr.mxu0 0.0
      %3118 = vmatpush1.msra.mxu0 0.0
      %3119 = vmatprep.subr.mxu0 0.0
      %3120 = vmatpush1.msra.mxu0 0.0
      %3121 = vmatprep.subr.mxu0 0.0
      %3122 = vmatpush1.msra.mxu0 0.0
      %3123 = vmatprep.subr.mxu0 0.0
      %3124 = vmatpush1.msra.mxu0 0.0
      %3125 = vmatprep.subr.mxu0 0.0
      %3126 = vmatpush1.msra.mxu0 0.0
      %3127 = vmatprep.mubr.f32.mxu0 0.0
      %3128 = vmatmul.mubr.f32.gmra.mrb[0].mxu0 %v3058
      %v3129 = vpop.f32.mrb[0].mxu0
      %v3130 = vadd.f32 %v3047, %v3129
      %v3131 = vpop.f32.mrb[0].mxu0
      %v3132 = vadd.f32 %v3049, %v3131
      %3133 = vmatprep.mubr.f32.mxu0 0.0
      %3134 = vmatmul.mubr.f32.gmra.mrb[0].mxu0 %v3061
      %v3135 = vpop.f32.mrb[0].mxu0
      %v3136 = vadd.f32 %v3053, %v3135
      %v3137 = vpop.f32.mrb[0].mxu0
      %v3138 = vadd.f32 %v3055, %v3137
      %3139 = vdwg.mxu0
      %s3140 = scalar_lea.vmem %s4, 32
      %v3141 = vld [vmem:[%s3140] sm:$0xff]
      %v3142 = vld [vmem:[%s3140 + $0x8] sm:$0xff]
      %v3143 = vld [vmem:[#allocation4 + $0x8] sm:$0xff]
      %v3144 = vld [vmem:[#allocation4 + $0x10] sm:$0xff]
      %v3146 = vsel %vm380, %v3141, 0
      %v3149 = vsel %vm380, %v3142, 0
      %3151 = vmatprep.subr.mxu0 %v3144
      %3152 = vmatpush1.msra.mxu0 %v3143
      %3153 = vmatprep.subr.mxu0 0.0
      %3154 = vmatpush1.msra.mxu0 0.0
      %3155 = vmatprep.subr.mxu0 0.0
      %3156 = vmatpush1.msra.mxu0 0.0
      %3157 = vmatprep.subr.mxu0 0.0
      %3158 = vmatpush1.msra.mxu0 0.0
      %3159 = vmatprep.subr.mxu0 0.0
      %3160 = vmatpush1.msra.mxu0 0.0
      %3161 = vmatprep.subr.mxu0 0.0
      %3162 = vmatpush1.msra.mxu0 0.0
      %3163 = vmatprep.subr.mxu0 0.0
      %3164 = vmatpush1.msra.mxu0 0.0
      %3165 = vmatprep.subr.mxu0 0.0
      %3166 = vmatpush1.msra.mxu0 0.0
      %3167 = vmatprep.subr.mxu0 0.0
      %3168 = vmatpush1.msra.mxu0 0.0
      %3169 = vmatprep.subr.mxu0 0.0
      %3170 = vmatpush1.msra.mxu0 0.0
      %3171 = vmatprep.subr.mxu0 0.0
      %3172 = vmatpush1.msra.mxu0 0.0
      %3173 = vmatprep.subr.mxu0 0.0
      %3174 = vmatpush1.msra.mxu0 0.0
      %3175 = vmatprep.subr.mxu0 0.0
      %3176 = vmatpush1.msra.mxu0 0.0
      %3177 = vmatprep.subr.mxu0 0.0
      %3178 = vmatpush1.msra.mxu0 0.0
      %3179 = vmatprep.subr.mxu0 0.0
      %3180 = vmatpush1.msra.mxu0 0.0
      %3181 = vmatprep.subr.mxu0 0.0
      %3182 = vmatpush1.msra.mxu0 0.0
      %3183 = vmatprep.subr.mxu0 0.0
      %3184 = vmatpush1.msra.mxu0 0.0
      %3185 = vmatprep.subr.mxu0 0.0
      %3186 = vmatpush1.msra.mxu0 0.0
      %3187 = vmatprep.subr.mxu0 0.0
      %3188 = vmatpush1.msra.mxu0 0.0
      %3189 = vmatprep.subr.mxu0 0.0
      %3190 = vmatpush1.msra.mxu0 0.0
      %3191 = vmatprep.subr.mxu0 0.0
      %3192 = vmatpush1.msra.mxu0 0.0
      %3193 = vmatprep.subr.mxu0 0.0
      %3194 = vmatpush1.msra.mxu0 0.0
      %3195 = vmatprep.subr.mxu0 0.0
      %3196 = vmatpush1.msra.mxu0 0.0
      %3197 = vmatprep.subr.mxu0 0.0
      %3198 = vmatpush1.msra.mxu0 0.0
      %3199 = vmatprep.subr.mxu0 0.0
      %3200 = vmatpush1.msra.mxu0 0.0
      %3201 = vmatprep.subr.mxu0 0.0
      %3202 = vmatpush1.msra.mxu0 0.0
      %3203 = vmatprep.subr.mxu0 0.0
      %3204 = vmatpush1.msra.mxu0 0.0
      %3205 = vmatprep.subr.mxu0 0.0
      %3206 = vmatpush1.msra.mxu0 0.0
      %3207 = vmatprep.subr.mxu0 0.0
      %3208 = vmatpush1.msra.mxu0 0.0
      %3209 = vmatprep.subr.mxu0 0.0
      %3210 = vmatpush1.msra.mxu0 0.0
      %3211 = vmatprep.subr.mxu0 0.0
      %3212 = vmatpush1.msra.mxu0 0.0
      %3213 = vmatprep.subr.mxu0 0.0
      %3214 = vmatpush1.msra.mxu0 0.0
      %3215 = vmatprep.mubr.f32.mxu0 0.0
      %3216 = vmatmul.mubr.f32.gmra.mrb[0].mxu0 %v3146
      %v3217 = vpop.f32.mrb[0].mxu0
      %v3218 = vadd.f32 0.0, %v3217
      %v3219 = vpop.f32.mrb[0].mxu0
      %v3220 = vadd.f32 0.0, %v3219
      %3221 = vmatprep.mubr.f32.mxu0 0.0
      %3222 = vmatmul.mubr.f32.gmra.mrb[0].mxu0 %v3149
      %v3223 = vpop.f32.mrb[0].mxu0
      %v3224 = vadd.f32 0.0, %v3223
      %v3225 = vpop.f32.mrb[0].mxu0
      %v3226 = vadd.f32 0.0, %v3225
      %3227 = vdwg.mxu0
      %v3228 = vadd.f32 %v3130, %v3218
      %v3229 = vadd.f32 %v3132, %v3220
      %v3230 = vadd.f32 %v3136, %v3224
      %v3231 = vadd.f32 %v3138, %v3226
      %s3232 = scalar_lea.vmem %s4, 48
      %v3233 = vld [vmem:[%s3232] sm:$0xff]
      %v3234 = vld [vmem:[%s3232 + $0x8] sm:$0xff]
      %v3235 = vld [vmem:[#allocation5 + $0x8] sm:$0xff]
      %v3236 = vld [vmem:[#allocation5 + $0x10] sm:$0xff]
      %v3238 = vsel %vm380, %v3233, 0
      %v3241 = vsel %vm380, %v3234, 0
      %3243 = vmatprep.subr.mxu0 %v3236
      %3244 = vmatpush1.msra.mxu0 %v3235
      %3245 = vmatprep.subr.mxu0 0.0
      %3246 = vmatpush1.msra.mxu0 0.0
      %3247 = vmatprep.subr.mxu0 0.0
      %3248 = vmatpush1.msra.mxu0 0.0
      %3249 = vmatprep.subr.mxu0 0.0
      %3250 = vmatpush1.msra.mxu0 0.0
      %3251 = vmatprep.subr.mxu0 0.0
      %3252 = vmatpush1.msra.mxu0 0.0
      %3253 = vmatprep.subr.mxu0 0.0
      %3254 = vmatpush1.msra.mxu0 0.0
      %3255 = vmatprep.subr.mxu0 0.0
      %3256 = vmatpush1.msra.mxu0 0.0
      %3257 = vmatprep.subr.mxu0 0.0
      %3258 = vmatpush1.msra.mxu0 0.0
      %3259 = vmatprep.subr.mxu0 0.0
      %3260 = vmatpush1.msra.mxu0 0.0
      %3261 = vmatprep.subr.mxu0 0.0
      %3262 = vmatpush1.msra.mxu0 0.0
      %3263 = vmatprep.subr.mxu0 0.0
      %3264 = vmatpush1.msra.mxu0 0.0
      %3265 = vmatprep.subr.mxu0 0.0
      %3266 = vmatpush1.msra.mxu0 0.0
      %3267 = vmatprep.subr.mxu0 0.0
      %3268 = vmatpush1.msra.mxu0 0.0
      %3269 = vmatprep.subr.mxu0 0.0
      %3270 = vmatpush1.msra.mxu0 0.0
      %3271 = vmatprep.subr.mxu0 0.0
      %3272 = vmatpush1.msra.mxu0 0.0
      %3273 = vmatprep.subr.mxu0 0.0
      %3274 = vmatpush1.msra.mxu0 0.0
      %3275 = vmatprep.subr.mxu0 0.0
      %3276 = vmatpush1.msra.mxu0 0.0
      %3277 = vmatprep.subr.mxu0 0.0
      %3278 = vmatpush1.msra.mxu0 0.0
      %3279 = vmatprep.subr.mxu0 0.0
      %3280 = vmatpush1.msra.mxu0 0.0
      %3281 = vmatprep.subr.mxu0 0.0
      %3282 = vmatpush1.msra.mxu0 0.0
      %3283 = vmatprep.subr.mxu0 0.0
      %3284 = vmatpush1.msra.mxu0 0.0
      %3285 = vmatprep.subr.mxu0 0.0
      %3286 = vmatpush1.msra.mxu0 0.0
      %3287 = vmatprep.subr.mxu0 0.0
      %3288 = vmatpush1.msra.mxu0 0.0
      %3289 = vmatprep.subr.mxu0 0.0
      %3290 = vmatpush1.msra.mxu0 0.0
      %3291 = vmatprep.subr.mxu0 0.0
      %3292 = vmatpush1.msra.mxu0 0.0
      %3293 = vmatprep.subr.mxu0 0.0
      %3294 = vmatpush1.msra.mxu0 0.0
      %3295 = vmatprep.subr.mxu0 0.0
      %3296 = vmatpush1.msra.mxu0 0.0
      %3297 = vmatprep.subr.mxu0 0.0
      %3298 = vmatpush1.msra.mxu0 0.0
      %3299 = vmatprep.subr.mxu0 0.0
      %3300 = vmatpush1.msra.mxu0 0.0
      %3301 = vmatprep.subr.mxu0 0.0
      %3302 = vmatpush1.msra.mxu0 0.0
      %3303 = vmatprep.subr.mxu0 0.0
      %3304 = vmatpush1.msra.mxu0 0.0
      %3305 = vmatprep.subr.mxu0 0.0
      %3306 = vmatpush1.msra.mxu0 0.0
      %3307 = vmatprep.mubr.f32.mxu0 0.0
      %3308 = vmatmul.mubr.f32.gmra.mrb[0].mxu0 %v3238
      %v3309 = vpop.f32.mrb[0].mxu0
      %v3310 = vadd.f32 0.0, %v3309
      %v3311 = vpop.f32.mrb[0].mxu0
      %v3312 = vadd.f32 0.0, %v3311
      %3313 = vmatprep.mubr.f32.mxu0 0.0
      %3314 = vmatmul.mubr.f32.gmra.mrb[0].mxu0 %v3241
      %v3315 = vpop.f32.mrb[0].mxu0
      %v3316 = vadd.f32 0.0, %v3315
      %v3317 = vpop.f32.mrb[0].mxu0
      %v3318 = vadd.f32 0.0, %v3317
      %3319 = vdwg.mxu0
      %v3320 = vadd.f32 %v3228, %v3310
      %v3321 = vadd.f32 %v3229, %v3312
      %v3322 = vadd.f32 %v3230, %v3316
      %v3323 = vadd.f32 %v3231, %v3318
      %v3324 = vld [vmem:[%s5] sm:$0xff]
      %v3325 = vld [vmem:[%s5 + $0x8] sm:$0xff]
      %3327 = vset.pattern.permute.xlu0 0
      %3328 = vperm.xlu0 %3327, %v3324
      %v3329 = vpop.permute.xlu0 %3328
      %3332 = vset.pattern.permute.xlu0 0
      %3333 = vperm.xlu0 %3332, %v3325
      %v3334 = vpop.permute.xlu0 %3333
      %v3336 = vadd.f32 %v3320, %v3329
      %v3337 = vadd.f32 %v3321, %v3329
      %v3338 = vadd.f32 %v3322, %v3334
      %v3339 = vadd.f32 %v3323, %v3334
      %v3340 = vmax.f32 %v3336, 0.0
      %v3341 = vmax.f32 %v3337, 0.0
      %v3342 = vmax.f32 %v3338, 0.0
      %v3343 = vmax.f32 %v3339, 0.0
      %v3344 = vld [vmem:[%s6] sm:$0xff]
      %v3345 = vld [vmem:[%s6 + $0x8] sm:$0xff]
      %v3347 = vsel %vm375, %v3344, 0
      %v3350 = vsel %vm375, %v3345, 0
      %3352 = vmatprep.subr.mxu0 %v3341
      %3353 = vmatpush1.msra.mxu0 %v3340
      %3354 = vmatprep.subr.mxu0 %v3343
      %3355 = vmatpush1.msra.mxu0 %v3342
      %3356 = vmatprep.subr.mxu0 0.0
      %3357 = vmatpush1.msra.mxu0 0.0
      %3358 = vmatprep.subr.mxu0 0.0
      %3359 = vmatpush1.msra.mxu0 0.0
      %3360 = vmatprep.subr.mxu0 0.0
      %3361 = vmatpush1.msra.mxu0 0.0
      %3362 = vmatprep.subr.mxu0 0.0
      %3363 = vmatpush1.msra.mxu0 0.0
      %3364 = vmatprep.subr.mxu0 0.0
      %3365 = vmatpush1.msra.mxu0 0.0
      %3366 = vmatprep.subr.mxu0 0.0
      %3367 = vmatpush1.msra.mxu0 0.0
      %3368 = vmatprep.subr.mxu0 0.0
      %3369 = vmatpush1.msra.mxu0 0.0
      %3370 = vmatprep.subr.mxu0 0.0
      %3371 = vmatpush1.msra.mxu0 0.0
      %3372 = vmatprep.subr.mxu0 0.0
      %3373 = vmatpush1.msra.mxu0 0.0
      %3374 = vmatprep.subr.mxu0 0.0
      %3375 = vmatpush1.msra.mxu0 0.0
      %3376 = vmatprep.subr.mxu0 0.0
      %3377 = vmatpush1.msra.mxu0 0.0
      %3378 = vmatprep.subr.mxu0 0.0
      %3379 = vmatpush1.msra.mxu0 0.0
      %3380 = vmatprep.subr.mxu0 0.0
      %3381 = vmatpush1.msra.mxu0 0.0
      %3382 = vmatprep.subr.mxu0 0.0
      %3383 = vmatpush1.msra.mxu0 0.0
      %3384 = vmatprep.subr.mxu0 0.0
      %3385 = vmatpush1.msra.mxu0 0.0
      %3386 = vmatprep.subr.mxu0 0.0
      %3387 = vmatpush1.msra.mxu0 0.0
      %3388 = vmatprep.subr.mxu0 0.0
      %3389 = vmatpush1.msra.mxu0 0.0
      %3390 = vmatprep.subr.mxu0 0.0
      %3391 = vmatpush1.msra.mxu0 0.0
      %3392 = vmatprep.subr.mxu0 0.0
      %3393 = vmatpush1.msra.mxu0 0.0
      %3394 = vmatprep.subr.mxu0 0.0
      %3395 = vmatpush1.msra.mxu0 0.0
      %3396 = vmatprep.subr.mxu0 0.0
      %3397 = vmatpush1.msra.mxu0 0.0
      %3398 = vmatprep.subr.mxu0 0.0
      %3399 = vmatpush1.msra.mxu0 0.0
      %3400 = vmatprep.subr.mxu0 0.0
      %3401 = vmatpush1.msra.mxu0 0.0
      %3402 = vmatprep.subr.mxu0 0.0
      %3403 = vmatpush1.msra.mxu0 0.0
      %3404 = vmatprep.subr.mxu0 0.0
      %3405 = vmatpush1.msra.mxu0 0.0
      %3406 = vmatprep.subr.mxu0 0.0
      %3407 = vmatpush1.msra.mxu0 0.0
      %3408 = vmatprep.subr.mxu0 0.0
      %3409 = vmatpush1.msra.mxu0 0.0
      %3410 = vmatprep.subr.mxu0 0.0
      %3411 = vmatpush1.msra.mxu0 0.0
      %3412 = vmatprep.subr.mxu0 0.0
      %3413 = vmatpush1.msra.mxu0 0.0
      %3414 = vmatprep.subr.mxu0 0.0
      %3415 = vmatpush1.msra.mxu0 0.0
      %3416 = vmatprep.mubr.f32.mxu0 0.0
      %3417 = vmatmul.mubr.f32.gmra.mrb[0].mxu0 %v3347
      %v3418 = vpop.f32.mrb[0].mxu0
      %v3419 = vadd.f32 0.0, %v3418
      %v3420 = vpop.f32.mrb[0].mxu0
      %v3421 = vadd.f32 0.0, %v3420
      %3422 = vmatprep.mubr.f32.mxu0 0.0
      %3423 = vmatmul.mubr.f32.gmra.mrb[0].mxu0 %v3350
      %v3424 = vpop.f32.mrb[0].mxu0
      %v3425 = vadd.f32 0.0, %v3424
      %v3426 = vpop.f32.mrb[0].mxu0
      %v3427 = vadd.f32 0.0, %v3426
      %3428 = vdwg.mxu0
      %v3429 = vadd.f32 %v3419, %v3421
      %3430 = vadd.xlane.f32.xlu0 %v3429
      %v3431 = vpop.xlane.xlu0 %3430
      %v3432 = vadd.f32 %v3425, %v3427
      %3433 = vadd.xlane.f32.xlu0 %v3432
      %v3434 = vpop.xlane.xlu0 %3433
      %v3435 = vmul.f32 %v3431, 0.00390625
      %v3436 = vmul.f32 %v3434, 0.00390625
      %v3437 = vld [vmem:[%s7] sm:$0xff]
      %v3438 = vld [vmem:[%s7 + $0x8] sm:$0xff]
      %v3439 = vadd.f32 %v3435, %v3437
      %v3440 = vadd.f32 %v3436, %v3438
      %v3441 = vadd.f32 %v3439, 3.0
      %v3442 = vadd.f32 %v3440, 3.0
      %v3443 = vmax.f32 %v3441, 0.0
      %v3444 = vmax.f32 %v3442, 0.0
      %v3445 = vmin.f32 %v3443, 6.0
      %v3446 = vmin.f32 %v3444, 6.0
      %v3447 = vmul.f32 %v3445, 0.16666667
      %v3448 = vmul.f32 %v3446, 0.16666667
      %3450 = vset.pattern.permute.xlu0 0
      %3451 = vperm.xlu0 %3450, %v3447
      %v3452 = vpop.permute.xlu0 %3451
      %3455 = vset.pattern.permute.xlu0 0
      %3456 = vperm.xlu0 %3455, %v3448
      %v3457 = vpop.permute.xlu0 %3456
      %v3459 = vmul.f32 %v3340, %v3452
      %v3460 = vmul.f32 %v3341, %v3452
      %v3461 = vmul.f32 %v3342, %v3457
      %v3462 = vmul.f32 %v3343, %v3457
      %3463 = vst [vmem:[%s305] sm:$0xff] %v3459
      %3464 = vst [vmem:[%s305 + $0x8] sm:$0xff] %v3460
      %3465 = vst [vmem:[%s305 + $0x10] sm:$0xff] %v3461
      %3466 = vst [vmem:[%s305 + $0x18] sm:$0xff] %v3462
      %p3467 = scmp.lt.s32.totalorder %s19, 1
      %s3468 = scalar_select %p3467, %s19, 1
      %s3469 = smul.addr %s3468, 4
      %s3470 = smul.addr %s3469, 8
      %s3471 = scalar_lea.vmem %s8, %s3470
      // Predicated region
      $region53: #{osa_forward.1} parent=51 // pred_check
        %p3472 = pneg %p210
      $region54: #{osa_forward.1} parent=51 // pred_check_branch
        %3474 = sbr.rel (%p3472) target = $region56
      $region55: #{osa_forward.1} parent=51 // pred_region
        _
      $region56: #{osa_forward.1} parent=51 // pred_fallthru
        _
    $region52: #{osa_forward.1} parent=5 // pred_fallthru
      _
    %p3475 = scmp.le.s32.totalorder 2, %s14
    // Predicated region
    $region57: #{osa_forward.1} parent=5 // pred_check
      %p3476 = pneg %p3475
    $region58: #{osa_forward.1} parent=5 // pred_check_branch
      %3478 = sbr.rel (%p3476) target = $region60
    $region59: #{osa_forward.1} parent=5 // pred_region
      %s3479 = ssub.s32 %s14, 2
      // Predicated region
      $region61: #{osa_forward.1} parent=59 // pred_check
        %p3480 = pneg %p216
      $region62: #{osa_forward.1} parent=59 // pred_check_branch
        %3482 = sbr.rel (%p3480) target = $region64
      $region63: #{osa_forward.1} parent=59 // pred_region
        %p3483 = scmp.lt.s32.totalorder %s20, 1
        %s3484 = scalar_select %p3483, %s20, 1
        %s3485 = smul.addr %s3484, 4
        %s3486 = smul.addr %s3485, 8
        %s3487 = scalar_lea.vmem %s8, %s3486
      $region64: #{osa_forward.1} parent=59 // pred_fallthru
        _
    $region60: #{osa_forward.1} parent=5 // pred_fallthru
      _
  $region6: #{osa_forward.1} parent=0 // loop_footer
    %s18 = sadd.s32 1, %s14
  $region7: #{osa_forward.1} parent=0 // loop_footer_branch
    %13 = sbr.rel target = $region3
  $region8: #{osa_forward.1} parent=0 // loop_exit
    _

</llo_original>
